<compile_context>
chip_gen: v7x
topology: tpu7x:2x2x1
jax: 0.10.0
libtpu: 0.0.40
codegen_flags: <defaults>
</compile_context>

<pallas_src>
import jax
import jax.numpy as jnp
from jax.experimental import pallas as pl
from jax.experimental.pallas import tpu as pltpu


# ------------------------ fused bidirectional LSTM encoder kernel ------------------------
def _bilstm_kernel(x_ref, w_ref, b_ref, out_ref):
    """One question: both LSTM directions over the full sequence, fused gates.

    x_ref:   (1, T, B, E)   time-major embeddings for this question
    w_ref:   (2, E+H, 4H)   per direction, rows [0:E] = W_ih, [E:E+H] = W_hh,
                            gate order (i, f, g, o) along the 4H lane axis
    b_ref:   (2, 1, 4H)
    out_ref: (1, B, T, 2H)  batch-major bidirectional hidden states (fwd | bwd on lanes)
    """
    T = x_ref.shape[1]
    B = x_ref.shape[2]
    H = w_ref.shape[-1] // 4

    def run_direction(d, reverse):
        w = w_ref[d]                       # (E+H, 4H)
        b = b_ref[d]                       # (1, 4H)
        h = jnp.zeros((B, H), jnp.float32)
        c = jnp.zeros((B, H), jnp.float32)
        hs = [None] * T
        steps = range(T - 1, -1, -1) if reverse else range(T)
        for t in steps:                    # static, fully unrolled (T is small)
            x_t = x_ref[0, t]              # (B, E)
            xh = jnp.concatenate([x_t, h], axis=-1)                       # (B, E+H)
            g = jnp.dot(xh, w, preferred_element_type=jnp.float32) + b    # (B, 4H)
            i = jax.nn.sigmoid(g[:, 0:H])
            f = jax.nn.sigmoid(g[:, H:2 * H])
            u = jnp.tanh(g[:, 2 * H:3 * H])
            o = jax.nn.sigmoid(g[:, 3 * H:4 * H])
            c = f * c + i * u
            h = o * jnp.tanh(c)
            hs[t] = h
        return jnp.stack(hs, axis=1)       # (B, T, H)

    h_fwd = run_direction(0, reverse=False)
    h_bwd = run_direction(1, reverse=True)
    out_ref[0] = jnp.concatenate([h_fwd, h_bwd], axis=-1)   # single lane-dense store


def bilstm_encode_pallas(x_qtbe, w_gates, b_gates):
    """x_qtbe: (Q, T, B, E); w_gates: (2, E+H, 4H); b_gates: (2, 1, 4H) -> (Q, B, T, 2H)."""
    Q, T, B, E = x_qtbe.shape
    H = w_gates.shape[-1] // 4
    return pl.pallas_call(
        _bilstm_kernel,
        out_shape=jax.ShapeDtypeStruct((Q, B, T, 2 * H), jnp.float32),
        grid=(Q,),
        in_specs=[
            pl.BlockSpec((1, T, B, E), lambda q: (q, 0, 0, 0)),
            pl.BlockSpec((2, E + H, 4 * H), lambda q: (0, 0, 0)),
            pl.BlockSpec((2, 1, 4 * H), lambda q: (0, 0, 0)),
        ],
        out_specs=pl.BlockSpec((1, B, T, 2 * H), lambda q: (q, 0, 0, 0)),
        compiler_params=pltpu.CompilerParams(dimension_semantics=("parallel",)),
    )(x_qtbe, w_gates, b_gates)


# ------------------------ self-attention + SAN classifier head ---------------------------
def _san_head_kernel(ha_ref, hb_ref, w1_ref, w2_ref, wa_ref, wb_ref,
                     fc1w_ref, fc1b_ref, fc2w_ref, fc2b_ref,
                     score_ref, attna_ref, attnb_ref):
    """Whole-batch, both-question self-attention + bilinear interaction + classifier."""
    w1 = w1_ref[...]
    w2 = w2_ref[...]

    def attend(h3):                        # h3: (B, T, D)
        B, T, D = h3.shape
        r = w2.shape[-1]
        h2 = h3.reshape(B * T, D)          # M = B*T rows through the MXU
        z = jnp.tanh(jnp.dot(h2, w1, preferred_element_type=jnp.float32))   # (B*T, da)
        s = jnp.dot(z, w2, preferred_element_type=jnp.float32)              # (B*T, r)
        a = jax.nn.softmax(s.reshape(B, T, r), axis=1)     # softmax over seq (torch dim=1)
        attn = jnp.transpose(a, (0, 2, 1))                 # (B, r, T)
        m = jnp.einsum('brt,btd->brd', attn, h3,
                       preferred_element_type=jnp.float32)                  # (B, r, D)
        return attn, m

    attn_a, m_a = attend(ha_ref[...])
    attn_b, m_b = attend(hb_ref[...])

    B, r, D = m_a.shape
    fa = jnp.dot(m_a.reshape(B * r, D), wa_ref[...],
                 preferred_element_type=jnp.float32)       # (B*r, D)
    fb = jnp.dot(m_b.reshape(B * r, D), wb_ref[...],
                 preferred_element_type=jnp.float32)       # (B*r, D)
    fab = (fa * fb).reshape(B, r, D)

    # Row-major flatten of (r, D) per batch row -> single K = r*D contraction.
    fab_flat = jnp.concatenate([fab[:, k, :] for k in range(r)], axis=-1)    # (B, r*D)
    feat = jnp.dot(fab_flat, fc1w_ref[...],
                   preferred_element_type=jnp.float32) + fc1b_ref[...]       # (B, hidden)
    feat = jnp.maximum(feat, 0.0)
    score = jnp.dot(feat, fc2w_ref[...],
                    preferred_element_type=jnp.float32) + fc2b_ref[...]      # (B, C)

    score_ref[...] = score
    attna_ref[...] = attn_a
    attnb_ref[...] = attn_b


def san_head_pallas(Ha, Hb, params):
    """Ha, Hb: (B, T, D). Returns score (B, C), attn_a (B, r, T), attn_b (B, r, T)."""
    B, T, _ = Ha.shape
    r = params["w2"].shape[-1]
    C = params["fc2w"].shape[-1]
    return pl.pallas_call(
        _san_head_kernel,
        out_shape=(
            jax.ShapeDtypeStruct((B, C), jnp.float32),
            jax.ShapeDtypeStruct((B, r, T), jnp.float32),
            jax.ShapeDtypeStruct((B, r, T), jnp.float32),
        ),
    )(Ha, Hb, params["w1"], params["w2"], params["wa"], params["wb"],
      params["fc1w"], params["fc1b"], params["fc2w"], params["fc2b"])


# --------------------------------------- forward -----------------------------------------
def san_forward(params, qa_ids, qb_ids):
    ids = jnp.stack([qa_ids, qb_ids], axis=0)               # (2, B, T) int32
    ids_tm = jnp.transpose(ids, (0, 2, 1))                  # (2, T, B) — tiny int transpose
    x = jnp.take(params["embedding"], ids_tm, axis=0).astype(jnp.float32)   # (2, T, B, E)
    h_all = bilstm_encode_pallas(x, params["w_gates"], params["b_gates"])   # (2, B, T, 2H)
    return san_head_pallas(h_all[0], h_all[1], params)


# ----------------------------------- pure-JAX reference ----------------------------------
def _lstm_ref_dir(x_bte, w, b, reverse):
    B = x_bte.shape[0]
    H = w.shape[-1] // 4
    xs = jnp.transpose(x_bte, (1, 0, 2))                    # (T, B, E)
    if reverse:
        xs = xs[::-1]

    def step(carry, x_t):
        h, c = carry
        g = jnp.concatenate([x_t, h], axis=-1) @ w + b
        i = jax.nn.sigmoid(g[:, 0:H])
        f = jax.nn.sigmoid(g[:, H:2 * H])
        u = jnp.tanh(g[:, 2 * H:3 * H])
        o = jax.nn.sigmoid(g[:, 3 * H:4 * H])
        c = f * c + i * u
        h = o * jnp.tanh(c)
        return (h, c), h

    (_, _), hs = jax.lax.scan(step, (jnp.zeros((B, H)), jnp.zeros((B, H))), xs)
    if reverse:
        hs = hs[::-1]
    return jnp.transpose(hs, (1, 0, 2))                     # (B, T, H)


def san_forward_ref(params, qa_ids, qb_ids):
    def encode(ids):
        x = jnp.take(params["embedding"], ids, axis=0).astype(jnp.float32)  # (B, T, E)
        hf = _lstm_ref_dir(x, params["w_gates"][0], params["b_gates"][0], False)
        hb = _lstm_ref_dir(x, params["w_gates"][1], params["b_gates"][1], True)
        return jnp.concatenate([hf, hb], axis=-1)           # (B, T, 2H)

    def attend(H):
        z = jnp.tanh(jnp.einsum('btd,dk->btk', H, params["w1"]))
        s = jnp.einsum('btk,kr->btr', z, params["w2"])
        a = jax.nn.softmax(s, axis=1)
        attn = jnp.transpose(a, (0, 2, 1))
        m = jnp.einsum('brt,btd->brd', attn, H)
        return attn, m

    Ha, Hb = encode(qa_ids), encode(qb_ids)
    attn_a, m_a = attend(Ha)
    attn_b, m_b = attend(Hb)
    fa = jnp.einsum('brd,de->bre', m_a, params["wa"])
    fb = jnp.einsum('brd,de->bre', m_b, params["wb"])
    fab = (fa * fb).reshape(Ha.shape[0], -1)
    feat = jnp.maximum(fab @ params["fc1w"] + params["fc1b"][0], 0.0)
    score = feat @ params["fc2w"] + params["fc2b"][0]
    return score, attn_a, attn_b


# ------------------------------------------ main -----------------------------------------
if __name__ == "__main__":
    # Small shapes consistent with the module.
    B, T = 2, 8
    vocab_size, E = 32, 16
    lstm_hidden = 16            # D = 2 * lstm_hidden = 32
    da, r = 16, 8
    hidden_dim, num_classes = 32, 4
    D = 2 * lstm_hidden

    key = jax.random.PRNGKey(0)
    ks = jax.random.split(key, 12)

    def rnd(k, shape, scale=0.1):
        return (scale * jax.random.normal(k, shape)).astype(jnp.float32)

    params = dict(
        embedding=rnd(ks[0], (vocab_size, E), 1.0),
        # direction-stacked fused LSTM weights: rows [0:E] = W_ih, [E:E+H] = W_hh,
        # gate order (i, f, g, o) along the 4H lane axis; bias = b_ih + b_hh.
        w_gates=rnd(ks[1], (2, E + lstm_hidden, 4 * lstm_hidden)),
        b_gates=rnd(ks[2], (2, 1, 4 * lstm_hidden)),
        # self-attention: ws1 (D, da), ws2 (da, r), both bias-free
        w1=rnd(ks[3], (D, da)),
        w2=rnd(ks[4], (da, r)),
        # SAN bilinear parameters (torch.randn(D, D))
        wa=rnd(ks[5], (D, D), 1.0),
        wb=rnd(ks[6], (D, D), 1.0),
        # fc1: Linear(r*D, hidden); fc2: Linear(hidden, C)
        fc1w=rnd(ks[7], (r * D, hidden_dim)),
        fc1b=rnd(ks[8], (1, hidden_dim)),
        fc2w=rnd(ks[9], (hidden_dim, num_classes)),
        fc2b=rnd(ks[10], (1, num_classes)),
    )

    qa_ids = jax.random.randint(ks[11], (B, T), 0, vocab_size, dtype=jnp.int32)
    qb_ids = jax.random.randint(jax.random.fold_in(ks[11], 1), (B, T), 0, vocab_size,
                                dtype=jnp.int32)

    score, attn_a, attn_b = jax.jit(san_forward)(params, qa_ids, qb_ids)
    jax.block_until_ready((score, attn_a, attn_b))

    score_r, attn_a_r, attn_b_r = jax.jit(san_forward_ref)(params, qa_ids, qb_ids)
    jax.block_until_ready((score_r, attn_a_r, attn_b_r))

    assert score.shape == (B, num_classes)
    assert attn_a.shape == (B, r, T) and attn_b.shape == (B, r, T)
    assert jnp.allclose(score, score_r, atol=1e-3, rtol=1e-3)
    assert jnp.allclose(attn_a, attn_a_r, atol=1e-3, rtol=1e-3)
    assert jnp.allclose(attn_b, attn_b_r, atol=1e-3, rtol=1e-3)

    print("KERNEL_OK")
</pallas_src>

<mosaic_0001>
module attributes {stable_mosaic.version = 11 : i64} {
  func.func @_san_head_kernel(%arg0: memref<2x8x32xf32, #tpu.memory_space<vmem>>, %arg1: memref<2x8x32xf32, #tpu.memory_space<vmem>>, %arg2: memref<32x16xf32, #tpu.memory_space<vmem>>, %arg3: memref<16x8xf32, #tpu.memory_space<vmem>>, %arg4: memref<32x32xf32, #tpu.memory_space<vmem>>, %arg5: memref<32x32xf32, #tpu.memory_space<vmem>>, %arg6: memref<256x32xf32, #tpu.memory_space<vmem>>, %arg7: memref<1x32xf32, #tpu.memory_space<vmem>>, %arg8: memref<32x4xf32, #tpu.memory_space<vmem>>, %arg9: memref<1x4xf32, #tpu.memory_space<vmem>>, %arg10: memref<2x4xf32, #tpu.memory_space<vmem>>, %arg11: memref<2x8x8xf32, #tpu.memory_space<vmem>>, %arg12: memref<2x8x8xf32, #tpu.memory_space<vmem>>) attributes {dimension_semantics = [], scalar_prefetch = 0 : i64, scratch_operands = 0 : i64, tpu.core_type = #tpu.core_type<tc>} {
    %c0 = arith.constant 0 : index
    %c0_0 = arith.constant 0 : index
    %0 = vector.load %arg2[%c0, %c0_0] : memref<32x16xf32, #tpu.memory_space<vmem>>, vector<32x16xf32>
    %c0_1 = arith.constant 0 : index
    %c0_2 = arith.constant 0 : index
    %1 = vector.load %arg3[%c0_1, %c0_2] : memref<16x8xf32, #tpu.memory_space<vmem>>, vector<16x8xf32>
    %c0_3 = arith.constant 0 : index
    %c0_4 = arith.constant 0 : index
    %c0_5 = arith.constant 0 : index
    %2 = vector.load %arg0[%c0_3, %c0_4, %c0_5] : memref<2x8x32xf32, #tpu.memory_space<vmem>>, vector<2x8x32xf32>
    %3 = vector.shape_cast %2 : vector<2x8x32xf32> to vector<16x32xf32>
    %cst = arith.constant dense<0.000000e+00> : vector<16x16xf32>
    %4 = tpu.matmul %3, %0, %cst {dimension_numbers = #tpu.dot_dimension_numbers<[1], [0], [0], [1], [0, 0, 1, 1], [], []>} : vector<16x32xf32>, vector<32x16xf32>, vector<16x16xf32> -> vector<16x16xf32>
    %5 = math.tanh %4 : vector<16x16xf32>
    %cst_6 = arith.constant dense<0.000000e+00> : vector<16x8xf32>
    %6 = tpu.matmul %5, %1, %cst_6 {dimension_numbers = #tpu.dot_dimension_numbers<[1], [0], [0], [1], [0, 0, 1, 1], [], []>} : vector<16x16xf32>, vector<16x8xf32>, vector<16x8xf32> -> vector<16x8xf32>
    %7 = vector.shape_cast %6 : vector<16x8xf32> to vector<2x8x8xf32>
    %cst_7 = arith.constant dense<0xFF800000> : vector<2x8xf32>
    %8 = vector.multi_reduction <maximumf>, %7, %cst_7 [1] : vector<2x8x8xf32> to vector<2x8xf32>
    %cst_8 = arith.constant 0xFF800000 : f32
    %9 = vector.broadcast %cst_8 : f32 to vector<2x8xf32>
    %10 = arith.maximumf %9, %8 : vector<2x8xf32>
    %11 = vector.shape_cast %10 : vector<2x8xf32> to vector<2x1x8xf32>
    %12 = vector.broadcast %11 : vector<2x1x8xf32> to vector<2x8x8xf32>
    %13 = arith.subf %7, %12 : vector<2x8x8xf32>
    %14 = math.exp %13 : vector<2x8x8xf32>
    %cst_9 = arith.constant dense<0.000000e+00> : vector<2x8xf32>
    %15 = vector.multi_reduction <add>, %14, %cst_9 [1] : vector<2x8x8xf32> to vector<2x8xf32>
    %16 = vector.shape_cast %15 : vector<2x8xf32> to vector<2x1x8xf32>
    %17 = vector.broadcast %16 : vector<2x1x8xf32> to vector<2x8x8xf32>
    %18 = arith.divf %14, %17 : vector<2x8x8xf32>
    %19 = tpu.transpose %18, [0, 2, 1] : vector<2x8x8xf32> -> vector<2x8x8xf32>
    "tpu.trace_start"() <{level = 10 : i32, message = "brt,btd->brd"}> : () -> ()
    %cst_10 = arith.constant dense<0.000000e+00> : vector<2x8x32xf32>
    %20 = tpu.matmul %19, %2, %cst_10 {dimension_numbers = #tpu.dot_dimension_numbers<[2], [1], [1], [2], [0, 0, 0, 1, 1, 2], [0], [0]>} : vector<2x8x8xf32>, vector<2x8x32xf32>, vector<2x8x32xf32> -> vector<2x8x32xf32>
    "tpu.trace_stop"() : () -> ()
    %c0_11 = arith.constant 0 : index
    %c0_12 = arith.constant 0 : index
    %c0_13 = arith.constant 0 : index
    %21 = vector.load %arg1[%c0_11, %c0_12, %c0_13] : memref<2x8x32xf32, #tpu.memory_space<vmem>>, vector<2x8x32xf32>
    %22 = vector.shape_cast %21 : vector<2x8x32xf32> to vector<16x32xf32>
    %cst_14 = arith.constant dense<0.000000e+00> : vector<16x16xf32>
    %23 = tpu.matmul %22, %0, %cst_14 {dimension_numbers = #tpu.dot_dimension_numbers<[1], [0], [0], [1], [0, 0, 1, 1], [], []>} : vector<16x32xf32>, vector<32x16xf32>, vector<16x16xf32> -> vector<16x16xf32>
    %24 = math.tanh %23 : vector<16x16xf32>
    %cst_15 = arith.constant dense<0.000000e+00> : vector<16x8xf32>
    %25 = tpu.matmul %24, %1, %cst_15 {dimension_numbers = #tpu.dot_dimension_numbers<[1], [0], [0], [1], [0, 0, 1, 1], [], []>} : vector<16x16xf32>, vector<16x8xf32>, vector<16x8xf32> -> vector<16x8xf32>
    %26 = vector.shape_cast %25 : vector<16x8xf32> to vector<2x8x8xf32>
    %cst_16 = arith.constant dense<0xFF800000> : vector<2x8xf32>
    %27 = vector.multi_reduction <maximumf>, %26, %cst_16 [1] : vector<2x8x8xf32> to vector<2x8xf32>
    %cst_17 = arith.constant 0xFF800000 : f32
    %28 = vector.broadcast %cst_17 : f32 to vector<2x8xf32>
    %29 = arith.maximumf %28, %27 : vector<2x8xf32>
    %30 = vector.shape_cast %29 : vector<2x8xf32> to vector<2x1x8xf32>
    %31 = vector.broadcast %30 : vector<2x1x8xf32> to vector<2x8x8xf32>
    %32 = arith.subf %26, %31 : vector<2x8x8xf32>
    %33 = math.exp %32 : vector<2x8x8xf32>
    %cst_18 = arith.constant dense<0.000000e+00> : vector<2x8xf32>
    %34 = vector.multi_reduction <add>, %33, %cst_18 [1] : vector<2x8x8xf32> to vector<2x8xf32>
    %35 = vector.shape_cast %34 : vector<2x8xf32> to vector<2x1x8xf32>
    %36 = vector.broadcast %35 : vector<2x1x8xf32> to vector<2x8x8xf32>
    %37 = arith.divf %33, %36 : vector<2x8x8xf32>
    %38 = tpu.transpose %37, [0, 2, 1] : vector<2x8x8xf32> -> vector<2x8x8xf32>
    "tpu.trace_start"() <{level = 10 : i32, message = "brt,btd->brd"}> : () -> ()
    %cst_19 = arith.constant dense<0.000000e+00> : vector<2x8x32xf32>
    %39 = tpu.matmul %38, %21, %cst_19 {dimension_numbers = #tpu.dot_dimension_numbers<[2], [1], [1], [2], [0, 0, 0, 1, 1, 2], [0], [0]>} : vector<2x8x8xf32>, vector<2x8x32xf32>, vector<2x8x32xf32> -> vector<2x8x32xf32>
    "tpu.trace_stop"() : () -> ()
    %40 = vector.shape_cast %20 : vector<2x8x32xf32> to vector<16x32xf32>
    %c0_20 = arith.constant 0 : index
    %c0_21 = arith.constant 0 : index
    %41 = vector.load %arg4[%c0_20, %c0_21] : memref<32x32xf32, #tpu.memory_space<vmem>>, vector<32x32xf32>
    %cst_22 = arith.constant dense<0.000000e+00> : vector<16x32xf32>
    %42 = tpu.matmul %40, %41, %cst_22 {dimension_numbers = #tpu.dot_dimension_numbers<[1], [0], [0], [1], [0, 0, 1, 1], [], []>} : vector<16x32xf32>, vector<32x32xf32>, vector<16x32xf32> -> vector<16x32xf32>
    %43 = vector.shape_cast %39 : vector<2x8x32xf32> to vector<16x32xf32>
    %c0_23 = arith.constant 0 : index
    %c0_24 = arith.constant 0 : index
    %44 = vector.load %arg5[%c0_23, %c0_24] : memref<32x32xf32, #tpu.memory_space<vmem>>, vector<32x32xf32>
    %cst_25 = arith.constant dense<0.000000e+00> : vector<16x32xf32>
    %45 = tpu.matmul %43, %44, %cst_25 {dimension_numbers = #tpu.dot_dimension_numbers<[1], [0], [0], [1], [0, 0, 1, 1], [], []>} : vector<16x32xf32>, vector<32x32xf32>, vector<16x32xf32> -> vector<16x32xf32>
    %46 = arith.mulf %42, %45 : vector<16x32xf32>
    %47 = vector.shape_cast %46 : vector<16x32xf32> to vector<2x8x32xf32>
    %48 = vector.extract_strided_slice %47 {offsets = [0, 0, 0], sizes = [2, 1, 32], strides = [1, 1, 1]} : vector<2x8x32xf32> to vector<2x1x32xf32>
    %49 = vector.shape_cast %48 : vector<2x1x32xf32> to vector<2x32xf32>
    %50 = vector.extract_strided_slice %47 {offsets = [0, 1, 0], sizes = [2, 1, 32], strides = [1, 1, 1]} : vector<2x8x32xf32> to vector<2x1x32xf32>
    %51 = vector.shape_cast %50 : vector<2x1x32xf32> to vector<2x32xf32>
    %52 = vector.extract_strided_slice %47 {offsets = [0, 2, 0], sizes = [2, 1, 32], strides = [1, 1, 1]} : vector<2x8x32xf32> to vector<2x1x32xf32>
    %53 = vector.shape_cast %52 : vector<2x1x32xf32> to vector<2x32xf32>
    %54 = vector.extract_strided_slice %47 {offsets = [0, 3, 0], sizes = [2, 1, 32], strides = [1, 1, 1]} : vector<2x8x32xf32> to vector<2x1x32xf32>
    %55 = vector.shape_cast %54 : vector<2x1x32xf32> to vector<2x32xf32>
    %56 = vector.extract_strided_slice %47 {offsets = [0, 4, 0], sizes = [2, 1, 32], strides = [1, 1, 1]} : vector<2x8x32xf32> to vector<2x1x32xf32>
    %57 = vector.shape_cast %56 : vector<2x1x32xf32> to vector<2x32xf32>
    %58 = vector.extract_strided_slice %47 {offsets = [0, 5, 0], sizes = [2, 1, 32], strides = [1, 1, 1]} : vector<2x8x32xf32> to vector<2x1x32xf32>
    %59 = vector.shape_cast %58 : vector<2x1x32xf32> to vector<2x32xf32>
    %60 = vector.extract_strided_slice %47 {offsets = [0, 6, 0], sizes = [2, 1, 32], strides = [1, 1, 1]} : vector<2x8x32xf32> to vector<2x1x32xf32>
    %61 = vector.shape_cast %60 : vector<2x1x32xf32> to vector<2x32xf32>
    %62 = vector.extract_strided_slice %47 {offsets = [0, 7, 0], sizes = [2, 1, 32], strides = [1, 1, 1]} : vector<2x8x32xf32> to vector<2x1x32xf32>
    %63 = vector.shape_cast %62 : vector<2x1x32xf32> to vector<2x32xf32>
    %64 = tpu.concatenate %49, %51, %53, %55, %57, %59, %61, %63 in 1 : vector<2x32xf32>, vector<2x32xf32>, vector<2x32xf32>, vector<2x32xf32>, vector<2x32xf32>, vector<2x32xf32>, vector<2x32xf32>, vector<2x32xf32> -> vector<2x256xf32>
    %c0_26 = arith.constant 0 : index
    %c0_27 = arith.constant 0 : index
    %65 = vector.load %arg6[%c0_26, %c0_27] : memref<256x32xf32, #tpu.memory_space<vmem>>, vector<256x32xf32>
    %cst_28 = arith.constant dense<0.000000e+00> : vector<2x32xf32>
    %66 = tpu.matmul %64, %65, %cst_28 {dimension_numbers = #tpu.dot_dimension_numbers<[1], [0], [0], [1], [0, 0, 1, 1], [], []>} : vector<2x256xf32>, vector<256x32xf32>, vector<2x32xf32> -> vector<2x32xf32>
    %c0_29 = arith.constant 0 : index
    %c0_30 = arith.constant 0 : index
    %67 = vector.load %arg7[%c0_29, %c0_30] : memref<1x32xf32, #tpu.memory_space<vmem>>, vector<1x32xf32>
    %68 = vector.broadcast %67 : vector<1x32xf32> to vector<2x32xf32>
    %69 = arith.addf %66, %68 : vector<2x32xf32>
    %cst_31 = arith.constant 0.000000e+00 : f32
    %70 = vector.broadcast %cst_31 : f32 to vector<2x32xf32>
    %71 = arith.maximumf %69, %70 : vector<2x32xf32>
    %c0_32 = arith.constant 0 : index
    %c0_33 = arith.constant 0 : index
    %72 = vector.load %arg8[%c0_32, %c0_33] : memref<32x4xf32, #tpu.memory_space<vmem>>, vector<32x4xf32>
    %cst_34 = arith.constant dense<0.000000e+00> : vector<2x4xf32>
    %73 = tpu.matmul %71, %72, %cst_34 {dimension_numbers = #tpu.dot_dimension_numbers<[1], [0], [0], [1], [0, 0, 1, 1], [], []>} : vector<2x32xf32>, vector<32x4xf32>, vector<2x4xf32> -> vector<2x4xf32>
    %c0_35 = arith.constant 0 : index
    %c0_36 = arith.constant 0 : index
    %74 = vector.load %arg9[%c0_35, %c0_36] : memref<1x4xf32, #tpu.memory_space<vmem>>, vector<1x4xf32>
    %75 = vector.broadcast %74 : vector<1x4xf32> to vector<2x4xf32>
    %76 = arith.addf %73, %75 : vector<2x4xf32>
    %c0_37 = arith.constant 0 : index
    %c0_38 = arith.constant 0 : index
    %77 = vector.load %arg10[%c0_37, %c0_38] : memref<2x4xf32, #tpu.memory_space<vmem>>, vector<2x4xf32>
    tpu.vector_store %arg10[%c0_37, %c0_38], %76 {strides = array<i32>} : memref<2x4xf32, #tpu.memory_space<vmem>>, vector<2x4xf32>,
    %c0_39 = arith.constant 0 : index
    %c0_40 = arith.constant 0 : index
    %c0_41 = arith.constant 0 : index
    %78 = vector.load %arg11[%c0_39, %c0_40, %c0_41] : memref<2x8x8xf32, #tpu.memory_space<vmem>>, vector<2x8x8xf32>
    tpu.vector_store %arg11[%c0_39, %c0_40, %c0_41], %19 {strides = array<i32>} : memref<2x8x8xf32, #tpu.memory_space<vmem>>, vector<2x8x8xf32>,
    %c0_42 = arith.constant 0 : index
    %c0_43 = arith.constant 0 : index
    %c0_44 = arith.constant 0 : index
    %79 = vector.load %arg12[%c0_42, %c0_43, %c0_44] : memref<2x8x8xf32, #tpu.memory_space<vmem>>, vector<2x8x8xf32>
    tpu.vector_store %arg12[%c0_42, %c0_43, %c0_44], %38 {strides = array<i32>} : memref<2x8x8xf32, #tpu.memory_space<vmem>>, vector<2x8x8xf32>,
    return
  }
}

module attributes {stable_mosaic.version = 11 : i64} {
  func.func @_bilstm_kernel(%arg0: i32, %arg1: memref<1x8x2x16xf32, #tpu.memory_space<vmem>>, %arg2: memref<2x32x64xf32, #tpu.memory_space<vmem>>, %arg3: memref<2x1x64xf32, #tpu.memory_space<vmem>>, %arg4: memref<1x2x8x32xf32, #tpu.memory_space<vmem>>) attributes {dimension_semantics = [#tpu.dimension_semantics<parallel>], iteration_bounds = array<i64: 2>, scalar_prefetch = 0 : i64, scratch_operands = 0 : i64, tpu.core_type = #tpu.core_type<tc>, window_params = [{transform_indices = @transform_0, window_bounds = array<i64: 1, 8, 2, 16>}, {pipeline_mode = #tpu.pipeline_mode<synchronous>, transform_indices = @transform_1, window_bounds = array<i64: 2, 32, 64>}, {pipeline_mode = #tpu.pipeline_mode<synchronous>, transform_indices = @transform_2, window_bounds = array<i64: 2, 1, 64>}, {transform_indices = @transform_3, window_bounds = array<i64: 1, 2, 8, 32>}]} {
    %c0 = arith.constant 0 : index
    %c0_0 = arith.constant 0 : index
    %c0_1 = arith.constant 0 : index
    %0 = vector.load %arg2[%c0, %c0_0, %c0_1] : memref<2x32x64xf32, #tpu.memory_space<vmem>>, vector<1x32x64xf32>
    %1 = vector.shape_cast %0 : vector<1x32x64xf32> to vector<32x64xf32>
    %c0_2 = arith.constant 0 : index
    %c0_3 = arith.constant 0 : index
    %c0_4 = arith.constant 0 : index
    %2 = vector.load %arg3[%c0_2, %c0_3, %c0_4] : memref<2x1x64xf32, #tpu.memory_space<vmem>>, vector<1x1x64xf32>
    %3 = vector.shape_cast %2 : vector<1x1x64xf32> to vector<1x64xf32>
    %cst = arith.constant 0.000000e+00 : f32
    %4 = vector.broadcast %cst : f32 to vector<2x16xf32>
    %cst_5 = arith.constant 0.000000e+00 : f32
    %5 = vector.broadcast %cst_5 : f32 to vector<2x16xf32>
    %c0_6 = arith.constant 0 : index
    %c0_7 = arith.constant 0 : index
    %c0_8 = arith.constant 0 : index
    %c0_9 = arith.constant 0 : index
    %6 = vector.load %arg1[%c0_6, %c0_7, %c0_8, %c0_9] : memref<1x8x2x16xf32, #tpu.memory_space<vmem>>, vector<1x1x2x16xf32>
    %7 = vector.shape_cast %6 : vector<1x1x2x16xf32> to vector<2x16xf32>
    %8 = tpu.concatenate %7, %4 in 1 : vector<2x16xf32>, vector<2x16xf32> -> vector<2x32xf32>
    %cst_10 = arith.constant dense<0.000000e+00> : vector<2x64xf32>
    %9 = tpu.matmul %8, %1, %cst_10 {dimension_numbers = #tpu.dot_dimension_numbers<[1], [0], [0], [1], [0, 0, 1, 1], [], []>} : vector<2x32xf32>, vector<32x64xf32>, vector<2x64xf32> -> vector<2x64xf32>
    %10 = vector.broadcast %3 : vector<1x64xf32> to vector<2x64xf32>
    %11 = arith.addf %9, %10 : vector<2x64xf32>
    %12 = vector.extract_strided_slice %11 {offsets = [0, 0], sizes = [2, 16], strides = [1, 1]} : vector<2x64xf32> to vector<2x16xf32>
    %13 = arith.negf %12 : vector<2x16xf32>
    %14 = math.exp %13 : vector<2x16xf32>
    %cst_11 = arith.constant 1.000000e+00 : f32
    %15 = vector.broadcast %cst_11 : f32 to vector<2x16xf32>
    %16 = arith.addf %15, %14 : vector<2x16xf32>
    %17 = arith.divf %15, %16 : vector<2x16xf32>
    %18 = vector.extract_strided_slice %11 {offsets = [0, 16], sizes = [2, 16], strides = [1, 1]} : vector<2x64xf32> to vector<2x16xf32>
    %19 = arith.negf %18 : vector<2x16xf32>
    %20 = math.exp %19 : vector<2x16xf32>
    %cst_12 = arith.constant 1.000000e+00 : f32
    %21 = vector.broadcast %cst_12 : f32 to vector<2x16xf32>
    %22 = arith.addf %21, %20 : vector<2x16xf32>
    %23 = arith.divf %21, %22 : vector<2x16xf32>
    %24 = vector.extract_strided_slice %11 {offsets = [0, 32], sizes = [2, 16], strides = [1, 1]} : vector<2x64xf32> to vector<2x16xf32>
    %25 = math.tanh %24 : vector<2x16xf32>
    %26 = vector.extract_strided_slice %11 {offsets = [0, 48], sizes = [2, 16], strides = [1, 1]} : vector<2x64xf32> to vector<2x16xf32>
    %27 = arith.negf %26 : vector<2x16xf32>
    %28 = math.exp %27 : vector<2x16xf32>
    %cst_13 = arith.constant 1.000000e+00 : f32
    %29 = vector.broadcast %cst_13 : f32 to vector<2x16xf32>
    %30 = arith.addf %29, %28 : vector<2x16xf32>
    %31 = arith.divf %29, %30 : vector<2x16xf32>
    %32 = arith.mulf %23, %5 : vector<2x16xf32>
    %33 = arith.mulf %17, %25 : vector<2x16xf32>
    %34 = arith.addf %32, %33 : vector<2x16xf32>
    %35 = math.tanh %34 : vector<2x16xf32>
    %36 = arith.mulf %31, %35 : vector<2x16xf32>
    %c0_14 = arith.constant 0 : index
    %c1 = arith.constant 1 : index
    %c0_15 = arith.constant 0 : index
    %c0_16 = arith.constant 0 : index
    %37 = vector.load %arg1[%c0_14, %c1, %c0_15, %c0_16] : memref<1x8x2x16xf32, #tpu.memory_space<vmem>>, vector<1x1x2x16xf32>
    %38 = vector.shape_cast %37 : vector<1x1x2x16xf32> to vector<2x16xf32>
    %39 = tpu.concatenate %38, %36 in 1 : vector<2x16xf32>, vector<2x16xf32> -> vector<2x32xf32>
    %cst_17 = arith.constant dense<0.000000e+00> : vector<2x64xf32>
    %40 = tpu.matmul %39, %1, %cst_17 {dimension_numbers = #tpu.dot_dimension_numbers<[1], [0], [0], [1], [0, 0, 1, 1], [], []>} : vector<2x32xf32>, vector<32x64xf32>, vector<2x64xf32> -> vector<2x64xf32>
    %41 = vector.broadcast %3 : vector<1x64xf32> to vector<2x64xf32>
    %42 = arith.addf %40, %41 : vector<2x64xf32>
    %43 = vector.extract_strided_slice %42 {offsets = [0, 0], sizes = [2, 16], strides = [1, 1]} : vector<2x64xf32> to vector<2x16xf32>
    %44 = arith.negf %43 : vector<2x16xf32>
    %45 = math.exp %44 : vector<2x16xf32>
    %cst_18 = arith.constant 1.000000e+00 : f32
    %46 = vector.broadcast %cst_18 : f32 to vector<2x16xf32>
    %47 = arith.addf %46, %45 : vector<2x16xf32>
    %48 = arith.divf %46, %47 : vector<2x16xf32>
    %49 = vector.extract_strided_slice %42 {offsets = [0, 16], sizes = [2, 16], strides = [1, 1]} : vector<2x64xf32> to vector<2x16xf32>
    %50 = arith.negf %49 : vector<2x16xf32>
    %51 = math.exp %50 : vector<2x16xf32>
    %cst_19 = arith.constant 1.000000e+00 : f32
    %52 = vector.broadcast %cst_19 : f32 to vector<2x16xf32>
    %53 = arith.addf %52, %51 : vector<2x16xf32>
    %54 = arith.divf %52, %53 : vector<2x16xf32>
    %55 = vector.extract_strided_slice %42 {offsets = [0, 32], sizes = [2, 16], strides = [1, 1]} : vector<2x64xf32> to vector<2x16xf32>
    %56 = math.tanh %55 : vector<2x16xf32>
    %57 = vector.extract_strided_slice %42 {offsets = [0, 48], sizes = [2, 16], strides = [1, 1]} : vector<2x64xf32> to vector<2x16xf32>
    %58 = arith.negf %57 : vector<2x16xf32>
    %59 = math.exp %58 : vector<2x16xf32>
    %cst_20 = arith.constant 1.000000e+00 : f32
    %60 = vector.broadcast %cst_20 : f32 to vector<2x16xf32>
    %61 = arith.addf %60, %59 : vector<2x16xf32>
    %62 = arith.divf %60, %61 : vector<2x16xf32>
    %63 = arith.mulf %54, %34 : vector<2x16xf32>
    %64 = arith.mulf %48, %56 : vector<2x16xf32>
    %65 = arith.addf %63, %64 : vector<2x16xf32>
    %66 = math.tanh %65 : vector<2x16xf32>
    %67 = arith.mulf %62, %66 : vector<2x16xf32>
    %c0_21 = arith.constant 0 : index
    %c2 = arith.constant 2 : index
    %c0_22 = arith.constant 0 : index
    %c0_23 = arith.constant 0 : index
    %68 = vector.load %arg1[%c0_21, %c2, %c0_22, %c0_23] : memref<1x8x2x16xf32, #tpu.memory_space<vmem>>, vector<1x1x2x16xf32>
    %69 = vector.shape_cast %68 : vector<1x1x2x16xf32> to vector<2x16xf32>
    %70 = tpu.concatenate %69, %67 in 1 : vector<2x16xf32>, vector<2x16xf32> -> vector<2x32xf32>
    %cst_24 = arith.constant dense<0.000000e+00> : vector<2x64xf32>
    %71 = tpu.matmul %70, %1, %cst_24 {dimension_numbers = #tpu.dot_dimension_numbers<[1], [0], [0], [1], [0, 0, 1, 1], [], []>} : vector<2x32xf32>, vector<32x64xf32>, vector<2x64xf32> -> vector<2x64xf32>
    %72 = vector.broadcast %3 : vector<1x64xf32> to vector<2x64xf32>
    %73 = arith.addf %71, %72 : vector<2x64xf32>
    %74 = vector.extract_strided_slice %73 {offsets = [0, 0], sizes = [2, 16], strides = [1, 1]} : vector<2x64xf32> to vector<2x16xf32>
    %75 = arith.negf %74 : vector<2x16xf32>
    %76 = math.exp %75 : vector<2x16xf32>
    %cst_25 = arith.constant 1.000000e+00 : f32
    %77 = vector.broadcast %cst_25 : f32 to vector<2x16xf32>
    %78 = arith.addf %77, %76 : vector<2x16xf32>
    %79 = arith.divf %77, %78 : vector<2x16xf32>
    %80 = vector.extract_strided_slice %73 {offsets = [0, 16], sizes = [2, 16], strides = [1, 1]} : vector<2x64xf32> to vector<2x16xf32>
    %81 = arith.negf %80 : vector<2x16xf32>
    %82 = math.exp %81 : vector<2x16xf32>
    %cst_26 = arith.constant 1.000000e+00 : f32
    %83 = vector.broadcast %cst_26 : f32 to vector<2x16xf32>
    %84 = arith.addf %83, %82 : vector<2x16xf32>
    %85 = arith.divf %83, %84 : vector<2x16xf32>
    %86 = vector.extract_strided_slice %73 {offsets = [0, 32], sizes = [2, 16], strides = [1, 1]} : vector<2x64xf32> to vector<2x16xf32>
    %87 = math.tanh %86 : vector<2x16xf32>
    %88 = vector.extract_strided_slice %73 {offsets = [0, 48], sizes = [2, 16], strides = [1, 1]} : vector<2x64xf32> to vector<2x16xf32>
    %89 = arith.negf %88 : vector<2x16xf32>
    %90 = math.exp %89 : vector<2x16xf32>
    %cst_27 = arith.constant 1.000000e+00 : f32
    %91 = vector.broadcast %cst_27 : f32 to vector<2x16xf32>
    %92 = arith.addf %91, %90 : vector<2x16xf32>
    %93 = arith.divf %91, %92 : vector<2x16xf32>
    %94 = arith.mulf %85, %65 : vector<2x16xf32>
    %95 = arith.mulf %79, %87 : vector<2x16xf32>
    %96 = arith.addf %94, %95 : vector<2x16xf32>
    %97 = math.tanh %96 : vector<2x16xf32>
    %98 = arith.mulf %93, %97 : vector<2x16xf32>
    %c0_28 = arith.constant 0 : index
    %c3 = arith.constant 3 : index
    %c0_29 = arith.constant 0 : index
    %c0_30 = arith.constant 0 : index
    %99 = vector.load %arg1[%c0_28, %c3, %c0_29, %c0_30] : memref<1x8x2x16xf32, #tpu.memory_space<vmem>>, vector<1x1x2x16xf32>
    %100 = vector.shape_cast %99 : vector<1x1x2x16xf32> to vector<2x16xf32>
    %101 = tpu.concatenate %100, %98 in 1 : vector<2x16xf32>, vector<2x16xf32> -> vector<2x32xf32>
    %cst_31 = arith.constant dense<0.000000e+00> : vector<2x64xf32>
    %102 = tpu.matmul %101, %1, %cst_31 {dimension_numbers = #tpu.dot_dimension_numbers<[1], [0], [0], [1], [0, 0, 1, 1], [], []>} : vector<2x32xf32>, vector<32x64xf32>, vector<2x64xf32> -> vector<2x64xf32>
    %103 = vector.broadcast %3 : vector<1x64xf32> to vector<2x64xf32>
    %104 = arith.addf %102, %103 : vector<2x64xf32>
    %105 = vector.extract_strided_slice %104 {offsets = [0, 0], sizes = [2, 16], strides = [1, 1]} : vector<2x64xf32> to vector<2x16xf32>
    %106 = arith.negf %105 : vector<2x16xf32>
    %107 = math.exp %106 : vector<2x16xf32>
    %cst_32 = arith.constant 1.000000e+00 : f32
    %108 = vector.broadcast %cst_32 : f32 to vector<2x16xf32>
    %109 = arith.addf %108, %107 : vector<2x16xf32>
    %110 = arith.divf %108, %109 : vector<2x16xf32>
    %111 = vector.extract_strided_slice %104 {offsets = [0, 16], sizes = [2, 16], strides = [1, 1]} : vector<2x64xf32> to vector<2x16xf32>
    %112 = arith.negf %111 : vector<2x16xf32>
    %113 = math.exp %112 : vector<2x16xf32>
    %cst_33 = arith.constant 1.000000e+00 : f32
    %114 = vector.broadcast %cst_33 : f32 to vector<2x16xf32>
    %115 = arith.addf %114, %113 : vector<2x16xf32>
    %116 = arith.divf %114, %115 : vector<2x16xf32>
    %117 = vector.extract_strided_slice %104 {offsets = [0, 32], sizes = [2, 16], strides = [1, 1]} : vector<2x64xf32> to vector<2x16xf32>
    %118 = math.tanh %117 : vector<2x16xf32>
    %119 = vector.extract_strided_slice %104 {offsets = [0, 48], sizes = [2, 16], strides = [1, 1]} : vector<2x64xf32> to vector<2x16xf32>
    %120 = arith.negf %119 : vector<2x16xf32>
    %121 = math.exp %120 : vector<2x16xf32>
    %cst_34 = arith.constant 1.000000e+00 : f32
    %122 = vector.broadcast %cst_34 : f32 to vector<2x16xf32>
    %123 = arith.addf %122, %121 : vector<2x16xf32>
    %124 = arith.divf %122, %123 : vector<2x16xf32>
    %125 = arith.mulf %116, %96 : vector<2x16xf32>
    %126 = arith.mulf %110, %118 : vector<2x16xf32>
    %127 = arith.addf %125, %126 : vector<2x16xf32>
    %128 = math.tanh %127 : vector<2x16xf32>
    %129 = arith.mulf %124, %128 : vector<2x16xf32>
    %c0_35 = arith.constant 0 : index
    %c4 = arith.constant 4 : index
    %c0_36 = arith.constant 0 : index
    %c0_37 = arith.constant 0 : index
    %130 = vector.load %arg1[%c0_35, %c4, %c0_36, %c0_37] : memref<1x8x2x16xf32, #tpu.memory_space<vmem>>, vector<1x1x2x16xf32>
    %131 = vector.shape_cast %130 : vector<1x1x2x16xf32> to vector<2x16xf32>
    %132 = tpu.concatenate %131, %129 in 1 : vector<2x16xf32>, vector<2x16xf32> -> vector<2x32xf32>
    %cst_38 = arith.constant dense<0.000000e+00> : vector<2x64xf32>
    %133 = tpu.matmul %132, %1, %cst_38 {dimension_numbers = #tpu.dot_dimension_numbers<[1], [0], [0], [1], [0, 0, 1, 1], [], []>} : vector<2x32xf32>, vector<32x64xf32>, vector<2x64xf32> -> vector<2x64xf32>
    %134 = vector.broadcast %3 : vector<1x64xf32> to vector<2x64xf32>
    %135 = arith.addf %133, %134 : vector<2x64xf32>
    %136 = vector.extract_strided_slice %135 {offsets = [0, 0], sizes = [2, 16], strides = [1, 1]} : vector<2x64xf32> to vector<2x16xf32>
    %137 = arith.negf %136 : vector<2x16xf32>
    %138 = math.exp %137 : vector<2x16xf32>
    %cst_39 = arith.constant 1.000000e+00 : f32
    %139 = vector.broadcast %cst_39 : f32 to vector<2x16xf32>
    %140 = arith.addf %139, %138 : vector<2x16xf32>
    %141 = arith.divf %139, %140 : vector<2x16xf32>
    %142 = vector.extract_strided_slice %135 {offsets = [0, 16], sizes = [2, 16], strides = [1, 1]} : vector<2x64xf32> to vector<2x16xf32>
    %143 = arith.negf %142 : vector<2x16xf32>
    %144 = math.exp %143 : vector<2x16xf32>
    %cst_40 = arith.constant 1.000000e+00 : f32
    %145 = vector.broadcast %cst_40 : f32 to vector<2x16xf32>
    %146 = arith.addf %145, %144 : vector<2x16xf32>
    %147 = arith.divf %145, %146 : vector<2x16xf32>
    %148 = vector.extract_strided_slice %135 {offsets = [0, 32], sizes = [2, 16], strides = [1, 1]} : vector<2x64xf32> to vector<2x16xf32>
    %149 = math.tanh %148 : vector<2x16xf32>
    %150 = vector.extract_strided_slice %135 {offsets = [0, 48], sizes = [2, 16], strides = [1, 1]} : vector<2x64xf32> to vector<2x16xf32>
    %151 = arith.negf %150 : vector<2x16xf32>
    %152 = math.exp %151 : vector<2x16xf32>
    %cst_41 = arith.constant 1.000000e+00 : f32
    %153 = vector.broadcast %cst_41 : f32 to vector<2x16xf32>
    %154 = arith.addf %153, %152 : vector<2x16xf32>
    %155 = arith.divf %153, %154 : vector<2x16xf32>
    %156 = arith.mulf %147, %127 : vector<2x16xf32>
    %157 = arith.mulf %141, %149 : vector<2x16xf32>
    %158 = arith.addf %156, %157 : vector<2x16xf32>
    %159 = math.tanh %158 : vector<2x16xf32>
    %160 = arith.mulf %155, %159 : vector<2x16xf32>
    %c0_42 = arith.constant 0 : index
    %c5 = arith.constant 5 : index
    %c0_43 = arith.constant 0 : index
    %c0_44 = arith.constant 0 : index
    %161 = vector.load %arg1[%c0_42, %c5, %c0_43, %c0_44] : memref<1x8x2x16xf32, #tpu.memory_space<vmem>>, vector<1x1x2x16xf32>
    %162 = vector.shape_cast %161 : vector<1x1x2x16xf32> to vector<2x16xf32>
    %163 = tpu.concatenate %162, %160 in 1 : vector<2x16xf32>, vector<2x16xf32> -> vector<2x32xf32>
    %cst_45 = arith.constant dense<0.000000e+00> : vector<2x64xf32>
    %164 = tpu.matmul %163, %1, %cst_45 {dimension_numbers = #tpu.dot_dimension_numbers<[1], [0], [0], [1], [0, 0, 1, 1], [], []>} : vector<2x32xf32>, vector<32x64xf32>, vector<2x64xf32> -> vector<2x64xf32>
    %165 = vector.broadcast %3 : vector<1x64xf32> to vector<2x64xf32>
    %166 = arith.addf %164, %165 : vector<2x64xf32>
    %167 = vector.extract_strided_slice %166 {offsets = [0, 0], sizes = [2, 16], strides = [1, 1]} : vector<2x64xf32> to vector<2x16xf32>
    %168 = arith.negf %167 : vector<2x16xf32>
    %169 = math.exp %168 : vector<2x16xf32>
    %cst_46 = arith.constant 1.000000e+00 : f32
    %170 = vector.broadcast %cst_46 : f32 to vector<2x16xf32>
    %171 = arith.addf %170, %169 : vector<2x16xf32>
    %172 = arith.divf %170, %171 : vector<2x16xf32>
    %173 = vector.extract_strided_slice %166 {offsets = [0, 16], sizes = [2, 16], strides = [1, 1]} : vector<2x64xf32> to vector<2x16xf32>
    %174 = arith.negf %173 : vector<2x16xf32>
    %175 = math.exp %174 : vector<2x16xf32>
    %cst_47 = arith.constant 1.000000e+00 : f32
    %176 = vector.broadcast %cst_47 : f32 to vector<2x16xf32>
    %177 = arith.addf %176, %175 : vector<2x16xf32>
    %178 = arith.divf %176, %177 : vector<2x16xf32>
    %179 = vector.extract_strided_slice %166 {offsets = [0, 32], sizes = [2, 16], strides = [1, 1]} : vector<2x64xf32> to vector<2x16xf32>
    %180 = math.tanh %179 : vector<2x16xf32>
    %181 = vector.extract_strided_slice %166 {offsets = [0, 48], sizes = [2, 16], strides = [1, 1]} : vector<2x64xf32> to vector<2x16xf32>
    %182 = arith.negf %181 : vector<2x16xf32>
    %183 = math.exp %182 : vector<2x16xf32>
    %cst_48 = arith.constant 1.000000e+00 : f32
    %184 = vector.broadcast %cst_48 : f32 to vector<2x16xf32>
    %185 = arith.addf %184, %183 : vector<2x16xf32>
    %186 = arith.divf %184, %185 : vector<2x16xf32>
    %187 = arith.mulf %178, %158 : vector<2x16xf32>
    %188 = arith.mulf %172, %180 : vector<2x16xf32>
    %189 = arith.addf %187, %188 : vector<2x16xf32>
    %190 = math.tanh %189 : vector<2x16xf32>
    %191 = arith.mulf %186, %190 : vector<2x16xf32>
    %c0_49 = arith.constant 0 : index
    %c6 = arith.constant 6 : index
    %c0_50 = arith.constant 0 : index
    %c0_51 = arith.constant 0 : index
    %192 = vector.load %arg1[%c0_49, %c6, %c0_50, %c0_51] : memref<1x8x2x16xf32, #tpu.memory_space<vmem>>, vector<1x1x2x16xf32>
    %193 = vector.shape_cast %192 : vector<1x1x2x16xf32> to vector<2x16xf32>
    %194 = tpu.concatenate %193, %191 in 1 : vector<2x16xf32>, vector<2x16xf32> -> vector<2x32xf32>
    %cst_52 = arith.constant dense<0.000000e+00> : vector<2x64xf32>
    %195 = tpu.matmul %194, %1, %cst_52 {dimension_numbers = #tpu.dot_dimension_numbers<[1], [0], [0], [1], [0, 0, 1, 1], [], []>} : vector<2x32xf32>, vector<32x64xf32>, vector<2x64xf32> -> vector<2x64xf32>
    %196 = vector.broadcast %3 : vector<1x64xf32> to vector<2x64xf32>
    %197 = arith.addf %195, %196 : vector<2x64xf32>
    %198 = vector.extract_strided_slice %197 {offsets = [0, 0], sizes = [2, 16], strides = [1, 1]} : vector<2x64xf32> to vector<2x16xf32>
    %199 = arith.negf %198 : vector<2x16xf32>
    %200 = math.exp %199 : vector<2x16xf32>
    %cst_53 = arith.constant 1.000000e+00 : f32
    %201 = vector.broadcast %cst_53 : f32 to vector<2x16xf32>
    %202 = arith.addf %201, %200 : vector<2x16xf32>
    %203 = arith.divf %201, %202 : vector<2x16xf32>
    %204 = vector.extract_strided_slice %197 {offsets = [0, 16], sizes = [2, 16], strides = [1, 1]} : vector<2x64xf32> to vector<2x16xf32>
    %205 = arith.negf %204 : vector<2x16xf32>
    %206 = math.exp %205 : vector<2x16xf32>
    %cst_54 = arith.constant 1.000000e+00 : f32
    %207 = vector.broadcast %cst_54 : f32 to vector<2x16xf32>
    %208 = arith.addf %207, %206 : vector<2x16xf32>
    %209 = arith.divf %207, %208 : vector<2x16xf32>
    %210 = vector.extract_strided_slice %197 {offsets = [0, 32], sizes = [2, 16], strides = [1, 1]} : vector<2x64xf32> to vector<2x16xf32>
    %211 = math.tanh %210 : vector<2x16xf32>
    %212 = vector.extract_strided_slice %197 {offsets = [0, 48], sizes = [2, 16], strides = [1, 1]} : vector<2x64xf32> to vector<2x16xf32>
    %213 = arith.negf %212 : vector<2x16xf32>
    %214 = math.exp %213 : vector<2x16xf32>
    %cst_55 = arith.constant 1.000000e+00 : f32
    %215 = vector.broadcast %cst_55 : f32 to vector<2x16xf32>
    %216 = arith.addf %215, %214 : vector<2x16xf32>
    %217 = arith.divf %215, %216 : vector<2x16xf32>
    %218 = arith.mulf %209, %189 : vector<2x16xf32>
    %219 = arith.mulf %203, %211 : vector<2x16xf32>
    %220 = arith.addf %218, %219 : vector<2x16xf32>
    %221 = math.tanh %220 : vector<2x16xf32>
    %222 = arith.mulf %217, %221 : vector<2x16xf32>
    %c0_56 = arith.constant 0 : index
    %c7 = arith.constant 7 : index
    %c0_57 = arith.constant 0 : index
    %c0_58 = arith.constant 0 : index
    %223 = vector.load %arg1[%c0_56, %c7, %c0_57, %c0_58] : memref<1x8x2x16xf32, #tpu.memory_space<vmem>>, vector<1x1x2x16xf32>
    %224 = vector.shape_cast %223 : vector<1x1x2x16xf32> to vector<2x16xf32>
    %225 = tpu.concatenate %224, %222 in 1 : vector<2x16xf32>, vector<2x16xf32> -> vector<2x32xf32>
    %cst_59 = arith.constant dense<0.000000e+00> : vector<2x64xf32>
    %226 = tpu.matmul %225, %1, %cst_59 {dimension_numbers = #tpu.dot_dimension_numbers<[1], [0], [0], [1], [0, 0, 1, 1], [], []>} : vector<2x32xf32>, vector<32x64xf32>, vector<2x64xf32> -> vector<2x64xf32>
    %227 = vector.broadcast %3 : vector<1x64xf32> to vector<2x64xf32>
    %228 = arith.addf %226, %227 : vector<2x64xf32>
    %229 = vector.extract_strided_slice %228 {offsets = [0, 0], sizes = [2, 16], strides = [1, 1]} : vector<2x64xf32> to vector<2x16xf32>
    %230 = arith.negf %229 : vector<2x16xf32>
    %231 = math.exp %230 : vector<2x16xf32>
    %cst_60 = arith.constant 1.000000e+00 : f32
    %232 = vector.broadcast %cst_60 : f32 to vector<2x16xf32>
    %233 = arith.addf %232, %231 : vector<2x16xf32>
    %234 = arith.divf %232, %233 : vector<2x16xf32>
    %235 = vector.extract_strided_slice %228 {offsets = [0, 16], sizes = [2, 16], strides = [1, 1]} : vector<2x64xf32> to vector<2x16xf32>
    %236 = arith.negf %235 : vector<2x16xf32>
    %237 = math.exp %236 : vector<2x16xf32>
    %cst_61 = arith.constant 1.000000e+00 : f32
    %238 = vector.broadcast %cst_61 : f32 to vector<2x16xf32>
    %239 = arith.addf %238, %237 : vector<2x16xf32>
    %240 = arith.divf %238, %239 : vector<2x16xf32>
    %241 = vector.extract_strided_slice %228 {offsets = [0, 32], sizes = [2, 16], strides = [1, 1]} : vector<2x64xf32> to vector<2x16xf32>
    %242 = math.tanh %241 : vector<2x16xf32>
    %243 = vector.extract_strided_slice %228 {offsets = [0, 48], sizes = [2, 16], strides = [1, 1]} : vector<2x64xf32> to vector<2x16xf32>
    %244 = arith.negf %243 : vector<2x16xf32>
    %245 = math.exp %244 : vector<2x16xf32>
    %cst_62 = arith.constant 1.000000e+00 : f32
    %246 = vector.broadcast %cst_62 : f32 to vector<2x16xf32>
    %247 = arith.addf %246, %245 : vector<2x16xf32>
    %248 = arith.divf %246, %247 : vector<2x16xf32>
    %249 = arith.mulf %240, %220 : vector<2x16xf32>
    %250 = arith.mulf %234, %242 : vector<2x16xf32>
    %251 = arith.addf %249, %250 : vector<2x16xf32>
    %252 = math.tanh %251 : vector<2x16xf32>
    %253 = arith.mulf %248, %252 : vector<2x16xf32>
    %254 = vector.shape_cast %36 : vector<2x16xf32> to vector<2x1x16xf32>
    %255 = vector.shape_cast %67 : vector<2x16xf32> to vector<2x1x16xf32>
    %256 = vector.shape_cast %98 : vector<2x16xf32> to vector<2x1x16xf32>
    %257 = vector.shape_cast %129 : vector<2x16xf32> to vector<2x1x16xf32>
    %258 = vector.shape_cast %160 : vector<2x16xf32> to vector<2x1x16xf32>
    %259 = vector.shape_cast %191 : vector<2x16xf32> to vector<2x1x16xf32>
    %260 = vector.shape_cast %222 : vector<2x16xf32> to vector<2x1x16xf32>
    %261 = vector.shape_cast %253 : vector<2x16xf32> to vector<2x1x16xf32>
    %262 = tpu.concatenate %254, %255, %256, %257, %258, %259, %260, %261 in 1 : vector<2x1x16xf32>, vector<2x1x16xf32>, vector<2x1x16xf32>, vector<2x1x16xf32>, vector<2x1x16xf32>, vector<2x1x16xf32>, vector<2x1x16xf32>, vector<2x1x16xf32> -> vector<2x8x16xf32>
    %c1_63 = arith.constant 1 : index
    %c0_64 = arith.constant 0 : index
    %c0_65 = arith.constant 0 : index
    %263 = vector.load %arg2[%c1_63, %c0_64, %c0_65] : memref<2x32x64xf32, #tpu.memory_space<vmem>>, vector<1x32x64xf32>
    %264 = vector.shape_cast %263 : vector<1x32x64xf32> to vector<32x64xf32>
    %c1_66 = arith.constant 1 : index
    %c0_67 = arith.constant 0 : index
    %c0_68 = arith.constant 0 : index
    %265 = vector.load %arg3[%c1_66, %c0_67, %c0_68] : memref<2x1x64xf32, #tpu.memory_space<vmem>>, vector<1x1x64xf32>
    %266 = vector.shape_cast %265 : vector<1x1x64xf32> to vector<1x64xf32>
    %cst_69 = arith.constant 0.000000e+00 : f32
    %267 = vector.broadcast %cst_69 : f32 to vector<2x16xf32>
    %cst_70 = arith.constant 0.000000e+00 : f32
    %268 = vector.broadcast %cst_70 : f32 to vector<2x16xf32>
    %c0_71 = arith.constant 0 : index
    %c7_72 = arith.constant 7 : index
    %c0_73 = arith.constant 0 : index
    %c0_74 = arith.constant 0 : index
    %269 = vector.load %arg1[%c0_71, %c7_72, %c0_73, %c0_74] : memref<1x8x2x16xf32, #tpu.memory_space<vmem>>, vector<1x1x2x16xf32>
    %270 = vector.shape_cast %269 : vector<1x1x2x16xf32> to vector<2x16xf32>
    %271 = tpu.concatenate %270, %267 in 1 : vector<2x16xf32>, vector<2x16xf32> -> vector<2x32xf32>
    %cst_75 = arith.constant dense<0.000000e+00> : vector<2x64xf32>
    %272 = tpu.matmul %271, %264, %cst_75 {dimension_numbers = #tpu.dot_dimension_numbers<[1], [0], [0], [1], [0, 0, 1, 1], [], []>} : vector<2x32xf32>, vector<32x64xf32>, vector<2x64xf32> -> vector<2x64xf32>
    %273 = vector.broadcast %266 : vector<1x64xf32> to vector<2x64xf32>
    %274 = arith.addf %272, %273 : vector<2x64xf32>
    %275 = vector.extract_strided_slice %274 {offsets = [0, 0], sizes = [2, 16], strides = [1, 1]} : vector<2x64xf32> to vector<2x16xf32>
    %276 = arith.negf %275 : vector<2x16xf32>
    %277 = math.exp %276 : vector<2x16xf32>
    %cst_76 = arith.constant 1.000000e+00 : f32
    %278 = vector.broadcast %cst_76 : f32 to vector<2x16xf32>
    %279 = arith.addf %278, %277 : vector<2x16xf32>
    %280 = arith.divf %278, %279 : vector<2x16xf32>
    %281 = vector.extract_strided_slice %274 {offsets = [0, 16], sizes = [2, 16], strides = [1, 1]} : vector<2x64xf32> to vector<2x16xf32>
    %282 = arith.negf %281 : vector<2x16xf32>
    %283 = math.exp %282 : vector<2x16xf32>
    %cst_77 = arith.constant 1.000000e+00 : f32
    %284 = vector.broadcast %cst_77 : f32 to vector<2x16xf32>
    %285 = arith.addf %284, %283 : vector<2x16xf32>
    %286 = arith.divf %284, %285 : vector<2x16xf32>
    %287 = vector.extract_strided_slice %274 {offsets = [0, 32], sizes = [2, 16], strides = [1, 1]} : vector<2x64xf32> to vector<2x16xf32>
    %288 = math.tanh %287 : vector<2x16xf32>
    %289 = vector.extract_strided_slice %274 {offsets = [0, 48], sizes = [2, 16], strides = [1, 1]} : vector<2x64xf32> to vector<2x16xf32>
    %290 = arith.negf %289 : vector<2x16xf32>
    %291 = math.exp %290 : vector<2x16xf32>
    %cst_78 = arith.constant 1.000000e+00 : f32
    %292 = vector.broadcast %cst_78 : f32 to vector<2x16xf32>
    %293 = arith.addf %292, %291 : vector<2x16xf32>
    %294 = arith.divf %292, %293 : vector<2x16xf32>
    %295 = arith.mulf %286, %268 : vector<2x16xf32>
    %296 = arith.mulf %280, %288 : vector<2x16xf32>
    %297 = arith.addf %295, %296 : vector<2x16xf32>
    %298 = math.tanh %297 : vector<2x16xf32>
    %299 = arith.mulf %294, %298 : vector<2x16xf32>
    %c0_79 = arith.constant 0 : index
    %c6_80 = arith.constant 6 : index
    %c0_81 = arith.constant 0 : index
    %c0_82 = arith.constant 0 : index
    %300 = vector.load %arg1[%c0_79, %c6_80, %c0_81, %c0_82] : memref<1x8x2x16xf32, #tpu.memory_space<vmem>>, vector<1x1x2x16xf32>
    %301 = vector.shape_cast %300 : vector<1x1x2x16xf32> to vector<2x16xf32>
    %302 = tpu.concatenate %301, %299 in 1 : vector<2x16xf32>, vector<2x16xf32> -> vector<2x32xf32>
    %cst_83 = arith.constant dense<0.000000e+00> : vector<2x64xf32>
    %303 = tpu.matmul %302, %264, %cst_83 {dimension_numbers = #tpu.dot_dimension_numbers<[1], [0], [0], [1], [0, 0, 1, 1], [], []>} : vector<2x32xf32>, vector<32x64xf32>, vector<2x64xf32> -> vector<2x64xf32>
    %304 = vector.broadcast %266 : vector<1x64xf32> to vector<2x64xf32>
    %305 = arith.addf %303, %304 : vector<2x64xf32>
    %306 = vector.extract_strided_slice %305 {offsets = [0, 0], sizes = [2, 16], strides = [1, 1]} : vector<2x64xf32> to vector<2x16xf32>
    %307 = arith.negf %306 : vector<2x16xf32>
    %308 = math.exp %307 : vector<2x16xf32>
    %cst_84 = arith.constant 1.000000e+00 : f32
    %309 = vector.broadcast %cst_84 : f32 to vector<2x16xf32>
    %310 = arith.addf %309, %308 : vector<2x16xf32>
    %311 = arith.divf %309, %310 : vector<2x16xf32>
    %312 = vector.extract_strided_slice %305 {offsets = [0, 16], sizes = [2, 16], strides = [1, 1]} : vector<2x64xf32> to vector<2x16xf32>
    %313 = arith.negf %312 : vector<2x16xf32>
    %314 = math.exp %313 : vector<2x16xf32>
    %cst_85 = arith.constant 1.000000e+00 : f32
    %315 = vector.broadcast %cst_85 : f32 to vector<2x16xf32>
    %316 = arith.addf %315, %314 : vector<2x16xf32>
    %317 = arith.divf %315, %316 : vector<2x16xf32>
    %318 = vector.extract_strided_slice %305 {offsets = [0, 32], sizes = [2, 16], strides = [1, 1]} : vector<2x64xf32> to vector<2x16xf32>
    %319 = math.tanh %318 : vector<2x16xf32>
    %320 = vector.extract_strided_slice %305 {offsets = [0, 48], sizes = [2, 16], strides = [1, 1]} : vector<2x64xf32> to vector<2x16xf32>
    %321 = arith.negf %320 : vector<2x16xf32>
    %322 = math.exp %321 : vector<2x16xf32>
    %cst_86 = arith.constant 1.000000e+00 : f32
    %323 = vector.broadcast %cst_86 : f32 to vector<2x16xf32>
    %324 = arith.addf %323, %322 : vector<2x16xf32>
    %325 = arith.divf %323, %324 : vector<2x16xf32>
    %326 = arith.mulf %317, %297 : vector<2x16xf32>
    %327 = arith.mulf %311, %319 : vector<2x16xf32>
    %328 = arith.addf %326, %327 : vector<2x16xf32>
    %329 = math.tanh %328 : vector<2x16xf32>
    %330 = arith.mulf %325, %329 : vector<2x16xf32>
    %c0_87 = arith.constant 0 : index
    %c5_88 = arith.constant 5 : index
    %c0_89 = arith.constant 0 : index
    %c0_90 = arith.constant 0 : index
    %331 = vector.load %arg1[%c0_87, %c5_88, %c0_89, %c0_90] : memref<1x8x2x16xf32, #tpu.memory_space<vmem>>, vector<1x1x2x16xf32>
    %332 = vector.shape_cast %331 : vector<1x1x2x16xf32> to vector<2x16xf32>
    %333 = tpu.concatenate %332, %330 in 1 : vector<2x16xf32>, vector<2x16xf32> -> vector<2x32xf32>
    %cst_91 = arith.constant dense<0.000000e+00> : vector<2x64xf32>
    %334 = tpu.matmul %333, %264, %cst_91 {dimension_numbers = #tpu.dot_dimension_numbers<[1], [0], [0], [1], [0, 0, 1, 1], [], []>} : vector<2x32xf32>, vector<32x64xf32>, vector<2x64xf32> -> vector<2x64xf32>
    %335 = vector.broadcast %266 : vector<1x64xf32> to vector<2x64xf32>
    %336 = arith.addf %334, %335 : vector<2x64xf32>
    %337 = vector.extract_strided_slice %336 {offsets = [0, 0], sizes = [2, 16], strides = [1, 1]} : vector<2x64xf32> to vector<2x16xf32>
    %338 = arith.negf %337 : vector<2x16xf32>
    %339 = math.exp %338 : vector<2x16xf32>
    %cst_92 = arith.constant 1.000000e+00 : f32
    %340 = vector.broadcast %cst_92 : f32 to vector<2x16xf32>
    %341 = arith.addf %340, %339 : vector<2x16xf32>
    %342 = arith.divf %340, %341 : vector<2x16xf32>
    %343 = vector.extract_strided_slice %336 {offsets = [0, 16], sizes = [2, 16], strides = [1, 1]} : vector<2x64xf32> to vector<2x16xf32>
    %344 = arith.negf %343 : vector<2x16xf32>
    %345 = math.exp %344 : vector<2x16xf32>
    %cst_93 = arith.constant 1.000000e+00 : f32
    %346 = vector.broadcast %cst_93 : f32 to vector<2x16xf32>
    %347 = arith.addf %346, %345 : vector<2x16xf32>
    %348 = arith.divf %346, %347 : vector<2x16xf32>
    %349 = vector.extract_strided_slice %336 {offsets = [0, 32], sizes = [2, 16], strides = [1, 1]} : vector<2x64xf32> to vector<2x16xf32>
    %350 = math.tanh %349 : vector<2x16xf32>
    %351 = vector.extract_strided_slice %336 {offsets = [0, 48], sizes = [2, 16], strides = [1, 1]} : vector<2x64xf32> to vector<2x16xf32>
    %352 = arith.negf %351 : vector<2x16xf32>
    %353 = math.exp %352 : vector<2x16xf32>
    %cst_94 = arith.constant 1.000000e+00 : f32
    %354 = vector.broadcast %cst_94 : f32 to vector<2x16xf32>
    %355 = arith.addf %354, %353 : vector<2x16xf32>
    %356 = arith.divf %354, %355 : vector<2x16xf32>
    %357 = arith.mulf %348, %328 : vector<2x16xf32>
    %358 = arith.mulf %342, %350 : vector<2x16xf32>
    %359 = arith.addf %357, %358 : vector<2x16xf32>
    %360 = math.tanh %359 : vector<2x16xf32>
    %361 = arith.mulf %356, %360 : vector<2x16xf32>
    %c0_95 = arith.constant 0 : index
    %c4_96 = arith.constant 4 : index
    %c0_97 = arith.constant 0 : index
    %c0_98 = arith.constant 0 : index
    %362 = vector.load %arg1[%c0_95, %c4_96, %c0_97, %c0_98] : memref<1x8x2x16xf32, #tpu.memory_space<vmem>>, vector<1x1x2x16xf32>
    %363 = vector.shape_cast %362 : vector<1x1x2x16xf32> to vector<2x16xf32>
    %364 = tpu.concatenate %363, %361 in 1 : vector<2x16xf32>, vector<2x16xf32> -> vector<2x32xf32>
    %cst_99 = arith.constant dense<0.000000e+00> : vector<2x64xf32>
    %365 = tpu.matmul %364, %264, %cst_99 {dimension_numbers = #tpu.dot_dimension_numbers<[1], [0], [0], [1], [0, 0, 1, 1], [], []>} : vector<2x32xf32>, vector<32x64xf32>, vector<2x64xf32> -> vector<2x64xf32>
    %366 = vector.broadcast %266 : vector<1x64xf32> to vector<2x64xf32>
    %367 = arith.addf %365, %366 : vector<2x64xf32>
    %368 = vector.extract_strided_slice %367 {offsets = [0, 0], sizes = [2, 16], strides = [1, 1]} : vector<2x64xf32> to vector<2x16xf32>
    %369 = arith.negf %368 : vector<2x16xf32>
    %370 = math.exp %369 : vector<2x16xf32>
    %cst_100 = arith.constant 1.000000e+00 : f32
    %371 = vector.broadcast %cst_100 : f32 to vector<2x16xf32>
    %372 = arith.addf %371, %370 : vector<2x16xf32>
    %373 = arith.divf %371, %372 : vector<2x16xf32>
    %374 = vector.extract_strided_slice %367 {offsets = [0, 16], sizes = [2, 16], strides = [1, 1]} : vector<2x64xf32> to vector<2x16xf32>
    %375 = arith.negf %374 : vector<2x16xf32>
    %376 = math.exp %375 : vector<2x16xf32>
    %cst_101 = arith.constant 1.000000e+00 : f32
    %377 = vector.broadcast %cst_101 : f32 to vector<2x16xf32>
    %378 = arith.addf %377, %376 : vector<2x16xf32>
    %379 = arith.divf %377, %378 : vector<2x16xf32>
    %380 = vector.extract_strided_slice %367 {offsets = [0, 32], sizes = [2, 16], strides = [1, 1]} : vector<2x64xf32> to vector<2x16xf32>
    %381 = math.tanh %380 : vector<2x16xf32>
    %382 = vector.extract_strided_slice %367 {offsets = [0, 48], sizes = [2, 16], strides = [1, 1]} : vector<2x64xf32> to vector<2x16xf32>
    %383 = arith.negf %382 : vector<2x16xf32>
    %384 = math.exp %383 : vector<2x16xf32>
    %cst_102 = arith.constant 1.000000e+00 : f32
    %385 = vector.broadcast %cst_102 : f32 to vector<2x16xf32>
    %386 = arith.addf %385, %384 : vector<2x16xf32>
    %387 = arith.divf %385, %386 : vector<2x16xf32>
    %388 = arith.mulf %379, %359 : vector<2x16xf32>
    %389 = arith.mulf %373, %381 : vector<2x16xf32>
    %390 = arith.addf %388, %389 : vector<2x16xf32>
    %391 = math.tanh %390 : vector<2x16xf32>
    %392 = arith.mulf %387, %391 : vector<2x16xf32>
    %c0_103 = arith.constant 0 : index
    %c3_104 = arith.constant 3 : index
    %c0_105 = arith.constant 0 : index
    %c0_106 = arith.constant 0 : index
    %393 = vector.load %arg1[%c0_103, %c3_104, %c0_105, %c0_106] : memref<1x8x2x16xf32, #tpu.memory_space<vmem>>, vector<1x1x2x16xf32>
    %394 = vector.shape_cast %393 : vector<1x1x2x16xf32> to vector<2x16xf32>
    %395 = tpu.concatenate %394, %392 in 1 : vector<2x16xf32>, vector<2x16xf32> -> vector<2x32xf32>
    %cst_107 = arith.constant dense<0.000000e+00> : vector<2x64xf32>
    %396 = tpu.matmul %395, %264, %cst_107 {dimension_numbers = #tpu.dot_dimension_numbers<[1], [0], [0], [1], [0, 0, 1, 1], [], []>} : vector<2x32xf32>, vector<32x64xf32>, vector<2x64xf32> -> vector<2x64xf32>
    %397 = vector.broadcast %266 : vector<1x64xf32> to vector<2x64xf32>
    %398 = arith.addf %396, %397 : vector<2x64xf32>
    %399 = vector.extract_strided_slice %398 {offsets = [0, 0], sizes = [2, 16], strides = [1, 1]} : vector<2x64xf32> to vector<2x16xf32>
    %400 = arith.negf %399 : vector<2x16xf32>
    %401 = math.exp %400 : vector<2x16xf32>
    %cst_108 = arith.constant 1.000000e+00 : f32
    %402 = vector.broadcast %cst_108 : f32 to vector<2x16xf32>
    %403 = arith.addf %402, %401 : vector<2x16xf32>
    %404 = arith.divf %402, %403 : vector<2x16xf32>
    %405 = vector.extract_strided_slice %398 {offsets = [0, 16], sizes = [2, 16], strides = [1, 1]} : vector<2x64xf32> to vector<2x16xf32>
    %406 = arith.negf %405 : vector<2x16xf32>
    %407 = math.exp %406 : vector<2x16xf32>
    %cst_109 = arith.constant 1.000000e+00 : f32
    %408 = vector.broadcast %cst_109 : f32 to vector<2x16xf32>
    %409 = arith.addf %408, %407 : vector<2x16xf32>
    %410 = arith.divf %408, %409 : vector<2x16xf32>
    %411 = vector.extract_strided_slice %398 {offsets = [0, 32], sizes = [2, 16], strides = [1, 1]} : vector<2x64xf32> to vector<2x16xf32>
    %412 = math.tanh %411 : vector<2x16xf32>
    %413 = vector.extract_strided_slice %398 {offsets = [0, 48], sizes = [2, 16], strides = [1, 1]} : vector<2x64xf32> to vector<2x16xf32>
    %414 = arith.negf %413 : vector<2x16xf32>
    %415 = math.exp %414 : vector<2x16xf32>
    %cst_110 = arith.constant 1.000000e+00 : f32
    %416 = vector.broadcast %cst_110 : f32 to vector<2x16xf32>
    %417 = arith.addf %416, %415 : vector<2x16xf32>
    %418 = arith.divf %416, %417 : vector<2x16xf32>
    %419 = arith.mulf %410, %390 : vector<2x16xf32>
    %420 = arith.mulf %404, %412 : vector<2x16xf32>
    %421 = arith.addf %419, %420 : vector<2x16xf32>
    %422 = math.tanh %421 : vector<2x16xf32>
    %423 = arith.mulf %418, %422 : vector<2x16xf32>
    %c0_111 = arith.constant 0 : index
    %c2_112 = arith.constant 2 : index
    %c0_113 = arith.constant 0 : index
    %c0_114 = arith.constant 0 : index
    %424 = vector.load %arg1[%c0_111, %c2_112, %c0_113, %c0_114] : memref<1x8x2x16xf32, #tpu.memory_space<vmem>>, vector<1x1x2x16xf32>
    %425 = vector.shape_cast %424 : vector<1x1x2x16xf32> to vector<2x16xf32>
    %426 = tpu.concatenate %425, %423 in 1 : vector<2x16xf32>, vector<2x16xf32> -> vector<2x32xf32>
    %cst_115 = arith.constant dense<0.000000e+00> : vector<2x64xf32>
    %427 = tpu.matmul %426, %264, %cst_115 {dimension_numbers = #tpu.dot_dimension_numbers<[1], [0], [0], [1], [0, 0, 1, 1], [], []>} : vector<2x32xf32>, vector<32x64xf32>, vector<2x64xf32> -> vector<2x64xf32>
    %428 = vector.broadcast %266 : vector<1x64xf32> to vector<2x64xf32>
    %429 = arith.addf %427, %428 : vector<2x64xf32>
    %430 = vector.extract_strided_slice %429 {offsets = [0, 0], sizes = [2, 16], strides = [1, 1]} : vector<2x64xf32> to vector<2x16xf32>
    %431 = arith.negf %430 : vector<2x16xf32>
    %432 = math.exp %431 : vector<2x16xf32>
    %cst_116 = arith.constant 1.000000e+00 : f32
    %433 = vector.broadcast %cst_116 : f32 to vector<2x16xf32>
    %434 = arith.addf %433, %432 : vector<2x16xf32>
    %435 = arith.divf %433, %434 : vector<2x16xf32>
    %436 = vector.extract_strided_slice %429 {offsets = [0, 16], sizes = [2, 16], strides = [1, 1]} : vector<2x64xf32> to vector<2x16xf32>
    %437 = arith.negf %436 : vector<2x16xf32>
    %438 = math.exp %437 : vector<2x16xf32>
    %cst_117 = arith.constant 1.000000e+00 : f32
    %439 = vector.broadcast %cst_117 : f32 to vector<2x16xf32>
    %440 = arith.addf %439, %438 : vector<2x16xf32>
    %441 = arith.divf %439, %440 : vector<2x16xf32>
    %442 = vector.extract_strided_slice %429 {offsets = [0, 32], sizes = [2, 16], strides = [1, 1]} : vector<2x64xf32> to vector<2x16xf32>
    %443 = math.tanh %442 : vector<2x16xf32>
    %444 = vector.extract_strided_slice %429 {offsets = [0, 48], sizes = [2, 16], strides = [1, 1]} : vector<2x64xf32> to vector<2x16xf32>
    %445 = arith.negf %444 : vector<2x16xf32>
    %446 = math.exp %445 : vector<2x16xf32>
    %cst_118 = arith.constant 1.000000e+00 : f32
    %447 = vector.broadcast %cst_118 : f32 to vector<2x16xf32>
    %448 = arith.addf %447, %446 : vector<2x16xf32>
    %449 = arith.divf %447, %448 : vector<2x16xf32>
    %450 = arith.mulf %441, %421 : vector<2x16xf32>
    %451 = arith.mulf %435, %443 : vector<2x16xf32>
    %452 = arith.addf %450, %451 : vector<2x16xf32>
    %453 = math.tanh %452 : vector<2x16xf32>
    %454 = arith.mulf %449, %453 : vector<2x16xf32>
    %c0_119 = arith.constant 0 : index
    %c1_120 = arith.constant 1 : index
    %c0_121 = arith.constant 0 : index
    %c0_122 = arith.constant 0 : index
    %455 = vector.load %arg1[%c0_119, %c1_120, %c0_121, %c0_122] : memref<1x8x2x16xf32, #tpu.memory_space<vmem>>, vector<1x1x2x16xf32>
    %456 = vector.shape_cast %455 : vector<1x1x2x16xf32> to vector<2x16xf32>
    %457 = tpu.concatenate %456, %454 in 1 : vector<2x16xf32>, vector<2x16xf32> -> vector<2x32xf32>
    %cst_123 = arith.constant dense<0.000000e+00> : vector<2x64xf32>
    %458 = tpu.matmul %457, %264, %cst_123 {dimension_numbers = #tpu.dot_dimension_numbers<[1], [0], [0], [1], [0, 0, 1, 1], [], []>} : vector<2x32xf32>, vector<32x64xf32>, vector<2x64xf32> -> vector<2x64xf32>
    %459 = vector.broadcast %266 : vector<1x64xf32> to vector<2x64xf32>
    %460 = arith.addf %458, %459 : vector<2x64xf32>
    %461 = vector.extract_strided_slice %460 {offsets = [0, 0], sizes = [2, 16], strides = [1, 1]} : vector<2x64xf32> to vector<2x16xf32>
    %462 = arith.negf %461 : vector<2x16xf32>
    %463 = math.exp %462 : vector<2x16xf32>
    %cst_124 = arith.constant 1.000000e+00 : f32
    %464 = vector.broadcast %cst_124 : f32 to vector<2x16xf32>
    %465 = arith.addf %464, %463 : vector<2x16xf32>
    %466 = arith.divf %464, %465 : vector<2x16xf32>
    %467 = vector.extract_strided_slice %460 {offsets = [0, 16], sizes = [2, 16], strides = [1, 1]} : vector<2x64xf32> to vector<2x16xf32>
    %468 = arith.negf %467 : vector<2x16xf32>
    %469 = math.exp %468 : vector<2x16xf32>
    %cst_125 = arith.constant 1.000000e+00 : f32
    %470 = vector.broadcast %cst_125 : f32 to vector<2x16xf32>
    %471 = arith.addf %470, %469 : vector<2x16xf32>
    %472 = arith.divf %470, %471 : vector<2x16xf32>
    %473 = vector.extract_strided_slice %460 {offsets = [0, 32], sizes = [2, 16], strides = [1, 1]} : vector<2x64xf32> to vector<2x16xf32>
    %474 = math.tanh %473 : vector<2x16xf32>
    %475 = vector.extract_strided_slice %460 {offsets = [0, 48], sizes = [2, 16], strides = [1, 1]} : vector<2x64xf32> to vector<2x16xf32>
    %476 = arith.negf %475 : vector<2x16xf32>
    %477 = math.exp %476 : vector<2x16xf32>
    %cst_126 = arith.constant 1.000000e+00 : f32
    %478 = vector.broadcast %cst_126 : f32 to vector<2x16xf32>
    %479 = arith.addf %478, %477 : vector<2x16xf32>
    %480 = arith.divf %478, %479 : vector<2x16xf32>
    %481 = arith.mulf %472, %452 : vector<2x16xf32>
    %482 = arith.mulf %466, %474 : vector<2x16xf32>
    %483 = arith.addf %481, %482 : vector<2x16xf32>
    %484 = math.tanh %483 : vector<2x16xf32>
    %485 = arith.mulf %480, %484 : vector<2x16xf32>
    %c0_127 = arith.constant 0 : index
    %c0_128 = arith.constant 0 : index
    %c0_129 = arith.constant 0 : index
    %c0_130 = arith.constant 0 : index
    %486 = vector.load %arg1[%c0_127, %c0_128, %c0_129, %c0_130] : memref<1x8x2x16xf32, #tpu.memory_space<vmem>>, vector<1x1x2x16xf32>
    %487 = vector.shape_cast %486 : vector<1x1x2x16xf32> to vector<2x16xf32>
    %488 = tpu.concatenate %487, %485 in 1 : vector<2x16xf32>, vector<2x16xf32> -> vector<2x32xf32>
    %cst_131 = arith.constant dense<0.000000e+00> : vector<2x64xf32>
    %489 = tpu.matmul %488, %264, %cst_131 {dimension_numbers = #tpu.dot_dimension_numbers<[1], [0], [0], [1], [0, 0, 1, 1], [], []>} : vector<2x32xf32>, vector<32x64xf32>, vector<2x64xf32> -> vector<2x64xf32>
    %490 = vector.broadcast %266 : vector<1x64xf32> to vector<2x64xf32>
    %491 = arith.addf %489, %490 : vector<2x64xf32>
    %492 = vector.extract_strided_slice %491 {offsets = [0, 0], sizes = [2, 16], strides = [1, 1]} : vector<2x64xf32> to vector<2x16xf32>
    %493 = arith.negf %492 : vector<2x16xf32>
    %494 = math.exp %493 : vector<2x16xf32>
    %cst_132 = arith.constant 1.000000e+00 : f32
    %495 = vector.broadcast %cst_132 : f32 to vector<2x16xf32>
    %496 = arith.addf %495, %494 : vector<2x16xf32>
    %497 = arith.divf %495, %496 : vector<2x16xf32>
    %498 = vector.extract_strided_slice %491 {offsets = [0, 16], sizes = [2, 16], strides = [1, 1]} : vector<2x64xf32> to vector<2x16xf32>
    %499 = arith.negf %498 : vector<2x16xf32>
    %500 = math.exp %499 : vector<2x16xf32>
    %cst_133 = arith.constant 1.000000e+00 : f32
    %501 = vector.broadcast %cst_133 : f32 to vector<2x16xf32>
    %502 = arith.addf %501, %500 : vector<2x16xf32>
    %503 = arith.divf %501, %502 : vector<2x16xf32>
    %504 = vector.extract_strided_slice %491 {offsets = [0, 32], sizes = [2, 16], strides = [1, 1]} : vector<2x64xf32> to vector<2x16xf32>
    %505 = math.tanh %504 : vector<2x16xf32>
    %506 = vector.extract_strided_slice %491 {offsets = [0, 48], sizes = [2, 16], strides = [1, 1]} : vector<2x64xf32> to vector<2x16xf32>
    %507 = arith.negf %506 : vector<2x16xf32>
    %508 = math.exp %507 : vector<2x16xf32>
    %cst_134 = arith.constant 1.000000e+00 : f32
    %509 = vector.broadcast %cst_134 : f32 to vector<2x16xf32>
    %510 = arith.addf %509, %508 : vector<2x16xf32>
    %511 = arith.divf %509, %510 : vector<2x16xf32>
    %512 = arith.mulf %503, %483 : vector<2x16xf32>
    %513 = arith.mulf %497, %505 : vector<2x16xf32>
    %514 = arith.addf %512, %513 : vector<2x16xf32>
    %515 = math.tanh %514 : vector<2x16xf32>
    %516 = arith.mulf %511, %515 : vector<2x16xf32>
    %517 = vector.shape_cast %516 : vector<2x16xf32> to vector<2x1x16xf32>
    %518 = vector.shape_cast %485 : vector<2x16xf32> to vector<2x1x16xf32>
    %519 = vector.shape_cast %454 : vector<2x16xf32> to vector<2x1x16xf32>
    %520 = vector.shape_cast %423 : vector<2x16xf32> to vector<2x1x16xf32>
    %521 = vector.shape_cast %392 : vector<2x16xf32> to vector<2x1x16xf32>
    %522 = vector.shape_cast %361 : vector<2x16xf32> to vector<2x1x16xf32>
    %523 = vector.shape_cast %330 : vector<2x16xf32> to vector<2x1x16xf32>
    %524 = vector.shape_cast %299 : vector<2x16xf32> to vector<2x1x16xf32>
    %525 = tpu.concatenate %517, %518, %519, %520, %521, %522, %523, %524 in 1 : vector<2x1x16xf32>, vector<2x1x16xf32>, vector<2x1x16xf32>, vector<2x1x16xf32>, vector<2x1x16xf32>, vector<2x1x16xf32>, vector<2x1x16xf32>, vector<2x1x16xf32> -> vector<2x8x16xf32>
    %526 = tpu.concatenate %262, %525 in 2 : vector<2x8x16xf32>, vector<2x8x16xf32> -> vector<2x8x32xf32>
    %c0_135 = arith.constant 0 : index
    %c0_136 = arith.constant 0 : index
    %c0_137 = arith.constant 0 : index
    %c0_138 = arith.constant 0 : index
    %527 = vector.load %arg4[%c0_135, %c0_136, %c0_137, %c0_138] : memref<1x2x8x32xf32, #tpu.memory_space<vmem>>, vector<1x2x8x32xf32>
    %528 = vector.shape_cast %527 : vector<1x2x8x32xf32> to vector<2x8x32xf32>
    %529 = vector.shape_cast %526 : vector<2x8x32xf32> to vector<1x2x8x32xf32>
    tpu.vector_store %arg4[%c0_135, %c0_136, %c0_137, %c0_138], %529 {strides = array<i32>} : memref<1x2x8x32xf32, #tpu.memory_space<vmem>>, vector<1x2x8x32xf32>,
    return
  }
  func.func @transform_0(%arg0: i32) -> (i32, i32, i32, i32) {
    %c0_i32 = arith.constant 0 : i32
    %c0_i32_0 = arith.constant 0 : i32
    %c0_i32_1 = arith.constant 0 : i32
    %c0_i32_2 = arith.constant 0 : i32
    return %arg0, %c0_i32, %c0_i32_0, %c0_i32_1 : i32, i32, i32, i32
  }
  func.func @transform_1(%arg0: i32) -> (i32, i32, i32) {
    %c0_i32 = arith.constant 0 : i32
    %c0_i32_0 = arith.constant 0 : i32
    %c0_i32_1 = arith.constant 0 : i32
    %c0_i32_2 = arith.constant 0 : i32
    return %c0_i32, %c0_i32_0, %c0_i32_1 : i32, i32, i32
  }
  func.func @transform_2(%arg0: i32) -> (i32, i32, i32) {
    %c0_i32 = arith.constant 0 : i32
    %c0_i32_0 = arith.constant 0 : i32
    %c0_i32_1 = arith.constant 0 : i32
    %c0_i32_2 = arith.constant 0 : i32
    return %c0_i32, %c0_i32_0, %c0_i32_1 : i32, i32, i32
  }
  func.func @transform_3(%arg0: i32) -> (i32, i32, i32, i32) {
    %c0_i32 = arith.constant 0 : i32
    %c0_i32_0 = arith.constant 0 : i32
    %c0_i32_1 = arith.constant 0 : i32
    %c0_i32_2 = arith.constant 0 : i32
    return %arg0, %c0_i32, %c0_i32_0, %c0_i32_1 : i32, i32, i32, i32
  }
}

</mosaic_0001>

<llo_original>
// kernel: san_forward.3
$region0: #{san_forward.3}
  #allocation0 [shape = 'u32[]', space=smem, size = 0x4, offset = 0x4, fixed_abs, tag = 'smem constant byte address 0x4 - core index']
  #allocation1 [shape = 'u32[144,128]{1,0:T(1,128)}', space=vmem, size = 0x12000, scoped, tag = 'internal scratch']
  %s0 = inlined_call_operand.vmem [shape: f32[2,8,32], index: 0, kind: input, shape index: {}]
  %s1 = inlined_call_operand.vmem [shape: f32[2,8,32], index: 1, kind: input, shape index: {}]
  %s2 = inlined_call_operand.vmem [shape: f32[32,16], index: 2, kind: input, shape index: {}]
  %s3 = inlined_call_operand.vmem [shape: f32[16,8], index: 3, kind: input, shape index: {}]
  %s4 = inlined_call_operand.vmem [shape: f32[32,32], index: 4, kind: input, shape index: {}]
  %s5 = inlined_call_operand.vmem [shape: f32[32,32], index: 5, kind: input, shape index: {}]
  %s6 = inlined_call_operand.vmem [shape: f32[256,32], index: 6, kind: input, shape index: {}]
  %s7 = inlined_call_operand.vmem [shape: f32[1,32], index: 7, kind: input, shape index: {}]
  %s8 = inlined_call_operand.vmem [shape: f32[32,4], index: 8, kind: input, shape index: {}]
  %s9 = inlined_call_operand.vmem [shape: f32[1,4], index: 9, kind: input, shape index: {}]
  %s10 = inlined_call_operand.hbm [shape: f32[2,4], index: 10, kind: output, shape index: {0}]
  %s11 = inlined_call_operand.hbm [shape: f32[2,8,8], index: 11, kind: output, shape index: {1}]
  %s12 = inlined_call_operand.hbm [shape: f32[2,8,8], index: 12, kind: output, shape index: {2}]
  %13 = xla_tuple %s10, %s11, %s12
  %s14 = sld [smem:[#allocation0]]
  $region66: #{san_forward.3} parent=0
    _
  %s16 = ssub.s32 1, %s14
  %s17 = scalar_select 0, %s16, %s14
  $region1: #{san_forward.3} parent=0
    #allocation2 [shape = 'u8[1024]{0}', space=vmem, size = 0x400, scoped, tag = 'output window, operand 0, single buffered']
    #allocation3 [shape = 's32[1]{0}', space=sflag, size = 0x4, scoped, tag = 'scoped memory for san_forward.3']
    #allocation4 [shape = 'u8[8192]{0}', space=vmem, size = 0x2000, scoped, tag = 'output window, operand 1, single buffered']
    #allocation5 [shape = 's32[1]{0}', space=sflag, size = 0x4, scoped, tag = 'scoped memory for san_forward.3']
    #allocation6 [shape = 'u8[8192]{0}', space=vmem, size = 0x2000, scoped, tag = 'output window, operand 2, single buffered']
    %18 = vsyncpa [#allocation3], 0
    %19 = vsyncpa [#allocation5], 0
    // Predicated region
    $region2: #{san_forward.3} parent=1 // pred_check
      _
    $region3: #{san_forward.3} parent=1 // pred_check_branch
      %21 = sbr.rel (0) target = $region5
    $region4: #{san_forward.3} parent=1 // pred_region
      _
    $region5: #{san_forward.3} parent=1 // pred_fallthru
      _
    // Predicated region
    $region6: #{san_forward.3} parent=1 // pred_check
      _
    $region7: #{san_forward.3} parent=1 // pred_check_branch
      %23 = sbr.rel (0) target = $region9
    $region8: #{san_forward.3} parent=1 // pred_region
      _
    $region9: #{san_forward.3} parent=1 // pred_fallthru
      _
    // Predicated region
    $region10: #{san_forward.3} parent=1 // pred_check
      _
    $region11: #{san_forward.3} parent=1 // pred_check_branch
      %25 = sbr.rel (0) target = $region13
    $region12: #{san_forward.3} parent=1 // pred_region
      _
    $region13: #{san_forward.3} parent=1 // pred_fallthru
      _
    // Predicated region
    $region14: #{san_forward.3} parent=1 // pred_check
      _
    $region15: #{san_forward.3} parent=1 // pred_check_branch
      %27 = sbr.rel (0) target = $region17
    $region16: #{san_forward.3} parent=1 // pred_region
      _
    $region17: #{san_forward.3} parent=1 // pred_fallthru
      _
    // Predicated region
    $region18: #{san_forward.3} parent=1 // pred_check
      _
    $region19: #{san_forward.3} parent=1 // pred_check_branch
      %29 = sbr.rel (0) target = $region21
    $region20: #{san_forward.3} parent=1 // pred_region
      _
    $region21: #{san_forward.3} parent=1 // pred_fallthru
      _
    // Predicated region
    $region22: #{san_forward.3} parent=1 // pred_check
      _
    $region23: #{san_forward.3} parent=1 // pred_check_branch
      %31 = sbr.rel (0) target = $region25
    $region24: #{san_forward.3} parent=1 // pred_region
      _
    $region25: #{san_forward.3} parent=1 // pred_fallthru
      _
    // Predicated region
    $region26: #{san_forward.3} parent=1 // pred_check
      _
    $region27: #{san_forward.3} parent=1 // pred_check_branch
      %33 = sbr.rel (0) target = $region29
    $region28: #{san_forward.3} parent=1 // pred_region
      _
    $region29: #{san_forward.3} parent=1 // pred_fallthru
      _
    // Predicated region
    $region30: #{san_forward.3} parent=1 // pred_check
      _
    $region31: #{san_forward.3} parent=1 // pred_check_branch
      %35 = sbr.rel (0) target = $region33
    $region32: #{san_forward.3} parent=1 // pred_region
      _
    $region33: #{san_forward.3} parent=1 // pred_fallthru
      _
    // Predicated region
    $region34: #{san_forward.3} parent=1 // pred_check
      _
    $region35: #{san_forward.3} parent=1 // pred_check_branch
      %37 = sbr.rel (0) target = $region37
    $region36: #{san_forward.3} parent=1 // pred_region
      _
    $region37: #{san_forward.3} parent=1 // pred_fallthru
      _
    // Predicated region
    $region38: #{san_forward.3} parent=1 // pred_check
      _
    $region39: #{san_forward.3} parent=1 // pred_check_branch
      %39 = sbr.rel (0) target = $region41
    $region40: #{san_forward.3} parent=1 // pred_region
      _
    $region41: #{san_forward.3} parent=1 // pred_fallthru
      _
    %v40 = vld [vmem:[%s2] sm:$0xff]
    %v41 = vld [vmem:[%s2 + $0x8] sm:$0xff]
    %v42 = vld [vmem:[%s2 + $0x10] sm:$0xff]
    %v43 = vld [vmem:[%s2 + $0x18] sm:$0xff]
    %v44 = vld [vmem:[%s3] sm:$0xff]
    %v45 = vld [vmem:[%s3 + $0x8] sm:$0xff]
    %v46 = vld [vmem:[%s0] sm:$0xff]
    %v47 = vld [vmem:[%s0 + $0x8] sm:$0xff]
    %vm48 = vcmask 261120
    %v50 = vsel %vm48, %v46, 0
    %v53 = vsel %vm48, %v47, 0
    %55 = vmatprep.subr.mxu0 0.0
    %56 = vmatpush1.msra.mxu0 %v40
    %57 = vmatprep.subr.mxu0 0.0
    %58 = vmatpush1.msra.mxu0 %v41
    %59 = vmatprep.subr.mxu0 0.0
    %60 = vmatpush1.msra.mxu0 %v42
    %61 = vmatprep.subr.mxu0 0.0
    %62 = vmatpush1.msra.mxu0 %v43
    %63 = vmatprep.subr.mxu0 0.0
    %64 = vmatpush1.msra.mxu0 0.0
    %65 = vmatprep.subr.mxu0 0.0
    %66 = vmatpush1.msra.mxu0 0.0
    %67 = vmatprep.subr.mxu0 0.0
    %68 = vmatpush1.msra.mxu0 0.0
    %69 = vmatprep.subr.mxu0 0.0
    %70 = vmatpush1.msra.mxu0 0.0
    %71 = vmatprep.subr.mxu0 0.0
    %72 = vmatpush1.msra.mxu0 0.0
    %73 = vmatprep.subr.mxu0 0.0
    %74 = vmatpush1.msra.mxu0 0.0
    %75 = vmatprep.subr.mxu0 0.0
    %76 = vmatpush1.msra.mxu0 0.0
    %77 = vmatprep.subr.mxu0 0.0
    %78 = vmatpush1.msra.mxu0 0.0
    %79 = vmatprep.subr.mxu0 0.0
    %80 = vmatpush1.msra.mxu0 0.0
    %81 = vmatprep.subr.mxu0 0.0
    %82 = vmatpush1.msra.mxu0 0.0
    %83 = vmatprep.subr.mxu0 0.0
    %84 = vmatpush1.msra.mxu0 0.0
    %85 = vmatprep.subr.mxu0 0.0
    %86 = vmatpush1.msra.mxu0 0.0
    %87 = vmatprep.subr.mxu0 0.0
    %88 = vmatpush1.msra.mxu0 0.0
    %89 = vmatprep.subr.mxu0 0.0
    %90 = vmatpush1.msra.mxu0 0.0
    %91 = vmatprep.subr.mxu0 0.0
    %92 = vmatpush1.msra.mxu0 0.0
    %93 = vmatprep.subr.mxu0 0.0
    %94 = vmatpush1.msra.mxu0 0.0
    %95 = vmatprep.subr.mxu0 0.0
    %96 = vmatpush1.msra.mxu0 0.0
    %97 = vmatprep.subr.mxu0 0.0
    %98 = vmatpush1.msra.mxu0 0.0
    %99 = vmatprep.subr.mxu0 0.0
    %100 = vmatpush1.msra.mxu0 0.0
    %101 = vmatprep.subr.mxu0 0.0
    %102 = vmatpush1.msra.mxu0 0.0
    %103 = vmatprep.subr.mxu0 0.0
    %104 = vmatpush1.msra.mxu0 0.0
    %105 = vmatprep.subr.mxu0 0.0
    %106 = vmatpush1.msra.mxu0 0.0
    %107 = vmatprep.subr.mxu0 0.0
    %108 = vmatpush1.msra.mxu0 0.0
    %109 = vmatprep.subr.mxu0 0.0
    %110 = vmatpush1.msra.mxu0 0.0
    %111 = vmatprep.subr.mxu0 0.0
    %112 = vmatpush1.msra.mxu0 0.0
    %113 = vmatprep.subr.mxu0 0.0
    %114 = vmatpush1.msra.mxu0 0.0
    %115 = vmatprep.subr.mxu0 0.0
    %116 = vmatpush1.msra.mxu0 0.0
    %117 = vmatprep.subr.mxu0 0.0
    %118 = vmatpush1.msra.mxu0 0.0
    %119 = vmatprep.mubr.f32.mxu0 0.0
    %120 = vmatmul.mubr.f32.gmra.mrb[0].mxu0 %v50
    %v121 = vpop.f32.mrb[0].mxu0
    %v122 = vadd.f32 0.0, %v121
    %v123 = vpop.f32.mrb[0].mxu0
    %124 = vmatprep.mubr.f32.mxu0 0.0
    %125 = vmatmul.mubr.f32.gmra.mrb[0].mxu0 %v53
    %v126 = vpop.f32.mrb[0].mxu0
    %v127 = vadd.f32 0.0, %v126
    %v128 = vpop.f32.mrb[0].mxu0
    %129 = vdwg.mxu0
    %v130 = vtanh.pop %v122
    %v131 = vtanh.pop %v127
    %vm132 = vcmask 130048
    %v134 = vsel %vm132, %v130, 0
    %v137 = vsel %vm132, %v131, 0
    %139 = vmatprep.subr.mxu0 0.0
    %140 = vmatpush1.msra.mxu0 %v44
    %141 = vmatprep.subr.mxu0 0.0
    %142 = vmatpush1.msra.mxu0 %v45
    %143 = vmatprep.subr.mxu0 0.0
    %144 = vmatpush1.msra.mxu0 0.0
    %145 = vmatprep.subr.mxu0 0.0
    %146 = vmatpush1.msra.mxu0 0.0
    %147 = vmatprep.subr.mxu0 0.0
    %148 = vmatpush1.msra.mxu0 0.0
    %149 = vmatprep.subr.mxu0 0.0
    %150 = vmatpush1.msra.mxu0 0.0
    %151 = vmatprep.subr.mxu0 0.0
    %152 = vmatpush1.msra.mxu0 0.0
    %153 = vmatprep.subr.mxu0 0.0
    %154 = vmatpush1.msra.mxu0 0.0
    %155 = vmatprep.subr.mxu0 0.0
    %156 = vmatpush1.msra.mxu0 0.0
    %157 = vmatprep.subr.mxu0 0.0
    %158 = vmatpush1.msra.mxu0 0.0
    %159 = vmatprep.subr.mxu0 0.0
    %160 = vmatpush1.msra.mxu0 0.0
    %161 = vmatprep.subr.mxu0 0.0
    %162 = vmatpush1.msra.mxu0 0.0
    %163 = vmatprep.subr.mxu0 0.0
    %164 = vmatpush1.msra.mxu0 0.0
    %165 = vmatprep.subr.mxu0 0.0
    %166 = vmatpush1.msra.mxu0 0.0
    %167 = vmatprep.subr.mxu0 0.0
    %168 = vmatpush1.msra.mxu0 0.0
    %169 = vmatprep.subr.mxu0 0.0
    %170 = vmatpush1.msra.mxu0 0.0
    %171 = vmatprep.subr.mxu0 0.0
    %172 = vmatpush1.msra.mxu0 0.0
    %173 = vmatprep.subr.mxu0 0.0
    %174 = vmatpush1.msra.mxu0 0.0
    %175 = vmatprep.subr.mxu0 0.0
    %176 = vmatpush1.msra.mxu0 0.0
    %177 = vmatprep.subr.mxu0 0.0
    %178 = vmatpush1.msra.mxu0 0.0
    %179 = vmatprep.subr.mxu0 0.0
    %180 = vmatpush1.msra.mxu0 0.0
    %181 = vmatprep.subr.mxu0 0.0
    %182 = vmatpush1.msra.mxu0 0.0
    %183 = vmatprep.subr.mxu0 0.0
    %184 = vmatpush1.msra.mxu0 0.0
    %185 = vmatprep.subr.mxu0 0.0
    %186 = vmatpush1.msra.mxu0 0.0
    %187 = vmatprep.subr.mxu0 0.0
    %188 = vmatpush1.msra.mxu0 0.0
    %189 = vmatprep.subr.mxu0 0.0
    %190 = vmatpush1.msra.mxu0 0.0
    %191 = vmatprep.subr.mxu0 0.0
    %192 = vmatpush1.msra.mxu0 0.0
    %193 = vmatprep.subr.mxu0 0.0
    %194 = vmatpush1.msra.mxu0 0.0
    %195 = vmatprep.subr.mxu0 0.0
    %196 = vmatpush1.msra.mxu0 0.0
    %197 = vmatprep.subr.mxu0 0.0
    %198 = vmatpush1.msra.mxu0 0.0
    %199 = vmatprep.subr.mxu0 0.0
    %200 = vmatpush1.msra.mxu0 0.0
    %201 = vmatprep.subr.mxu0 0.0
    %202 = vmatpush1.msra.mxu0 0.0
    %203 = vmatprep.mubr.f32.mxu0 0.0
    %204 = vmatmul.mubr.f32.gmra.mrb[0].mxu0 %v134
    %v205 = vpop.f32.mrb[0].mxu0
    %v206 = vadd.f32 0.0, %v205
    %v207 = vpop.f32.mrb[0].mxu0
    %208 = vmatprep.mubr.f32.mxu0 0.0
    %209 = vmatmul.mubr.f32.gmra.mrb[0].mxu0 %v137
    %v210 = vpop.f32.mrb[0].mxu0
    %v211 = vadd.f32 0.0, %v210
    %v212 = vpop.f32.mrb[0].mxu0
    %213 = vdwg.mxu0
    %vm214 = vcmask 64512
    %v215 = vsel %vm214, %v206, -inf
    %v216 = vrot.slane %v215, 4
    %v217 = vmax.f32 %v215, %v216
    %v218 = vrot.slane %v217, 2
    %v219 = vmax.f32 %v217, %v218
    %v220 = vrot.slane %v219, 1
    %v221 = vmax.f32 %v219, %v220
    %v222 = vsel %vm214, %v211, -inf
    %v223 = vrot.slane %v222, 4
    %v224 = vmax.f32 %v222, %v223
    %v225 = vrot.slane %v224, 2
    %v226 = vmax.f32 %v224, %v225
    %v227 = vrot.slane %v226, 1
    %v228 = vmax.f32 %v226, %v227
    %v229 = vsub.f32 %v206, %v221
    %v230 = vsub.f32 %v211, %v228
    %v231 = vmul.f32 %v229, 1.442695
    %v232 = vpow.pop %v231
    %v233 = vmul.f32 %v230, 1.442695
    %v234 = vpow.pop %v233
    %v235 = vsel %vm214, %v232, 0.0
    %v236 = vrot.slane %v235, 4
    %v237 = vadd.f32 %v235, %v236
    %v238 = vrot.slane %v237, 2
    %v239 = vadd.f32 %v237, %v238
    %v240 = vrot.slane %v239, 1
    %v241 = vadd.f32 %v239, %v240
    %v242 = vsel %vm214, %v234, 0.0
    %v243 = vrot.slane %v242, 4
    %v244 = vadd.f32 %v242, %v243
    %v245 = vrot.slane %v244, 2
    %v246 = vadd.f32 %v244, %v245
    %v247 = vrot.slane %v246, 1
    %v248 = vadd.f32 %v246, %v247
    %v249 = vrcp.pop %v241
    %v250 = vmul.f32 %v232, %v249
    %v251 = vrcp.pop %v248
    %v252 = vmul.f32 %v234, %v251
    %253 = vxpose.xlu0.b32.start [1/16] %v250, 128
    %254 = vxpose.xlu0.b32.cont [2/16] 0.0, 128
    %255 = vxpose.xlu0.b32.cont [3/16] 0.0, 128
    %256 = vxpose.xlu0.b32.cont [4/16] 0.0, 128
    %257 = vxpose.xlu0.b32.cont [5/16] 0.0, 128
    %258 = vxpose.xlu0.b32.cont [6/16] 0.0, 128
    %259 = vxpose.xlu0.b32.cont [7/16] 0.0, 128
    %260 = vxpose.xlu0.b32.cont [8/16] 0.0, 128
    %261 = vxpose.xlu0.b32.cont [9/16] 0.0, 128
    %262 = vxpose.xlu0.b32.cont [10/16] 0.0, 128
    %263 = vxpose.xlu0.b32.cont [11/16] 0.0, 128
    %264 = vxpose.xlu0.b32.cont [12/16] 0.0, 128
    %265 = vxpose.xlu0.b32.cont [13/16] 0.0, 128
    %266 = vxpose.xlu0.b32.cont [14/16] 0.0, 128
    %267 = vxpose.xlu0.b32.cont [15/16] 0.0, 128
    %268 = vxpose.xlu0.b32.end [16/16] 0.0, 128
    %v269 = vpop.trf.xlu0
    %v270 = vpop.trf.xlu0
    %v271 = vpop.trf.xlu0
    %v272 = vpop.trf.xlu0
    %v273 = vpop.trf.xlu0
    %v274 = vpop.trf.xlu0
    %v275 = vpop.trf.xlu0
    %v276 = vpop.trf.xlu0
    %v277 = vpop.trf.xlu0
    %v278 = vpop.trf.xlu0
    %v279 = vpop.trf.xlu0
    %v280 = vpop.trf.xlu0
    %v281 = vpop.trf.xlu0
    %v282 = vpop.trf.xlu0
    %v283 = vpop.trf.xlu0
    %v284 = vpop.trf.xlu0
    %285 = vxpose.xlu0.b32.start [1/16] %v252, 128
    %286 = vxpose.xlu0.b32.cont [2/16] 0.0, 128
    %287 = vxpose.xlu0.b32.cont [3/16] 0.0, 128
    %288 = vxpose.xlu0.b32.cont [4/16] 0.0, 128
    %289 = vxpose.xlu0.b32.cont [5/16] 0.0, 128
    %290 = vxpose.xlu0.b32.cont [6/16] 0.0, 128
    %291 = vxpose.xlu0.b32.cont [7/16] 0.0, 128
    %292 = vxpose.xlu0.b32.cont [8/16] 0.0, 128
    %293 = vxpose.xlu0.b32.cont [9/16] 0.0, 128
    %294 = vxpose.xlu0.b32.cont [10/16] 0.0, 128
    %295 = vxpose.xlu0.b32.cont [11/16] 0.0, 128
    %296 = vxpose.xlu0.b32.cont [12/16] 0.0, 128
    %297 = vxpose.xlu0.b32.cont [13/16] 0.0, 128
    %298 = vxpose.xlu0.b32.cont [14/16] 0.0, 128
    %299 = vxpose.xlu0.b32.cont [15/16] 0.0, 128
    %300 = vxpose.xlu0.b32.end [16/16] 0.0, 128
    %v301 = vpop.trf.xlu0
    %v302 = vpop.trf.xlu0
    %v303 = vpop.trf.xlu0
    %v304 = vpop.trf.xlu0
    %v305 = vpop.trf.xlu0
    %v306 = vpop.trf.xlu0
    %v307 = vpop.trf.xlu0
    %v308 = vpop.trf.xlu0
    %v309 = vpop.trf.xlu0
    %v310 = vpop.trf.xlu0
    %v311 = vpop.trf.xlu0
    %v312 = vpop.trf.xlu0
    %v313 = vpop.trf.xlu0
    %v314 = vpop.trf.xlu0
    %v315 = vpop.trf.xlu0
    %v316 = vpop.trf.xlu0
    %v318 = vsel %vm214, %v269, 0
    %320 = vmatprep.subr.mxu0 0.0
    %321 = vmatpush1.msra.mxu0 %v46
    %322 = vmatprep.subr.mxu0 0.0
    %323 = vmatpush1.msra.mxu0 0.0
    %324 = vmatprep.subr.mxu0 0.0
    %325 = vmatpush1.msra.mxu0 0.0
    %326 = vmatprep.subr.mxu0 0.0
    %327 = vmatpush1.msra.mxu0 0.0
    %328 = vmatprep.subr.mxu0 0.0
    %329 = vmatpush1.msra.mxu0 0.0
    %330 = vmatprep.subr.mxu0 0.0
    %331 = vmatpush1.msra.mxu0 0.0
    %332 = vmatprep.subr.mxu0 0.0
    %333 = vmatpush1.msra.mxu0 0.0
    %334 = vmatprep.subr.mxu0 0.0
    %335 = vmatpush1.msra.mxu0 0.0
    %336 = vmatprep.subr.mxu0 0.0
    %337 = vmatpush1.msra.mxu0 0.0
    %338 = vmatprep.subr.mxu0 0.0
    %339 = vmatpush1.msra.mxu0 0.0
    %340 = vmatprep.subr.mxu0 0.0
    %341 = vmatpush1.msra.mxu0 0.0
    %342 = vmatprep.subr.mxu0 0.0
    %343 = vmatpush1.msra.mxu0 0.0
    %344 = vmatprep.subr.mxu0 0.0
    %345 = vmatpush1.msra.mxu0 0.0
    %346 = vmatprep.subr.mxu0 0.0
    %347 = vmatpush1.msra.mxu0 0.0
    %348 = vmatprep.subr.mxu0 0.0
    %349 = vmatpush1.msra.mxu0 0.0
    %350 = vmatprep.subr.mxu0 0.0
    %351 = vmatpush1.msra.mxu0 0.0
    %352 = vmatprep.subr.mxu0 0.0
    %353 = vmatpush1.msra.mxu0 0.0
    %354 = vmatprep.subr.mxu0 0.0
    %355 = vmatpush1.msra.mxu0 0.0
    %356 = vmatprep.subr.mxu0 0.0
    %357 = vmatpush1.msra.mxu0 0.0
    %358 = vmatprep.subr.mxu0 0.0
    %359 = vmatpush1.msra.mxu0 0.0
    %360 = vmatprep.subr.mxu0 0.0
    %361 = vmatpush1.msra.mxu0 0.0
    %362 = vmatprep.subr.mxu0 0.0
    %363 = vmatpush1.msra.mxu0 0.0
    %364 = vmatprep.subr.mxu0 0.0
    %365 = vmatpush1.msra.mxu0 0.0
    %366 = vmatprep.subr.mxu0 0.0
    %367 = vmatpush1.msra.mxu0 0.0
    %368 = vmatprep.subr.mxu0 0.0
    %369 = vmatpush1.msra.mxu0 0.0
    %370 = vmatprep.subr.mxu0 0.0
    %371 = vmatpush1.msra.mxu0 0.0
    %372 = vmatprep.subr.mxu0 0.0
    %373 = vmatpush1.msra.mxu0 0.0
    %374 = vmatprep.subr.mxu0 0.0
    %375 = vmatpush1.msra.mxu0 0.0
    %376 = vmatprep.subr.mxu0 0.0
    %377 = vmatpush1.msra.mxu0 0.0
    %378 = vmatprep.subr.mxu0 0.0
    %379 = vmatpush1.msra.mxu0 0.0
    %380 = vmatprep.subr.mxu0 0.0
    %381 = vmatpush1.msra.mxu0 0.0
    %382 = vmatprep.subr.mxu0 0.0
    %383 = vmatpush1.msra.mxu0 0.0
    %384 = vmatprep.mubr.f32.mxu0 0.0
    %385 = vmatmul.mubr.f32.gmra.mrb[0].mxu0 %v318
    %v386 = vpop.f32.mrb[0].mxu0
    %v387 = vadd.f32 0.0, %v386
    %v388 = vpop.f32.mrb[0].mxu0
    %389 = vdwg.mxu0
    %v391 = vsel %vm214, %v301, 0
    %393 = vmatprep.subr.mxu0 0.0
    %394 = vmatpush1.msra.mxu0 %v47
    %395 = vmatprep.subr.mxu0 0.0
    %396 = vmatpush1.msra.mxu0 0.0
    %397 = vmatprep.subr.mxu0 0.0
    %398 = vmatpush1.msra.mxu0 0.0
    %399 = vmatprep.subr.mxu0 0.0
    %400 = vmatpush1.msra.mxu0 0.0
    %401 = vmatprep.subr.mxu0 0.0
    %402 = vmatpush1.msra.mxu0 0.0
    %403 = vmatprep.subr.mxu0 0.0
    %404 = vmatpush1.msra.mxu0 0.0
    %405 = vmatprep.subr.mxu0 0.0
    %406 = vmatpush1.msra.mxu0 0.0
    %407 = vmatprep.subr.mxu0 0.0
    %408 = vmatpush1.msra.mxu0 0.0
    %409 = vmatprep.subr.mxu0 0.0
    %410 = vmatpush1.msra.mxu0 0.0
    %411 = vmatprep.subr.mxu0 0.0
    %412 = vmatpush1.msra.mxu0 0.0
    %413 = vmatprep.subr.mxu0 0.0
    %414 = vmatpush1.msra.mxu0 0.0
    %415 = vmatprep.subr.mxu0 0.0
    %416 = vmatpush1.msra.mxu0 0.0
    %417 = vmatprep.subr.mxu0 0.0
    %418 = vmatpush1.msra.mxu0 0.0
    %419 = vmatprep.subr.mxu0 0.0
    %420 = vmatpush1.msra.mxu0 0.0
    %421 = vmatprep.subr.mxu0 0.0
    %422 = vmatpush1.msra.mxu0 0.0
    %423 = vmatprep.subr.mxu0 0.0
    %424 = vmatpush1.msra.mxu0 0.0
    %425 = vmatprep.subr.mxu0 0.0
    %426 = vmatpush1.msra.mxu0 0.0
    %427 = vmatprep.subr.mxu0 0.0
    %428 = vmatpush1.msra.mxu0 0.0
    %429 = vmatprep.subr.mxu0 0.0
    %430 = vmatpush1.msra.mxu0 0.0
    %431 = vmatprep.subr.mxu0 0.0
    %432 = vmatpush1.msra.mxu0 0.0
    %433 = vmatprep.subr.mxu0 0.0
    %434 = vmatpush1.msra.mxu0 0.0
    %435 = vmatprep.subr.mxu0 0.0
    %436 = vmatpush1.msra.mxu0 0.0
    %437 = vmatprep.subr.mxu0 0.0
    %438 = vmatpush1.msra.mxu0 0.0
    %439 = vmatprep.subr.mxu0 0.0
    %440 = vmatpush1.msra.mxu0 0.0
    %441 = vmatprep.subr.mxu0 0.0
    %442 = vmatpush1.msra.mxu0 0.0
    %443 = vmatprep.subr.mxu0 0.0
    %444 = vmatpush1.msra.mxu0 0.0
    %445 = vmatprep.subr.mxu0 0.0
    %446 = vmatpush1.msra.mxu0 0.0
    %447 = vmatprep.subr.mxu0 0.0
    %448 = vmatpush1.msra.mxu0 0.0
    %449 = vmatprep.subr.mxu0 0.0
    %450 = vmatpush1.msra.mxu0 0.0
    %451 = vmatprep.subr.mxu0 0.0
    %452 = vmatpush1.msra.mxu0 0.0
    %453 = vmatprep.subr.mxu0 0.0
    %454 = vmatpush1.msra.mxu0 0.0
    %455 = vmatprep.subr.mxu0 0.0
    %456 = vmatpush1.msra.mxu0 0.0
    %457 = vmatprep.mubr.f32.mxu0 0.0
    %458 = vmatmul.mubr.f32.gmra.mrb[0].mxu0 %v391
    %v459 = vpop.f32.mrb[0].mxu0
    %v460 = vadd.f32 0.0, %v459
    %v461 = vpop.f32.mrb[0].mxu0
    %462 = vdwg.mxu0
    %v463 = vld [vmem:[%s1] sm:$0xff]
    %v464 = vld [vmem:[%s1 + $0x8] sm:$0xff]
    %v466 = vsel %vm48, %v463, 0
    %v469 = vsel %vm48, %v464, 0
    %471 = vmatprep.subr.mxu0 0.0
    %472 = vmatpush1.msra.mxu0 %v40
    %473 = vmatprep.subr.mxu0 0.0
    %474 = vmatpush1.msra.mxu0 %v41
    %475 = vmatprep.subr.mxu0 0.0
    %476 = vmatpush1.msra.mxu0 %v42
    %477 = vmatprep.subr.mxu0 0.0
    %478 = vmatpush1.msra.mxu0 %v43
    %479 = vmatprep.subr.mxu0 0.0
    %480 = vmatpush1.msra.mxu0 0.0
    %481 = vmatprep.subr.mxu0 0.0
    %482 = vmatpush1.msra.mxu0 0.0
    %483 = vmatprep.subr.mxu0 0.0
    %484 = vmatpush1.msra.mxu0 0.0
    %485 = vmatprep.subr.mxu0 0.0
    %486 = vmatpush1.msra.mxu0 0.0
    %487 = vmatprep.subr.mxu0 0.0
    %488 = vmatpush1.msra.mxu0 0.0
    %489 = vmatprep.subr.mxu0 0.0
    %490 = vmatpush1.msra.mxu0 0.0
    %491 = vmatprep.subr.mxu0 0.0
    %492 = vmatpush1.msra.mxu0 0.0
    %493 = vmatprep.subr.mxu0 0.0
    %494 = vmatpush1.msra.mxu0 0.0
    %495 = vmatprep.subr.mxu0 0.0
    %496 = vmatpush1.msra.mxu0 0.0
    %497 = vmatprep.subr.mxu0 0.0
    %498 = vmatpush1.msra.mxu0 0.0
    %499 = vmatprep.subr.mxu0 0.0
    %500 = vmatpush1.msra.mxu0 0.0
    %501 = vmatprep.subr.mxu0 0.0
    %502 = vmatpush1.msra.mxu0 0.0
    %503 = vmatprep.subr.mxu0 0.0
    %504 = vmatpush1.msra.mxu0 0.0
    %505 = vmatprep.subr.mxu0 0.0
    %506 = vmatpush1.msra.mxu0 0.0
    %507 = vmatprep.subr.mxu0 0.0
    %508 = vmatpush1.msra.mxu0 0.0
    %509 = vmatprep.subr.mxu0 0.0
    %510 = vmatpush1.msra.mxu0 0.0
    %511 = vmatprep.subr.mxu0 0.0
    %512 = vmatpush1.msra.mxu0 0.0
    %513 = vmatprep.subr.mxu0 0.0
    %514 = vmatpush1.msra.mxu0 0.0
    %515 = vmatprep.subr.mxu0 0.0
    %516 = vmatpush1.msra.mxu0 0.0
    %517 = vmatprep.subr.mxu0 0.0
    %518 = vmatpush1.msra.mxu0 0.0
    %519 = vmatprep.subr.mxu0 0.0
    %520 = vmatpush1.msra.mxu0 0.0
    %521 = vmatprep.subr.mxu0 0.0
    %522 = vmatpush1.msra.mxu0 0.0
    %523 = vmatprep.subr.mxu0 0.0
    %524 = vmatpush1.msra.mxu0 0.0
    %525 = vmatprep.subr.mxu0 0.0
    %526 = vmatpush1.msra.mxu0 0.0
    %527 = vmatprep.subr.mxu0 0.0
    %528 = vmatpush1.msra.mxu0 0.0
    %529 = vmatprep.subr.mxu0 0.0
    %530 = vmatpush1.msra.mxu0 0.0
    %531 = vmatprep.subr.mxu0 0.0
    %532 = vmatpush1.msra.mxu0 0.0
    %533 = vmatprep.subr.mxu0 0.0
    %534 = vmatpush1.msra.mxu0 0.0
    %535 = vmatprep.mubr.f32.mxu0 0.0
    %536 = vmatmul.mubr.f32.gmra.mrb[0].mxu0 %v466
    %v537 = vpop.f32.mrb[0].mxu0
    %v538 = vadd.f32 0.0, %v537
    %v539 = vpop.f32.mrb[0].mxu0
    %540 = vmatprep.mubr.f32.mxu0 0.0
    %541 = vmatmul.mubr.f32.gmra.mrb[0].mxu0 %v469
    %v542 = vpop.f32.mrb[0].mxu0
    %v543 = vadd.f32 0.0, %v542
    %v544 = vpop.f32.mrb[0].mxu0
    %545 = vdwg.mxu0
    %v546 = vtanh.pop %v538
    %v547 = vtanh.pop %v543
    %v549 = vsel %vm132, %v546, 0
    %v552 = vsel %vm132, %v547, 0
    %554 = vmatprep.subr.mxu0 0.0
    %555 = vmatpush1.msra.mxu0 %v44
    %556 = vmatprep.subr.mxu0 0.0
    %557 = vmatpush1.msra.mxu0 %v45
    %558 = vmatprep.subr.mxu0 0.0
    %559 = vmatpush1.msra.mxu0 0.0
    %560 = vmatprep.subr.mxu0 0.0
    %561 = vmatpush1.msra.mxu0 0.0
    %562 = vmatprep.subr.mxu0 0.0
    %563 = vmatpush1.msra.mxu0 0.0
    %564 = vmatprep.subr.mxu0 0.0
    %565 = vmatpush1.msra.mxu0 0.0
    %566 = vmatprep.subr.mxu0 0.0
    %567 = vmatpush1.msra.mxu0 0.0
    %568 = vmatprep.subr.mxu0 0.0
    %569 = vmatpush1.msra.mxu0 0.0
    %570 = vmatprep.subr.mxu0 0.0
    %571 = vmatpush1.msra.mxu0 0.0
    %572 = vmatprep.subr.mxu0 0.0
    %573 = vmatpush1.msra.mxu0 0.0
    %574 = vmatprep.subr.mxu0 0.0
    %575 = vmatpush1.msra.mxu0 0.0
    %576 = vmatprep.subr.mxu0 0.0
    %577 = vmatpush1.msra.mxu0 0.0
    %578 = vmatprep.subr.mxu0 0.0
    %579 = vmatpush1.msra.mxu0 0.0
    %580 = vmatprep.subr.mxu0 0.0
    %581 = vmatpush1.msra.mxu0 0.0
    %582 = vmatprep.subr.mxu0 0.0
    %583 = vmatpush1.msra.mxu0 0.0
    %584 = vmatprep.subr.mxu0 0.0
    %585 = vmatpush1.msra.mxu0 0.0
    %586 = vmatprep.subr.mxu0 0.0
    %587 = vmatpush1.msra.mxu0 0.0
    %588 = vmatprep.subr.mxu0 0.0
    %589 = vmatpush1.msra.mxu0 0.0
    %590 = vmatprep.subr.mxu0 0.0
    %591 = vmatpush1.msra.mxu0 0.0
    %592 = vmatprep.subr.mxu0 0.0
    %593 = vmatpush1.msra.mxu0 0.0
    %594 = vmatprep.subr.mxu0 0.0
    %595 = vmatpush1.msra.mxu0 0.0
    %596 = vmatprep.subr.mxu0 0.0
    %597 = vmatpush1.msra.mxu0 0.0
    %598 = vmatprep.subr.mxu0 0.0
    %599 = vmatpush1.msra.mxu0 0.0
    %600 = vmatprep.subr.mxu0 0.0
    %601 = vmatpush1.msra.mxu0 0.0
    %602 = vmatprep.subr.mxu0 0.0
    %603 = vmatpush1.msra.mxu0 0.0
    %604 = vmatprep.subr.mxu0 0.0
    %605 = vmatpush1.msra.mxu0 0.0
    %606 = vmatprep.subr.mxu0 0.0
    %607 = vmatpush1.msra.mxu0 0.0
    %608 = vmatprep.subr.mxu0 0.0
    %609 = vmatpush1.msra.mxu0 0.0
    %610 = vmatprep.subr.mxu0 0.0
    %611 = vmatpush1.msra.mxu0 0.0
    %612 = vmatprep.subr.mxu0 0.0
    %613 = vmatpush1.msra.mxu0 0.0
    %614 = vmatprep.subr.mxu0 0.0
    %615 = vmatpush1.msra.mxu0 0.0
    %616 = vmatprep.subr.mxu0 0.0
    %617 = vmatpush1.msra.mxu0 0.0
    %618 = vmatprep.mubr.f32.mxu0 0.0
    %619 = vmatmul.mubr.f32.gmra.mrb[0].mxu0 %v549
    %v620 = vpop.f32.mrb[0].mxu0
    %v621 = vadd.f32 0.0, %v620
    %v622 = vpop.f32.mrb[0].mxu0
    %623 = vmatprep.mubr.f32.mxu0 0.0
    %624 = vmatmul.mubr.f32.gmra.mrb[0].mxu0 %v552
    %v625 = vpop.f32.mrb[0].mxu0
    %v626 = vadd.f32 0.0, %v625
    %v627 = vpop.f32.mrb[0].mxu0
    %628 = vdwg.mxu0
    %v629 = vsel %vm214, %v621, -inf
    %v630 = vrot.slane %v629, 4
    %v631 = vmax.f32 %v629, %v630
    %v632 = vrot.slane %v631, 2
    %v633 = vmax.f32 %v631, %v632
    %v634 = vrot.slane %v633, 1
    %v635 = vmax.f32 %v633, %v634
    %v636 = vsel %vm214, %v626, -inf
    %v637 = vrot.slane %v636, 4
    %v638 = vmax.f32 %v636, %v637
    %v639 = vrot.slane %v638, 2
    %v640 = vmax.f32 %v638, %v639
    %v641 = vrot.slane %v640, 1
    %v642 = vmax.f32 %v640, %v641
    %v643 = vsub.f32 %v621, %v635
    %v644 = vsub.f32 %v626, %v642
    %v645 = vmul.f32 %v643, 1.442695
    %v646 = vpow.pop %v645
    %v647 = vmul.f32 %v644, 1.442695
    %v648 = vpow.pop %v647
    %v649 = vsel %vm214, %v646, 0.0
    %v650 = vrot.slane %v649, 4
    %v651 = vadd.f32 %v649, %v650
    %v652 = vrot.slane %v651, 2
    %v653 = vadd.f32 %v651, %v652
    %v654 = vrot.slane %v653, 1
    %v655 = vadd.f32 %v653, %v654
    %v656 = vsel %vm214, %v648, 0.0
    %v657 = vrot.slane %v656, 4
    %v658 = vadd.f32 %v656, %v657
    %v659 = vrot.slane %v658, 2
    %v660 = vadd.f32 %v658, %v659
    %v661 = vrot.slane %v660, 1
    %v662 = vadd.f32 %v660, %v661
    %v663 = vrcp.pop %v655
    %v664 = vmul.f32 %v646, %v663
    %v665 = vrcp.pop %v662
    %v666 = vmul.f32 %v648, %v665
    %667 = vxpose.xlu0.b32.start [1/16] %v664, 128
    %668 = vxpose.xlu0.b32.cont [2/16] 0.0, 128
    %669 = vxpose.xlu0.b32.cont [3/16] 0.0, 128
    %670 = vxpose.xlu0.b32.cont [4/16] 0.0, 128
    %671 = vxpose.xlu0.b32.cont [5/16] 0.0, 128
    %672 = vxpose.xlu0.b32.cont [6/16] 0.0, 128
    %673 = vxpose.xlu0.b32.cont [7/16] 0.0, 128
    %674 = vxpose.xlu0.b32.cont [8/16] 0.0, 128
    %675 = vxpose.xlu0.b32.cont [9/16] 0.0, 128
    %676 = vxpose.xlu0.b32.cont [10/16] 0.0, 128
    %677 = vxpose.xlu0.b32.cont [11/16] 0.0, 128
    %678 = vxpose.xlu0.b32.cont [12/16] 0.0, 128
    %679 = vxpose.xlu0.b32.cont [13/16] 0.0, 128
    %680 = vxpose.xlu0.b32.cont [14/16] 0.0, 128
    %681 = vxpose.xlu0.b32.cont [15/16] 0.0, 128
    %682 = vxpose.xlu0.b32.end [16/16] 0.0, 128
    %v683 = vpop.trf.xlu0
    %v684 = vpop.trf.xlu0
    %v685 = vpop.trf.xlu0
    %v686 = vpop.trf.xlu0
    %v687 = vpop.trf.xlu0
    %v688 = vpop.trf.xlu0
    %v689 = vpop.trf.xlu0
    %v690 = vpop.trf.xlu0
    %v691 = vpop.trf.xlu0
    %v692 = vpop.trf.xlu0
    %v693 = vpop.trf.xlu0
    %v694 = vpop.trf.xlu0
    %v695 = vpop.trf.xlu0
    %v696 = vpop.trf.xlu0
    %v697 = vpop.trf.xlu0
    %v698 = vpop.trf.xlu0
    %699 = vxpose.xlu0.b32.start [1/16] %v666, 128
    %700 = vxpose.xlu0.b32.cont [2/16] 0.0, 128
    %701 = vxpose.xlu0.b32.cont [3/16] 0.0, 128
    %702 = vxpose.xlu0.b32.cont [4/16] 0.0, 128
    %703 = vxpose.xlu0.b32.cont [5/16] 0.0, 128
    %704 = vxpose.xlu0.b32.cont [6/16] 0.0, 128
    %705 = vxpose.xlu0.b32.cont [7/16] 0.0, 128
    %706 = vxpose.xlu0.b32.cont [8/16] 0.0, 128
    %707 = vxpose.xlu0.b32.cont [9/16] 0.0, 128
    %708 = vxpose.xlu0.b32.cont [10/16] 0.0, 128
    %709 = vxpose.xlu0.b32.cont [11/16] 0.0, 128
    %710 = vxpose.xlu0.b32.cont [12/16] 0.0, 128
    %711 = vxpose.xlu0.b32.cont [13/16] 0.0, 128
    %712 = vxpose.xlu0.b32.cont [14/16] 0.0, 128
    %713 = vxpose.xlu0.b32.cont [15/16] 0.0, 128
    %714 = vxpose.xlu0.b32.end [16/16] 0.0, 128
    %v715 = vpop.trf.xlu0
    %v716 = vpop.trf.xlu0
    %v717 = vpop.trf.xlu0
    %v718 = vpop.trf.xlu0
    %v719 = vpop.trf.xlu0
    %v720 = vpop.trf.xlu0
    %v721 = vpop.trf.xlu0
    %v722 = vpop.trf.xlu0
    %v723 = vpop.trf.xlu0
    %v724 = vpop.trf.xlu0
    %v725 = vpop.trf.xlu0
    %v726 = vpop.trf.xlu0
    %v727 = vpop.trf.xlu0
    %v728 = vpop.trf.xlu0
    %v729 = vpop.trf.xlu0
    %v730 = vpop.trf.xlu0
    %v732 = vsel %vm214, %v683, 0
    %734 = vmatprep.subr.mxu0 0.0
    %735 = vmatpush1.msra.mxu0 %v463
    %736 = vmatprep.subr.mxu0 0.0
    %737 = vmatpush1.msra.mxu0 0.0
    %738 = vmatprep.subr.mxu0 0.0
    %739 = vmatpush1.msra.mxu0 0.0
    %740 = vmatprep.subr.mxu0 0.0
    %741 = vmatpush1.msra.mxu0 0.0
    %742 = vmatprep.subr.mxu0 0.0
    %743 = vmatpush1.msra.mxu0 0.0
    %744 = vmatprep.subr.mxu0 0.0
    %745 = vmatpush1.msra.mxu0 0.0
    %746 = vmatprep.subr.mxu0 0.0
    %747 = vmatpush1.msra.mxu0 0.0
    %748 = vmatprep.subr.mxu0 0.0
    %749 = vmatpush1.msra.mxu0 0.0
    %750 = vmatprep.subr.mxu0 0.0
    %751 = vmatpush1.msra.mxu0 0.0
    %752 = vmatprep.subr.mxu0 0.0
    %753 = vmatpush1.msra.mxu0 0.0
    %754 = vmatprep.subr.mxu0 0.0
    %755 = vmatpush1.msra.mxu0 0.0
    %756 = vmatprep.subr.mxu0 0.0
    %757 = vmatpush1.msra.mxu0 0.0
    %758 = vmatprep.subr.mxu0 0.0
    %759 = vmatpush1.msra.mxu0 0.0
    %760 = vmatprep.subr.mxu0 0.0
    %761 = vmatpush1.msra.mxu0 0.0
    %762 = vmatprep.subr.mxu0 0.0
    %763 = vmatpush1.msra.mxu0 0.0
    %764 = vmatprep.subr.mxu0 0.0
    %765 = vmatpush1.msra.mxu0 0.0
    %766 = vmatprep.subr.mxu0 0.0
    %767 = vmatpush1.msra.mxu0 0.0
    %768 = vmatprep.subr.mxu0 0.0
    %769 = vmatpush1.msra.mxu0 0.0
    %770 = vmatprep.subr.mxu0 0.0
    %771 = vmatpush1.msra.mxu0 0.0
    %772 = vmatprep.subr.mxu0 0.0
    %773 = vmatpush1.msra.mxu0 0.0
    %774 = vmatprep.subr.mxu0 0.0
    %775 = vmatpush1.msra.mxu0 0.0
    %776 = vmatprep.subr.mxu0 0.0
    %777 = vmatpush1.msra.mxu0 0.0
    %778 = vmatprep.subr.mxu0 0.0
    %779 = vmatpush1.msra.mxu0 0.0
    %780 = vmatprep.subr.mxu0 0.0
    %781 = vmatpush1.msra.mxu0 0.0
    %782 = vmatprep.subr.mxu0 0.0
    %783 = vmatpush1.msra.mxu0 0.0
    %784 = vmatprep.subr.mxu0 0.0
    %785 = vmatpush1.msra.mxu0 0.0
    %786 = vmatprep.subr.mxu0 0.0
    %787 = vmatpush1.msra.mxu0 0.0
    %788 = vmatprep.subr.mxu0 0.0
    %789 = vmatpush1.msra.mxu0 0.0
    %790 = vmatprep.subr.mxu0 0.0
    %791 = vmatpush1.msra.mxu0 0.0
    %792 = vmatprep.subr.mxu0 0.0
    %793 = vmatpush1.msra.mxu0 0.0
    %794 = vmatprep.subr.mxu0 0.0
    %795 = vmatpush1.msra.mxu0 0.0
    %796 = vmatprep.subr.mxu0 0.0
    %797 = vmatpush1.msra.mxu0 0.0
    %798 = vmatprep.mubr.f32.mxu0 0.0
    %799 = vmatmul.mubr.f32.gmra.mrb[0].mxu0 %v732
    %v800 = vpop.f32.mrb[0].mxu0
    %v801 = vadd.f32 0.0, %v800
    %v802 = vpop.f32.mrb[0].mxu0
    %803 = vdwg.mxu0
    %v805 = vsel %vm214, %v715, 0
    %807 = vmatprep.subr.mxu0 0.0
    %808 = vmatpush1.msra.mxu0 %v464
    %809 = vmatprep.subr.mxu0 0.0
    %810 = vmatpush1.msra.mxu0 0.0
    %811 = vmatprep.subr.mxu0 0.0
    %812 = vmatpush1.msra.mxu0 0.0
    %813 = vmatprep.subr.mxu0 0.0
    %814 = vmatpush1.msra.mxu0 0.0
    %815 = vmatprep.subr.mxu0 0.0
    %816 = vmatpush1.msra.mxu0 0.0
    %817 = vmatprep.subr.mxu0 0.0
    %818 = vmatpush1.msra.mxu0 0.0
    %819 = vmatprep.subr.mxu0 0.0
    %820 = vmatpush1.msra.mxu0 0.0
    %821 = vmatprep.subr.mxu0 0.0
    %822 = vmatpush1.msra.mxu0 0.0
    %823 = vmatprep.subr.mxu0 0.0
    %824 = vmatpush1.msra.mxu0 0.0
    %825 = vmatprep.subr.mxu0 0.0
    %826 = vmatpush1.msra.mxu0 0.0
    %827 = vmatprep.subr.mxu0 0.0
    %828 = vmatpush1.msra.mxu0 0.0
    %829 = vmatprep.subr.mxu0 0.0
    %830 = vmatpush1.msra.mxu0 0.0
    %831 = vmatprep.subr.mxu0 0.0
    %832 = vmatpush1.msra.mxu0 0.0
    %833 = vmatprep.subr.mxu0 0.0
    %834 = vmatpush1.msra.mxu0 0.0
    %835 = vmatprep.subr.mxu0 0.0
    %836 = vmatpush1.msra.mxu0 0.0
    %837 = vmatprep.subr.mxu0 0.0
    %838 = vmatpush1.msra.mxu0 0.0
    %839 = vmatprep.subr.mxu0 0.0
    %840 = vmatpush1.msra.mxu0 0.0
    %841 = vmatprep.subr.mxu0 0.0
    %842 = vmatpush1.msra.mxu0 0.0
    %843 = vmatprep.subr.mxu0 0.0
    %844 = vmatpush1.msra.mxu0 0.0
    %845 = vmatprep.subr.mxu0 0.0
    %846 = vmatpush1.msra.mxu0 0.0
    %847 = vmatprep.subr.mxu0 0.0
    %848 = vmatpush1.msra.mxu0 0.0
    %849 = vmatprep.subr.mxu0 0.0
    %850 = vmatpush1.msra.mxu0 0.0
    %851 = vmatprep.subr.mxu0 0.0
    %852 = vmatpush1.msra.mxu0 0.0
    %853 = vmatprep.subr.mxu0 0.0
    %854 = vmatpush1.msra.mxu0 0.0
    %855 = vmatprep.subr.mxu0 0.0
    %856 = vmatpush1.msra.mxu0 0.0
    %857 = vmatprep.subr.mxu0 0.0
    %858 = vmatpush1.msra.mxu0 0.0
    %859 = vmatprep.subr.mxu0 0.0
    %860 = vmatpush1.msra.mxu0 0.0
    %861 = vmatprep.subr.mxu0 0.0
    %862 = vmatpush1.msra.mxu0 0.0
    %863 = vmatprep.subr.mxu0 0.0
    %864 = vmatpush1.msra.mxu0 0.0
    %865 = vmatprep.subr.mxu0 0.0
    %866 = vmatpush1.msra.mxu0 0.0
    %867 = vmatprep.subr.mxu0 0.0
    %868 = vmatpush1.msra.mxu0 0.0
    %869 = vmatprep.subr.mxu0 0.0
    %870 = vmatpush1.msra.mxu0 0.0
    %871 = vmatprep.mubr.f32.mxu0 0.0
    %872 = vmatmul.mubr.f32.gmra.mrb[0].mxu0 %v805
    %v873 = vpop.f32.mrb[0].mxu0
    %v874 = vadd.f32 0.0, %v873
    %v875 = vpop.f32.mrb[0].mxu0
    %876 = vdwg.mxu0
    %v877 = vld [vmem:[%s4] sm:$0xff]
    %v878 = vld [vmem:[%s4 + $0x8] sm:$0xff]
    %v879 = vld [vmem:[%s4 + $0x10] sm:$0xff]
    %v880 = vld [vmem:[%s4 + $0x18] sm:$0xff]
    %v882 = vsel %vm48, %v387, 0
    %v885 = vsel %vm48, %v460, 0
    %887 = vmatprep.subr.mxu0 0.0
    %888 = vmatpush1.msra.mxu0 %v877
    %889 = vmatprep.subr.mxu0 0.0
    %890 = vmatpush1.msra.mxu0 %v878
    %891 = vmatprep.subr.mxu0 0.0
    %892 = vmatpush1.msra.mxu0 %v879
    %893 = vmatprep.subr.mxu0 0.0
    %894 = vmatpush1.msra.mxu0 %v880
    %895 = vmatprep.subr.mxu0 0.0
    %896 = vmatpush1.msra.mxu0 0.0
    %897 = vmatprep.subr.mxu0 0.0
    %898 = vmatpush1.msra.mxu0 0.0
    %899 = vmatprep.subr.mxu0 0.0
    %900 = vmatpush1.msra.mxu0 0.0
    %901 = vmatprep.subr.mxu0 0.0
    %902 = vmatpush1.msra.mxu0 0.0
    %903 = vmatprep.subr.mxu0 0.0
    %904 = vmatpush1.msra.mxu0 0.0
    %905 = vmatprep.subr.mxu0 0.0
    %906 = vmatpush1.msra.mxu0 0.0
    %907 = vmatprep.subr.mxu0 0.0
    %908 = vmatpush1.msra.mxu0 0.0
    %909 = vmatprep.subr.mxu0 0.0
    %910 = vmatpush1.msra.mxu0 0.0
    %911 = vmatprep.subr.mxu0 0.0
    %912 = vmatpush1.msra.mxu0 0.0
    %913 = vmatprep.subr.mxu0 0.0
    %914 = vmatpush1.msra.mxu0 0.0
    %915 = vmatprep.subr.mxu0 0.0
    %916 = vmatpush1.msra.mxu0 0.0
    %917 = vmatprep.subr.mxu0 0.0
    %918 = vmatpush1.msra.mxu0 0.0
    %919 = vmatprep.subr.mxu0 0.0
    %920 = vmatpush1.msra.mxu0 0.0
    %921 = vmatprep.subr.mxu0 0.0
    %922 = vmatpush1.msra.mxu0 0.0
    %923 = vmatprep.subr.mxu0 0.0
    %924 = vmatpush1.msra.mxu0 0.0
    %925 = vmatprep.subr.mxu0 0.0
    %926 = vmatpush1.msra.mxu0 0.0
    %927 = vmatprep.subr.mxu0 0.0
    %928 = vmatpush1.msra.mxu0 0.0
    %929 = vmatprep.subr.mxu0 0.0
    %930 = vmatpush1.msra.mxu0 0.0
    %931 = vmatprep.subr.mxu0 0.0
    %932 = vmatpush1.msra.mxu0 0.0
    %933 = vmatprep.subr.mxu0 0.0
    %934 = vmatpush1.msra.mxu0 0.0
    %935 = vmatprep.subr.mxu0 0.0
    %936 = vmatpush1.msra.mxu0 0.0
    %937 = vmatprep.subr.mxu0 0.0
    %938 = vmatpush1.msra.mxu0 0.0
    %939 = vmatprep.subr.mxu0 0.0
    %940 = vmatpush1.msra.mxu0 0.0
    %941 = vmatprep.subr.mxu0 0.0
    %942 = vmatpush1.msra.mxu0 0.0
    %943 = vmatprep.subr.mxu0 0.0
    %944 = vmatpush1.msra.mxu0 0.0
    %945 = vmatprep.subr.mxu0 0.0
    %946 = vmatpush1.msra.mxu0 0.0
    %947 = vmatprep.subr.mxu0 0.0
    %948 = vmatpush1.msra.mxu0 0.0
    %949 = vmatprep.subr.mxu0 0.0
    %950 = vmatpush1.msra.mxu0 0.0
    %951 = vmatprep.mubr.f32.mxu0 0.0
    %952 = vmatmul.mubr.f32.gmra.mrb[0].mxu0 %v882
    %v953 = vpop.f32.mrb[0].mxu0
    %v954 = vadd.f32 0.0, %v953
    %v955 = vpop.f32.mrb[0].mxu0
    %956 = vmatprep.mubr.f32.mxu0 0.0
    %957 = vmatmul.mubr.f32.gmra.mrb[0].mxu0 %v885
    %v958 = vpop.f32.mrb[0].mxu0
    %v959 = vadd.f32 0.0, %v958
    %v960 = vpop.f32.mrb[0].mxu0
    %961 = vdwg.mxu0
    %v962 = vld [vmem:[%s5] sm:$0xff]
    %v963 = vld [vmem:[%s5 + $0x8] sm:$0xff]
    %v964 = vld [vmem:[%s5 + $0x10] sm:$0xff]
    %v965 = vld [vmem:[%s5 + $0x18] sm:$0xff]
    %v967 = vsel %vm48, %v801, 0
    %v970 = vsel %vm48, %v874, 0
    %972 = vmatprep.subr.mxu0 0.0
    %973 = vmatpush1.msra.mxu0 %v962
    %974 = vmatprep.subr.mxu0 0.0
    %975 = vmatpush1.msra.mxu0 %v963
    %976 = vmatprep.subr.mxu0 0.0
    %977 = vmatpush1.msra.mxu0 %v964
    %978 = vmatprep.subr.mxu0 0.0
    %979 = vmatpush1.msra.mxu0 %v965
    %980 = vmatprep.subr.mxu0 0.0
    %981 = vmatpush1.msra.mxu0 0.0
    %982 = vmatprep.subr.mxu0 0.0
    %983 = vmatpush1.msra.mxu0 0.0
    %984 = vmatprep.subr.mxu0 0.0
    %985 = vmatpush1.msra.mxu0 0.0
    %986 = vmatprep.subr.mxu0 0.0
    %987 = vmatpush1.msra.mxu0 0.0
    %988 = vmatprep.subr.mxu0 0.0
    %989 = vmatpush1.msra.mxu0 0.0
    %990 = vmatprep.subr.mxu0 0.0
    %991 = vmatpush1.msra.mxu0 0.0
    %992 = vmatprep.subr.mxu0 0.0
    %993 = vmatpush1.msra.mxu0 0.0
    %994 = vmatprep.subr.mxu0 0.0
    %995 = vmatpush1.msra.mxu0 0.0
    %996 = vmatprep.subr.mxu0 0.0
    %997 = vmatpush1.msra.mxu0 0.0
    %998 = vmatprep.subr.mxu0 0.0
    %999 = vmatpush1.msra.mxu0 0.0
    %1000 = vmatprep.subr.mxu0 0.0
    %1001 = vmatpush1.msra.mxu0 0.0
    %1002 = vmatprep.subr.mxu0 0.0
    %1003 = vmatpush1.msra.mxu0 0.0
    %1004 = vmatprep.subr.mxu0 0.0
    %1005 = vmatpush1.msra.mxu0 0.0
    %1006 = vmatprep.subr.mxu0 0.0
    %1007 = vmatpush1.msra.mxu0 0.0
    %1008 = vmatprep.subr.mxu0 0.0
    %1009 = vmatpush1.msra.mxu0 0.0
    %1010 = vmatprep.subr.mxu0 0.0
    %1011 = vmatpush1.msra.mxu0 0.0
    %1012 = vmatprep.subr.mxu0 0.0
    %1013 = vmatpush1.msra.mxu0 0.0
    %1014 = vmatprep.subr.mxu0 0.0
    %1015 = vmatpush1.msra.mxu0 0.0
    %1016 = vmatprep.subr.mxu0 0.0
    %1017 = vmatpush1.msra.mxu0 0.0
    %1018 = vmatprep.subr.mxu0 0.0
    %1019 = vmatpush1.msra.mxu0 0.0
    %1020 = vmatprep.subr.mxu0 0.0
    %1021 = vmatpush1.msra.mxu0 0.0
    %1022 = vmatprep.subr.mxu0 0.0
    %1023 = vmatpush1.msra.mxu0 0.0
    %1024 = vmatprep.subr.mxu0 0.0
    %1025 = vmatpush1.msra.mxu0 0.0
    %1026 = vmatprep.subr.mxu0 0.0
    %1027 = vmatpush1.msra.mxu0 0.0
    %1028 = vmatprep.subr.mxu0 0.0
    %1029 = vmatpush1.msra.mxu0 0.0
    %1030 = vmatprep.subr.mxu0 0.0
    %1031 = vmatpush1.msra.mxu0 0.0
    %1032 = vmatprep.subr.mxu0 0.0
    %1033 = vmatpush1.msra.mxu0 0.0
    %1034 = vmatprep.subr.mxu0 0.0
    %1035 = vmatpush1.msra.mxu0 0.0
    %1036 = vmatprep.mubr.f32.mxu0 0.0
    %1037 = vmatmul.mubr.f32.gmra.mrb[0].mxu0 %v967
    %v1038 = vpop.f32.mrb[0].mxu0
    %v1039 = vadd.f32 0.0, %v1038
    %v1040 = vpop.f32.mrb[0].mxu0
    %1041 = vmatprep.mubr.f32.mxu0 0.0
    %1042 = vmatmul.mubr.f32.gmra.mrb[0].mxu0 %v970
    %v1043 = vpop.f32.mrb[0].mxu0
    %v1044 = vadd.f32 0.0, %v1043
    %v1045 = vpop.f32.mrb[0].mxu0
    %1046 = vdwg.mxu0
    %v1047 = vmul.f32 %v954, %v1039
    %v1048 = vmul.f32 %v959, %v1044
    %v1051 = vrot.slane %v1048, 7
    %vm1052 = vcmask 1041409
    %v1053 = vsel %vm1052, %v1051, %v1047
    %v1055 = vrot.slane %v1047, 1
    %v1056 = vsel %vm1052, %v1048, %v1055
    %1057 = vrot.lane.b32.xlu0 %v1056, 32
    %v1058 = vpop.permute.xlu0 %1057
    %v1060 = vrot.slane %v1047, 2
    %v1061 = vrot.slane %v1048, 1
    %v1062 = vsel %vm1052, %v1061, %v1060
    %1063 = vrot.lane.b32.xlu0 %v1062, 64
    %v1064 = vpop.permute.xlu0 %1063
    %v1066 = vrot.slane %v1047, 3
    %v1067 = vrot.slane %v1048, 2
    %v1068 = vsel %vm1052, %v1067, %v1066
    %1069 = vrot.lane.b32.xlu0 %v1068, 96
    %v1070 = vpop.permute.xlu0 %1069
    %v1072 = vrot.slane %v1047, 4
    %v1073 = vrot.slane %v1048, 3
    %v1074 = vsel %vm1052, %v1073, %v1072
    %v1076 = vrot.slane %v1047, 5
    %v1077 = vrot.slane %v1048, 4
    %v1078 = vsel %vm1052, %v1077, %v1076
    %1079 = vrot.lane.b32.xlu0 %v1078, 32
    %v1080 = vpop.permute.xlu0 %1079
    %v1082 = vrot.slane %v1047, 6
    %v1083 = vrot.slane %v1048, 5
    %v1084 = vsel %vm1052, %v1083, %v1082
    %1085 = vrot.lane.b32.xlu0 %v1084, 64
    %v1086 = vpop.permute.xlu0 %1085
    %v1088 = vrot.slane %v1047, 7
    %v1089 = vrot.slane %v1048, 6
    %v1090 = vsel %vm1052, %v1089, %v1088
    %1091 = vrot.lane.b32.xlu0 %v1090, 96
    %v1092 = vpop.permute.xlu0 %1091
    %v1094 = vsel %vm48, %v1053, %v1058
    %vm1095 = vcmask 523264
    %v1096 = vsel %vm1095, %v1094, %v1064
    %vm1097 = vcmask 785408
    %v1098 = vsel %vm1097, %v1096, %v1070
    %v1099 = vsel %vm48, %v1074, %v1080
    %v1100 = vsel %vm1095, %v1099, %v1086
    %v1101 = vsel %vm1097, %v1100, %v1092
    %v1102 = vld [vmem:[%s6] sm:$0xff]
    %v1103 = vld [vmem:[%s6 + $0x8] sm:$0xff]
    %v1104 = vld [vmem:[%s6 + $0x10] sm:$0xff]
    %v1105 = vld [vmem:[%s6 + $0x18] sm:$0xff]
    %v1106 = vld [vmem:[%s6 + $0x20] sm:$0xff]
    %v1107 = vld [vmem:[%s6 + $0x28] sm:$0xff]
    %v1108 = vld [vmem:[%s6 + $0x30] sm:$0xff]
    %v1109 = vld [vmem:[%s6 + $0x38] sm:$0xff]
    %v1110 = vld [vmem:[%s6 + $0x40] sm:$0xff]
    %v1111 = vld [vmem:[%s6 + $0x48] sm:$0xff]
    %v1112 = vld [vmem:[%s6 + $0x50] sm:$0xff]
    %v1113 = vld [vmem:[%s6 + $0x58] sm:$0xff]
    %v1114 = vld [vmem:[%s6 + $0x60] sm:$0xff]
    %v1115 = vld [vmem:[%s6 + $0x68] sm:$0xff]
    %v1116 = vld [vmem:[%s6 + $0x70] sm:$0xff]
    %v1117 = vld [vmem:[%s6 + $0x78] sm:$0xff]
    %v1118 = vld [vmem:[%s6 + $0x80] sm:$0xff]
    %v1119 = vld [vmem:[%s6 + $0x88] sm:$0xff]
    %v1120 = vld [vmem:[%s6 + $0x90] sm:$0xff]
    %v1121 = vld [vmem:[%s6 + $0x98] sm:$0xff]
    %v1122 = vld [vmem:[%s6 + $0xa0] sm:$0xff]
    %v1123 = vld [vmem:[%s6 + $0xa8] sm:$0xff]
    %v1124 = vld [vmem:[%s6 + $0xb0] sm:$0xff]
    %v1125 = vld [vmem:[%s6 + $0xb8] sm:$0xff]
    %v1126 = vld [vmem:[%s6 + $0xc0] sm:$0xff]
    %v1127 = vld [vmem:[%s6 + $0xc8] sm:$0xff]
    %v1128 = vld [vmem:[%s6 + $0xd0] sm:$0xff]
    %v1129 = vld [vmem:[%s6 + $0xd8] sm:$0xff]
    %v1130 = vld [vmem:[%s6 + $0xe0] sm:$0xff]
    %v1131 = vld [vmem:[%s6 + $0xe8] sm:$0xff]
    %v1132 = vld [vmem:[%s6 + $0xf0] sm:$0xff]
    %v1133 = vld [vmem:[%s6 + $0xf8] sm:$0xff]
    %v1134 = vld [vmem:[%s7] sm:$0x1]
    %v1136 = vlaneseq
    %v1137 = vshrl.u32 %v1136, 7
    %v1138 = vsub.s32 0, %v1137
    %v1139 = vrot.slane %v1134, %v1138
    %1141 = vmatprep.subr.mxu0 0.0
    %1142 = vmatpush1.msra.mxu0 %v1102
    %1143 = vmatprep.subr.mxu0 0.0
    %1144 = vmatpush1.msra.mxu0 %v1103
    %1145 = vmatprep.subr.mxu0 0.0
    %1146 = vmatpush1.msra.mxu0 %v1104
    %1147 = vmatprep.subr.mxu0 0.0
    %1148 = vmatpush1.msra.mxu0 %v1105
    %1149 = vmatprep.subr.mxu0 0.0
    %1150 = vmatpush1.msra.mxu0 %v1106
    %1151 = vmatprep.subr.mxu0 0.0
    %1152 = vmatpush1.msra.mxu0 %v1107
    %1153 = vmatprep.subr.mxu0 0.0
    %1154 = vmatpush1.msra.mxu0 %v1108
    %1155 = vmatprep.subr.mxu0 0.0
    %1156 = vmatpush1.msra.mxu0 %v1109
    %1157 = vmatprep.subr.mxu0 0.0
    %1158 = vmatpush1.msra.mxu0 %v1110
    %1159 = vmatprep.subr.mxu0 0.0
    %1160 = vmatpush1.msra.mxu0 %v1111
    %1161 = vmatprep.subr.mxu0 0.0
    %1162 = vmatpush1.msra.mxu0 %v1112
    %1163 = vmatprep.subr.mxu0 0.0
    %1164 = vmatpush1.msra.mxu0 %v1113
    %1165 = vmatprep.subr.mxu0 0.0
    %1166 = vmatpush1.msra.mxu0 %v1114
    %1167 = vmatprep.subr.mxu0 0.0
    %1168 = vmatpush1.msra.mxu0 %v1115
    %1169 = vmatprep.subr.mxu0 0.0
    %1170 = vmatpush1.msra.mxu0 %v1116
    %1171 = vmatprep.subr.mxu0 0.0
    %1172 = vmatpush1.msra.mxu0 %v1117
    %1173 = vmatprep.subr.mxu0 0.0
    %1174 = vmatpush1.msra.mxu0 %v1118
    %1175 = vmatprep.subr.mxu0 0.0
    %1176 = vmatpush1.msra.mxu0 %v1119
    %1177 = vmatprep.subr.mxu0 0.0
    %1178 = vmatpush1.msra.mxu0 %v1120
    %1179 = vmatprep.subr.mxu0 0.0
    %1180 = vmatpush1.msra.mxu0 %v1121
    %1181 = vmatprep.subr.mxu0 0.0
    %1182 = vmatpush1.msra.mxu0 %v1122
    %1183 = vmatprep.subr.mxu0 0.0
    %1184 = vmatpush1.msra.mxu0 %v1123
    %1185 = vmatprep.subr.mxu0 0.0
    %1186 = vmatpush1.msra.mxu0 %v1124
    %1187 = vmatprep.subr.mxu0 0.0
    %1188 = vmatpush1.msra.mxu0 %v1125
    %1189 = vmatprep.subr.mxu0 0.0
    %1190 = vmatpush1.msra.mxu0 %v1126
    %1191 = vmatprep.subr.mxu0 0.0
    %1192 = vmatpush1.msra.mxu0 %v1127
    %1193 = vmatprep.subr.mxu0 0.0
    %1194 = vmatpush1.msra.mxu0 %v1128
    %1195 = vmatprep.subr.mxu0 0.0
    %1196 = vmatpush1.msra.mxu0 %v1129
    %1197 = vmatprep.subr.mxu0 0.0
    %1198 = vmatpush1.msra.mxu0 %v1130
    %1199 = vmatprep.subr.mxu0 0.0
    %1200 = vmatpush1.msra.mxu0 %v1131
    %1201 = vmatprep.subr.mxu0 0.0
    %1202 = vmatpush1.msra.mxu0 %v1132
    %1203 = vmatprep.subr.mxu0 0.0
    %1204 = vmatpush1.msra.mxu0 %v1133
    %1205 = vmatprep.mubr.f32.mxu0 %v1101
    %1206 = vmatmul.mubr.f32.gmra.mrb[0].mxu0 %v1098
    %v1207 = vpop.f32.mrb[0].mxu0
    %v1208 = vadd.f32 %v1139, %v1207
    %v1209 = vpop.f32.mrb[0].mxu0
    %1210 = vdwg.mxu0
    %v1211 = vmax.f32 %v1208, 0.0
    %v1212 = vld [vmem:[%s8] sm:$0xff]
    %v1213 = vld [vmem:[%s8 + $0x8] sm:$0xff]
    %v1214 = vld [vmem:[%s8 + $0x10] sm:$0xff]
    %v1215 = vld [vmem:[%s8 + $0x18] sm:$0xff]
    %v1216 = vld [vmem:[%s9] sm:$0x1]
    %v1218 = vlaneseq
    %v1219 = vshrl.u32 %v1218, 7
    %v1220 = vsub.s32 0, %v1219
    %v1221 = vrot.slane %v1216, %v1220
    %v1224 = vsel %vm48, %v1211, 0
    %1226 = vmatprep.subr.mxu0 0.0
    %1227 = vmatpush1.msra.mxu0 %v1212
    %1228 = vmatprep.subr.mxu0 0.0
    %1229 = vmatpush1.msra.mxu0 %v1213
    %1230 = vmatprep.subr.mxu0 0.0
    %1231 = vmatpush1.msra.mxu0 %v1214
    %1232 = vmatprep.subr.mxu0 0.0
    %1233 = vmatpush1.msra.mxu0 %v1215
    %1234 = vmatprep.subr.mxu0 0.0
    %1235 = vmatpush1.msra.mxu0 0.0
    %1236 = vmatprep.subr.mxu0 0.0
    %1237 = vmatpush1.msra.mxu0 0.0
    %1238 = vmatprep.subr.mxu0 0.0
    %1239 = vmatpush1.msra.mxu0 0.0
    %1240 = vmatprep.subr.mxu0 0.0
    %1241 = vmatpush1.msra.mxu0 0.0
    %1242 = vmatprep.subr.mxu0 0.0
    %1243 = vmatpush1.msra.mxu0 0.0
    %1244 = vmatprep.subr.mxu0 0.0
    %1245 = vmatpush1.msra.mxu0 0.0
    %1246 = vmatprep.subr.mxu0 0.0
    %1247 = vmatpush1.msra.mxu0 0.0
    %1248 = vmatprep.subr.mxu0 0.0
    %1249 = vmatpush1.msra.mxu0 0.0
    %1250 = vmatprep.subr.mxu0 0.0
    %1251 = vmatpush1.msra.mxu0 0.0
    %1252 = vmatprep.subr.mxu0 0.0
    %1253 = vmatpush1.msra.mxu0 0.0
    %1254 = vmatprep.subr.mxu0 0.0
    %1255 = vmatpush1.msra.mxu0 0.0
    %1256 = vmatprep.subr.mxu0 0.0
    %1257 = vmatpush1.msra.mxu0 0.0
    %1258 = vmatprep.subr.mxu0 0.0
    %1259 = vmatpush1.msra.mxu0 0.0
    %1260 = vmatprep.subr.mxu0 0.0
    %1261 = vmatpush1.msra.mxu0 0.0
    %1262 = vmatprep.subr.mxu0 0.0
    %1263 = vmatpush1.msra.mxu0 0.0
    %1264 = vmatprep.subr.mxu0 0.0
    %1265 = vmatpush1.msra.mxu0 0.0
    %1266 = vmatprep.subr.mxu0 0.0
    %1267 = vmatpush1.msra.mxu0 0.0
    %1268 = vmatprep.subr.mxu0 0.0
    %1269 = vmatpush1.msra.mxu0 0.0
    %1270 = vmatprep.subr.mxu0 0.0
    %1271 = vmatpush1.msra.mxu0 0.0
    %1272 = vmatprep.subr.mxu0 0.0
    %1273 = vmatpush1.msra.mxu0 0.0
    %1274 = vmatprep.subr.mxu0 0.0
    %1275 = vmatpush1.msra.mxu0 0.0
    %1276 = vmatprep.subr.mxu0 0.0
    %1277 = vmatpush1.msra.mxu0 0.0
    %1278 = vmatprep.subr.mxu0 0.0
    %1279 = vmatpush1.msra.mxu0 0.0
    %1280 = vmatprep.subr.mxu0 0.0
    %1281 = vmatpush1.msra.mxu0 0.0
    %1282 = vmatprep.subr.mxu0 0.0
    %1283 = vmatpush1.msra.mxu0 0.0
    %1284 = vmatprep.subr.mxu0 0.0
    %1285 = vmatpush1.msra.mxu0 0.0
    %1286 = vmatprep.subr.mxu0 0.0
    %1287 = vmatpush1.msra.mxu0 0.0
    %1288 = vmatprep.subr.mxu0 0.0
    %1289 = vmatpush1.msra.mxu0 0.0
    %1290 = vmatprep.mubr.f32.mxu0 0.0
    %1291 = vmatmul.mubr.f32.gmra.mrb[0].mxu0 %v1224
    %v1292 = vpop.f32.mrb[0].mxu0
    %v1293 = vadd.f32 %v1221, %v1292
    %v1294 = vpop.f32.mrb[0].mxu0
    %1295 = vdwg.mxu0
    %vm1296 = vcmask 25600
    %1297 = vst.msk [vmem:[#allocation2] sm:$0x3] %vm1296, %v1293
    %1298 = vst.msk [vmem:[#allocation4] sm:$0xff] %vm214, %v269
    %1299 = vst.msk [vmem:[#allocation4 + $0x8] sm:$0xff] %vm214, %v301
    %1300 = vst.msk [vmem:[#allocation6] sm:$0xff] %vm214, %v683
    %1301 = vst.msk [vmem:[#allocation6 + $0x8] sm:$0xff] %vm214, %v715
    // Predicated region
    $region42: #{san_forward.3} parent=1 // pred_check
      _
    $region43: #{san_forward.3} parent=1 // pred_check_branch
      %1303 = sbr.rel (0) target = $region45
    $region44: #{san_forward.3} parent=1 // pred_region
      %s1305 = ssub.s32 32, 32
      %1306 = vsyncadd [#allocation3], %s1305
      %s1308 = sshll.u32 [#allocation2], 4
      %s1309 = int_to_ptr.vmem [resolvable:$true] %s1308
      %1311 = dma.vmem_to_hbm [thread:$0]  %s1309, 32, %s10, [#allocation3]
    $region45: #{san_forward.3} parent=1 // pred_fallthru
      _
    // Predicated region
    $region46: #{san_forward.3} parent=1 // pred_check
      _
    $region47: #{san_forward.3} parent=1 // pred_check_branch
      %1313 = sbr.rel (0) target = $region49
    $region48: #{san_forward.3} parent=1 // pred_region
      %s1315 = ssub.s32 256, 256
      %1316 = vsyncadd [#allocation5], %s1315
      %s1317 = sshll.u32 [#allocation4], 4
      %s1318 = int_to_ptr.vmem [resolvable:$true] %s1317
      %1323 = dma.vmem_to_hbm [thread:$0]  %s1318, 256, %s11, [#allocation5], 128, 128, 8
    $region49: #{san_forward.3} parent=1 // pred_fallthru
      _
    // Predicated region
    $region50: #{san_forward.3} parent=1 // pred_check
      _
    $region51: #{san_forward.3} parent=1 // pred_check_branch
      %1325 = sbr.rel (0) target = $region53
    $region52: #{san_forward.3} parent=1 // pred_region
      %s1327 = ssub.s32 256, 256
      %1328 = vsyncadd [#allocation5], %s1327
      %s1329 = sshll.u32 [#allocation6], 4
      %s1330 = int_to_ptr.vmem [resolvable:$true] %s1329
      %1335 = dma.vmem_to_hbm [thread:$0]  %s1330, 256, %s12, [#allocation5], 128, 128, 8
    $region53: #{san_forward.3} parent=1 // pred_fallthru
      _
    // Predicated region
    $region54: #{san_forward.3} parent=1 // pred_check
      _
    $region55: #{san_forward.3} parent=1 // pred_check_branch
      %1337 = sbr.rel (0) target = $region57
    $region56: #{san_forward.3} parent=1 // pred_region
      %1338 = dma.done [#allocation3], 32
    $region57: #{san_forward.3} parent=1 // pred_fallthru
      _
    // Predicated region
    $region58: #{san_forward.3} parent=1 // pred_check
      _
    $region59: #{san_forward.3} parent=1 // pred_check_branch
      %1340 = sbr.rel (0) target = $region61
    $region60: #{san_forward.3} parent=1 // pred_region
      %1341 = dma.done [#allocation5], 256
    $region61: #{san_forward.3} parent=1 // pred_fallthru
      _
    // Predicated region
    $region62: #{san_forward.3} parent=1 // pred_check
      _
    $region63: #{san_forward.3} parent=1 // pred_check_branch
      %1343 = sbr.rel (0) target = $region65
    $region64: #{san_forward.3} parent=1 // pred_region
      %1344 = dma.done [#allocation5], 256
    $region65: #{san_forward.3} parent=1 // pred_fallthru
      _
    %1345 = vsyncpa [#allocation3], 1
    %1346 = vsyncpa [#allocation5], 1

// kernel: san_forward.2
$region0: #{san_forward.2}
  #allocation0 [shape = 'u32[]', space=smem, size = 0x4, offset = 0x4, fixed_abs, tag = 'smem constant byte address 0x4 - core index']
  #allocation1 [shape = 'u32[144,128]{1,0:T(1,128)}', space=vmem, size = 0x12000, scoped, tag = 'internal scratch']
  %s0 = inlined_call_operand.vmem [shape: f32[2,8,2,16], index: 0, kind: input, shape index: {}]
  %s1 = inlined_call_operand.vmem [shape: f32[2,32,64], index: 1, kind: input, shape index: {}]
  %s2 = inlined_call_operand.vmem [shape: f32[2,1,64], index: 2, kind: input, shape index: {}]
  %s3 = inlined_call_operand.vmem [shape: f32[2,2,8,32], index: 3, kind: output, shape index: {}]
  %s4 = sld [smem:[#allocation0]]
  $region45: #{san_forward.2} parent=0
    _
  %s6 = ssub.s32 1, %s4
  %s7 = scalar_select 0, %s6, %s4
  loop: start=0, step=1, limit=4
  $region2: #{san_forward.2} parent=0 // loop_pre_header
    _
  $region3: #{san_forward.2} parent=0 // loop_header
    %s9 = sphi 0, %s13
    %p10 = scmp.ge.s32.totalorder %s9, 4
    %s19 = sphi 0, %s21
    %s22 = sphi 0, %s19
    %s23 = sphi 0, %s22
    %s39 = sphi 0, %s23
    %s43 = sphi 0, %s43
    %s45 = sphi 0, %s43
    %s46 = sphi 0, %s45
    %s60 = sphi 0, %s46
    %s64 = sphi 0, %s64
    %s66 = sphi 0, %s64
    %s67 = sphi 0, %s66
    %s81 = sphi 0, %s67
    %s87 = sphi 0, %s89
    %s90 = sphi 0, %s87
    %s91 = sphi 0, %s90
    %s107 = sphi 0, %s91
  $region4: #{san_forward.2} parent=0 // loop_header_branch
    %12 = sbr.rel (%p10) target = $region8
  $region5: #{san_forward.2} parent=0 // loop_body
    %s14 = ssub.s32 %s9, 1
    %s15 = ssub.s32 %s9, 2
    %s16 = sadd.s32 %s9, 1
    %s17 = ssub.s32 %s9, %s16
    %p18 = scmp.eq.s32.totalorder %s17, 0
    %s20 = sadd.s32 %s19, 1
    %s21 = scalar_select %p18, %s19, %s20
    %p24 = pneg %p18
    %p25 = scmp.eq.s32.totalorder %s9, 1
    %p26 = por %p24, %p25
    %p27 = scmp.ne.s32.totalorder %s19, %s22
    %p28 = scmp.eq.s32.totalorder %s9, 0
    %p29 = por %p27, %p28
    %p30 = scmp.ne.s32.totalorder %s19, %s22
    %p31 = scmp.eq.s32.totalorder %s14, 1
    %p32 = por %p30, %p31
    %p33 = scmp.ne.s32.totalorder %s22, %s23
    %p34 = scmp.eq.s32.totalorder %s14, 0
    %p35 = por %p33, %p34
    %p36 = scmp.ne.s32.totalorder %s22, %s23
    %p37 = scmp.eq.s32.totalorder %s15, 1
    %p38 = por %p36, %p37
    %p40 = scmp.ne.s32.totalorder %s23, %s39
    %p41 = scmp.eq.s32.totalorder %s15, 0
    %p42 = por %p40, %p41
    %s44 = sadd.s32 %s43, 1
    %p47 = scmp.eq.s32.totalorder %s9, 1
    %p48 = scmp.ne.s32.totalorder %s43, %s45
    %p49 = scmp.eq.s32.totalorder %s9, 0
    %p50 = por %p48, %p49
    %p51 = scmp.ne.s32.totalorder %s43, %s45
    %p52 = scmp.eq.s32.totalorder %s14, 1
    %p53 = por %p51, %p52
    %p54 = scmp.ne.s32.totalorder %s45, %s46
    %p55 = scmp.eq.s32.totalorder %s14, 0
    %p56 = por %p54, %p55
    %p57 = scmp.ne.s32.totalorder %s45, %s46
    %p58 = scmp.eq.s32.totalorder %s15, 1
    %p59 = por %p57, %p58
    %p61 = scmp.ne.s32.totalorder %s46, %s60
    %p62 = scmp.eq.s32.totalorder %s15, 0
    %p63 = por %p61, %p62
    %s65 = sadd.s32 %s64, 1
    %p68 = scmp.eq.s32.totalorder %s9, 1
    %p69 = scmp.ne.s32.totalorder %s64, %s66
    %p70 = scmp.eq.s32.totalorder %s9, 0
    %p71 = por %p69, %p70
    %p72 = scmp.ne.s32.totalorder %s64, %s66
    %p73 = scmp.eq.s32.totalorder %s14, 1
    %p74 = por %p72, %p73
    %p75 = scmp.ne.s32.totalorder %s66, %s67
    %p76 = scmp.eq.s32.totalorder %s14, 0
    %p77 = por %p75, %p76
    %p78 = scmp.ne.s32.totalorder %s66, %s67
    %p79 = scmp.eq.s32.totalorder %s15, 1
    %p80 = por %p78, %p79
    %p82 = scmp.ne.s32.totalorder %s67, %s81
    %p83 = scmp.eq.s32.totalorder %s15, 0
    %p84 = por %p82, %p83
    %s85 = ssub.s32 %s9, %s16
    %p86 = scmp.eq.s32.totalorder %s85, 0
    %s88 = sadd.s32 %s87, 1
    %s89 = scalar_select %p86, %s87, %s88
    %p92 = pneg %p86
    %p93 = scmp.eq.s32.totalorder %s9, 1
    %p94 = por %p92, %p93
    %p95 = scmp.ne.s32.totalorder %s87, %s90
    %p96 = scmp.eq.s32.totalorder %s9, 0
    %p97 = por %p95, %p96
    %p98 = scmp.ne.s32.totalorder %s87, %s90
    %p99 = scmp.eq.s32.totalorder %s14, 1
    %p100 = por %p98, %p99
    %p101 = scmp.ne.s32.totalorder %s90, %s91
    %p102 = scmp.eq.s32.totalorder %s14, 0
    %p103 = por %p101, %p102
    %p104 = scmp.ne.s32.totalorder %s90, %s91
    %p105 = scmp.eq.s32.totalorder %s15, 1
    %p106 = por %p104, %p105
    %p108 = scmp.ne.s32.totalorder %s91, %s107
    %p109 = scmp.eq.s32.totalorder %s15, 0
    %p110 = por %p108, %p109
    %p111 = scmp.le.s32.totalorder 1, %s9
    %p112 = scmp.lt.s32.totalorder %s9, 3
    %p113 = pnand %p111, %p112
    %p114 = pneg %p113
    // Predicated region
    $region9: #{san_forward.2} parent=5 // pred_check
      _
    $region10: #{san_forward.2} parent=5 // pred_check_branch
      %116 = sbr.rel (%p113) target = $region12
    $region11: #{san_forward.2} parent=5 // pred_region
      %s117 = ssub.s32 %s9, 1
      // Predicated region
      $region13: #{san_forward.2} parent=11 // pred_check
        %p118 = pneg %p56
      $region14: #{san_forward.2} parent=11 // pred_check_branch
        %120 = sbr.rel (%p118) target = $region16
      $region15: #{san_forward.2} parent=11 // pred_region
        _
      $region16: #{san_forward.2} parent=11 // pred_fallthru
        _
      // Predicated region
      $region17: #{san_forward.2} parent=11 // pred_check
        %p121 = pneg %p77
      $region18: #{san_forward.2} parent=11 // pred_check_branch
        %123 = sbr.rel (%p121) target = $region20
      $region19: #{san_forward.2} parent=11 // pred_region
        _
      $region20: #{san_forward.2} parent=11 // pred_fallthru
        _
    $region12: #{san_forward.2} parent=5 // pred_fallthru
      _
    %p124 = scmp.lt.s32.totalorder %s9, 2
    // Predicated region
    $region21: #{san_forward.2} parent=5 // pred_check
      %p125 = pneg %p124
    $region22: #{san_forward.2} parent=5 // pred_check_branch
      %127 = sbr.rel (%p125) target = $region24
    $region23: #{san_forward.2} parent=5 // pred_region
      // Predicated region
      $region25: #{san_forward.2} parent=23 // pred_check
        %p128 = pneg %p29
      $region26: #{san_forward.2} parent=23 // pred_check_branch
        %130 = sbr.rel (%p128) target = $region28
      $region27: #{san_forward.2} parent=23 // pred_region
        %p131 = scmp.lt.s32.totalorder %s9, 1
        %s132 = scalar_select %p131, %s9, 1
        %s133 = smul.addr %s132, 8
        %s134 = smul.addr %s133, 2
        %s135 = scalar_lea.vmem %s0, %s134
      $region28: #{san_forward.2} parent=23 // pred_fallthru
        _
    $region24: #{san_forward.2} parent=5 // pred_fallthru
      _
    %p136 = scmp.le.s32.totalorder 1, %s9
    %p137 = scmp.lt.s32.totalorder %s9, 3
    %p138 = pnand %p136, %p137
    %p139 = pneg %p138
    // Predicated region
    $region29: #{san_forward.2} parent=5 // pred_check
      _
    $region30: #{san_forward.2} parent=5 // pred_check_branch
      %141 = sbr.rel (%p138) target = $region32
    $region31: #{san_forward.2} parent=5 // pred_region
      %s142 = ssub.s32 %s9, 1
      %p143 = scmp.lt.s32.totalorder %s14, 1
      %s144 = scalar_select %p143, %s14, 1
      %s145 = smul.addr %s144, 8
      %s146 = smul.addr %s145, 2
      %s147 = scalar_lea.vmem %s0, %s146
      %p148 = pneg %p35
      %p149 = pneg %p32
      %p150 = pneg %p56
      %p151 = pneg %p53
      %p152 = pneg %p77
      %p153 = pneg %p74
      %p154 = pneg %p103
      %p155 = pneg %p100
      %p156 = scmp.lt.s32.totalorder %s14, 1
      %s157 = scalar_select %p156, %s14, 1
      %s158 = smul.addr %s157, 2
      %s159 = smul.addr %s158, 8
      %s160 = scalar_lea.vmem %s3, %s159
      %p161 = scmp.lt.s32.totalorder %s14, 1
      %s162 = scalar_select %p161, %s14, 1
      %s163 = smul.addr %s162, 8
      %s164 = smul.addr %s163, 2
      %s165 = scalar_lea.vmem %s0, %s164
      %p166 = scmp.lt.s32.totalorder %s14, 1
      %s167 = scalar_select %p166, %s14, 1
      %s168 = smul.addr %s167, 2
      %s169 = smul.addr %s168, 8
      %s170 = scalar_lea.vmem %s3, %s169
      %v171 = vld [vmem:[%s1] sm:$0xff]
      %v172 = vld [vmem:[%s1 + $0x8] sm:$0xff]
      %v173 = vld [vmem:[%s1 + $0x10] sm:$0xff]
      %v174 = vld [vmem:[%s1 + $0x18] sm:$0xff]
      %v175 = vld [vmem:[%s2] sm:$0x1]
      %v176 = vld [vmem:[%s165] sm:$0x3]
      %vm177 = vcmask 130048
      %v178 = vsel %vm177, %v176, 0.0
      %v180 = vlaneseq
      %v181 = vshrl.u32 %v180, 7
      %v182 = vsub.s32 0, %v181
      %v183 = vrot.slane %v175, %v182
      %vm185 = vcmask 261120
      %v187 = vsel %vm185, %v178, 0
      %189 = vmatprep.subr.mxu0 0.0
      %190 = vmatpush1.msra.mxu0 %v171
      %191 = vmatprep.subr.mxu0 0.0
      %192 = vmatpush1.msra.mxu0 %v172
      %193 = vmatprep.subr.mxu0 0.0
      %194 = vmatpush1.msra.mxu0 %v173
      %195 = vmatprep.subr.mxu0 0.0
      %196 = vmatpush1.msra.mxu0 %v174
      %197 = vmatprep.subr.mxu0 0.0
      %198 = vmatpush1.msra.mxu0 0.0
      %199 = vmatprep.subr.mxu0 0.0
      %200 = vmatpush1.msra.mxu0 0.0
      %201 = vmatprep.subr.mxu0 0.0
      %202 = vmatpush1.msra.mxu0 0.0
      %203 = vmatprep.subr.mxu0 0.0
      %204 = vmatpush1.msra.mxu0 0.0
      %205 = vmatprep.subr.mxu0 0.0
      %206 = vmatpush1.msra.mxu0 0.0
      %207 = vmatprep.subr.mxu0 0.0
      %208 = vmatpush1.msra.mxu0 0.0
      %209 = vmatprep.subr.mxu0 0.0
      %210 = vmatpush1.msra.mxu0 0.0
      %211 = vmatprep.subr.mxu0 0.0
      %212 = vmatpush1.msra.mxu0 0.0
      %213 = vmatprep.subr.mxu0 0.0
      %214 = vmatpush1.msra.mxu0 0.0
      %215 = vmatprep.subr.mxu0 0.0
      %216 = vmatpush1.msra.mxu0 0.0
      %217 = vmatprep.subr.mxu0 0.0
      %218 = vmatpush1.msra.mxu0 0.0
      %219 = vmatprep.subr.mxu0 0.0
      %220 = vmatpush1.msra.mxu0 0.0
      %221 = vmatprep.subr.mxu0 0.0
      %222 = vmatpush1.msra.mxu0 0.0
      %223 = vmatprep.subr.mxu0 0.0
      %224 = vmatpush1.msra.mxu0 0.0
      %225 = vmatprep.subr.mxu0 0.0
      %226 = vmatpush1.msra.mxu0 0.0
      %227 = vmatprep.subr.mxu0 0.0
      %228 = vmatpush1.msra.mxu0 0.0
      %229 = vmatprep.subr.mxu0 0.0
      %230 = vmatpush1.msra.mxu0 0.0
      %231 = vmatprep.subr.mxu0 0.0
      %232 = vmatpush1.msra.mxu0 0.0
      %233 = vmatprep.subr.mxu0 0.0
      %234 = vmatpush1.msra.mxu0 0.0
      %235 = vmatprep.subr.mxu0 0.0
      %236 = vmatpush1.msra.mxu0 0.0
      %237 = vmatprep.subr.mxu0 0.0
      %238 = vmatpush1.msra.mxu0 0.0
      %239 = vmatprep.subr.mxu0 0.0
      %240 = vmatpush1.msra.mxu0 0.0
      %241 = vmatprep.subr.mxu0 0.0
      %242 = vmatpush1.msra.mxu0 0.0
      %243 = vmatprep.subr.mxu0 0.0
      %244 = vmatpush1.msra.mxu0 0.0
      %245 = vmatprep.subr.mxu0 0.0
      %246 = vmatpush1.msra.mxu0 0.0
      %247 = vmatprep.subr.mxu0 0.0
      %248 = vmatpush1.msra.mxu0 0.0
      %249 = vmatprep.subr.mxu0 0.0
      %250 = vmatpush1.msra.mxu0 0.0
      %251 = vmatprep.subr.mxu0 0.0
      %252 = vmatpush1.msra.mxu0 0.0
      %253 = vmatprep.mubr.f32.mxu0 0.0
      %254 = vmatmul.mubr.f32.gmra.mrb[0].mxu0 %v187
      %v255 = vpop.f32.mrb[0].mxu0
      %v256 = vadd.f32 %v183, %v255
      %v257 = vpop.f32.mrb[0].mxu0
      %258 = vdwg.mxu0
      %v259 = vxor.u32 %v256, 2147483648
      %v260 = vmul.f32 %v259, 1.442695
      %v261 = vpow.pop %v260
      %v262 = vadd.f32 %v261, 1.0
      %v263 = vrcp.pop %v262
      %v264 = vmul.f32 1.0, %v263
      %v265 = vtanh.pop %v256
      %v266 = vmul.f32 %v264, 0.0
      %268 = vrot.lane.b32.xlu0 %v265, 96
      %v269 = vpop.permute.xlu0 %268
      %v271 = vmul.f32 %v264, %v269
      %273 = vrot.lane.b32.xlu0 %v271, 16
      %v274 = vpop.permute.xlu0 %273
      %v276 = vadd.f32 %v266, %v274
      %v277 = vtanh.pop %v276
      %279 = vrot.lane.b32.xlu0 %v277, 32
      %v280 = vpop.permute.xlu0 %279
      %v282 = vmul.f32 %v264, %v280
      %s283 = scalar_lea.vmem %s165, 2
      %v284 = vld [vmem:[%s283] sm:$0x3]
      %286 = vrot.lane.b32.xlu0 %v282, 96
      %v287 = vpop.permute.xlu0 %286
      %v289 = vsel %vm177, %v284, %v287
      %v291 = vsel %vm185, %v289, 0
      %293 = vmatprep.subr.mxu0 0.0
      %294 = vmatpush1.msra.mxu0 %v171
      %295 = vmatprep.subr.mxu0 0.0
      %296 = vmatpush1.msra.mxu0 %v172
      %297 = vmatprep.subr.mxu0 0.0
      %298 = vmatpush1.msra.mxu0 %v173
      %299 = vmatprep.subr.mxu0 0.0
      %300 = vmatpush1.msra.mxu0 %v174
      %301 = vmatprep.subr.mxu0 0.0
      %302 = vmatpush1.msra.mxu0 0.0
      %303 = vmatprep.subr.mxu0 0.0
      %304 = vmatpush1.msra.mxu0 0.0
      %305 = vmatprep.subr.mxu0 0.0
      %306 = vmatpush1.msra.mxu0 0.0
      %307 = vmatprep.subr.mxu0 0.0
      %308 = vmatpush1.msra.mxu0 0.0
      %309 = vmatprep.subr.mxu0 0.0
      %310 = vmatpush1.msra.mxu0 0.0
      %311 = vmatprep.subr.mxu0 0.0
      %312 = vmatpush1.msra.mxu0 0.0
      %313 = vmatprep.subr.mxu0 0.0
      %314 = vmatpush1.msra.mxu0 0.0
      %315 = vmatprep.subr.mxu0 0.0
      %316 = vmatpush1.msra.mxu0 0.0
      %317 = vmatprep.subr.mxu0 0.0
      %318 = vmatpush1.msra.mxu0 0.0
      %319 = vmatprep.subr.mxu0 0.0
      %320 = vmatpush1.msra.mxu0 0.0
      %321 = vmatprep.subr.mxu0 0.0
      %322 = vmatpush1.msra.mxu0 0.0
      %323 = vmatprep.subr.mxu0 0.0
      %324 = vmatpush1.msra.mxu0 0.0
      %325 = vmatprep.subr.mxu0 0.0
      %326 = vmatpush1.msra.mxu0 0.0
      %327 = vmatprep.subr.mxu0 0.0
      %328 = vmatpush1.msra.mxu0 0.0
      %329 = vmatprep.subr.mxu0 0.0
      %330 = vmatpush1.msra.mxu0 0.0
      %331 = vmatprep.subr.mxu0 0.0
      %332 = vmatpush1.msra.mxu0 0.0
      %333 = vmatprep.subr.mxu0 0.0
      %334 = vmatpush1.msra.mxu0 0.0
      %335 = vmatprep.subr.mxu0 0.0
      %336 = vmatpush1.msra.mxu0 0.0
      %337 = vmatprep.subr.mxu0 0.0
      %338 = vmatpush1.msra.mxu0 0.0
      %339 = vmatprep.subr.mxu0 0.0
      %340 = vmatpush1.msra.mxu0 0.0
      %341 = vmatprep.subr.mxu0 0.0
      %342 = vmatpush1.msra.mxu0 0.0
      %343 = vmatprep.subr.mxu0 0.0
      %344 = vmatpush1.msra.mxu0 0.0
      %345 = vmatprep.subr.mxu0 0.0
      %346 = vmatpush1.msra.mxu0 0.0
      %347 = vmatprep.subr.mxu0 0.0
      %348 = vmatpush1.msra.mxu0 0.0
      %349 = vmatprep.subr.mxu0 0.0
      %350 = vmatpush1.msra.mxu0 0.0
      %351 = vmatprep.subr.mxu0 0.0
      %352 = vmatpush1.msra.mxu0 0.0
      %353 = vmatprep.subr.mxu0 0.0
      %354 = vmatpush1.msra.mxu0 0.0
      %355 = vmatprep.subr.mxu0 0.0
      %356 = vmatpush1.msra.mxu0 0.0
      %357 = vmatprep.mubr.f32.mxu0 0.0
      %358 = vmatmul.mubr.f32.gmra.mrb[0].mxu0 %v291
      %v359 = vpop.f32.mrb[0].mxu0
      %v360 = vadd.f32 %v183, %v359
      %v361 = vpop.f32.mrb[0].mxu0
      %362 = vdwg.mxu0
      %v363 = vxor.u32 %v360, 2147483648
      %v364 = vmul.f32 %v363, 1.442695
      %v365 = vpow.pop %v364
      %v366 = vadd.f32 %v365, 1.0
      %v367 = vrcp.pop %v366
      %v368 = vmul.f32 1.0, %v367
      %v369 = vtanh.pop %v360
      %v370 = vmul.f32 %v368, %v276
      %372 = vrot.lane.b32.xlu0 %v369, 96
      %v373 = vpop.permute.xlu0 %372
      %v375 = vmul.f32 %v368, %v373
      %377 = vrot.lane.b32.xlu0 %v375, 16
      %v378 = vpop.permute.xlu0 %377
      %v380 = vadd.f32 %v370, %v378
      %v381 = vtanh.pop %v380
      %383 = vrot.lane.b32.xlu0 %v381, 32
      %v384 = vpop.permute.xlu0 %383
      %v386 = vmul.f32 %v368, %v384
      %s387 = scalar_lea.vmem %s165, 4
      %v388 = vld [vmem:[%s387] sm:$0x3]
      %390 = vrot.lane.b32.xlu0 %v386, 96
      %v391 = vpop.permute.xlu0 %390
      %v393 = vsel %vm177, %v388, %v391
      %v395 = vsel %vm185, %v393, 0
      %397 = vmatprep.subr.mxu0 0.0
      %398 = vmatpush1.msra.mxu0 %v171
      %399 = vmatprep.subr.mxu0 0.0
      %400 = vmatpush1.msra.mxu0 %v172
      %401 = vmatprep.subr.mxu0 0.0
      %402 = vmatpush1.msra.mxu0 %v173
      %403 = vmatprep.subr.mxu0 0.0
      %404 = vmatpush1.msra.mxu0 %v174
      %405 = vmatprep.subr.mxu0 0.0
      %406 = vmatpush1.msra.mxu0 0.0
      %407 = vmatprep.subr.mxu0 0.0
      %408 = vmatpush1.msra.mxu0 0.0
      %409 = vmatprep.subr.mxu0 0.0
      %410 = vmatpush1.msra.mxu0 0.0
      %411 = vmatprep.subr.mxu0 0.0
      %412 = vmatpush1.msra.mxu0 0.0
      %413 = vmatprep.subr.mxu0 0.0
      %414 = vmatpush1.msra.mxu0 0.0
      %415 = vmatprep.subr.mxu0 0.0
      %416 = vmatpush1.msra.mxu0 0.0
      %417 = vmatprep.subr.mxu0 0.0
      %418 = vmatpush1.msra.mxu0 0.0
      %419 = vmatprep.subr.mxu0 0.0
      %420 = vmatpush1.msra.mxu0 0.0
      %421 = vmatprep.subr.mxu0 0.0
      %422 = vmatpush1.msra.mxu0 0.0
      %423 = vmatprep.subr.mxu0 0.0
      %424 = vmatpush1.msra.mxu0 0.0
      %425 = vmatprep.subr.mxu0 0.0
      %426 = vmatpush1.msra.mxu0 0.0
      %427 = vmatprep.subr.mxu0 0.0
      %428 = vmatpush1.msra.mxu0 0.0
      %429 = vmatprep.subr.mxu0 0.0
      %430 = vmatpush1.msra.mxu0 0.0
      %431 = vmatprep.subr.mxu0 0.0
      %432 = vmatpush1.msra.mxu0 0.0
      %433 = vmatprep.subr.mxu0 0.0
      %434 = vmatpush1.msra.mxu0 0.0
      %435 = vmatprep.subr.mxu0 0.0
      %436 = vmatpush1.msra.mxu0 0.0
      %437 = vmatprep.subr.mxu0 0.0
      %438 = vmatpush1.msra.mxu0 0.0
      %439 = vmatprep.subr.mxu0 0.0
      %440 = vmatpush1.msra.mxu0 0.0
      %441 = vmatprep.subr.mxu0 0.0
      %442 = vmatpush1.msra.mxu0 0.0
      %443 = vmatprep.subr.mxu0 0.0
      %444 = vmatpush1.msra.mxu0 0.0
      %445 = vmatprep.subr.mxu0 0.0
      %446 = vmatpush1.msra.mxu0 0.0
      %447 = vmatprep.subr.mxu0 0.0
      %448 = vmatpush1.msra.mxu0 0.0
      %449 = vmatprep.subr.mxu0 0.0
      %450 = vmatpush1.msra.mxu0 0.0
      %451 = vmatprep.subr.mxu0 0.0
      %452 = vmatpush1.msra.mxu0 0.0
      %453 = vmatprep.subr.mxu0 0.0
      %454 = vmatpush1.msra.mxu0 0.0
      %455 = vmatprep.subr.mxu0 0.0
      %456 = vmatpush1.msra.mxu0 0.0
      %457 = vmatprep.subr.mxu0 0.0
      %458 = vmatpush1.msra.mxu0 0.0
      %459 = vmatprep.subr.mxu0 0.0
      %460 = vmatpush1.msra.mxu0 0.0
      %461 = vmatprep.mubr.f32.mxu0 0.0
      %462 = vmatmul.mubr.f32.gmra.mrb[0].mxu0 %v395
      %v463 = vpop.f32.mrb[0].mxu0
      %v464 = vadd.f32 %v183, %v463
      %v465 = vpop.f32.mrb[0].mxu0
      %466 = vdwg.mxu0
      %v467 = vxor.u32 %v464, 2147483648
      %v468 = vmul.f32 %v467, 1.442695
      %v469 = vpow.pop %v468
      %v470 = vadd.f32 %v469, 1.0
      %v471 = vrcp.pop %v470
      %v472 = vmul.f32 1.0, %v471
      %v473 = vtanh.pop %v464
      %v474 = vmul.f32 %v472, %v380
      %476 = vrot.lane.b32.xlu0 %v473, 96
      %v477 = vpop.permute.xlu0 %476
      %v479 = vmul.f32 %v472, %v477
      %481 = vrot.lane.b32.xlu0 %v479, 16
      %v482 = vpop.permute.xlu0 %481
      %v484 = vadd.f32 %v474, %v482
      %v485 = vtanh.pop %v484
      %487 = vrot.lane.b32.xlu0 %v485, 32
      %v488 = vpop.permute.xlu0 %487
      %v490 = vmul.f32 %v472, %v488
      %s491 = scalar_lea.vmem %s165, 6
      %v492 = vld [vmem:[%s491] sm:$0x3]
      %494 = vrot.lane.b32.xlu0 %v490, 96
      %v495 = vpop.permute.xlu0 %494
      %v497 = vsel %vm177, %v492, %v495
      %v499 = vsel %vm185, %v497, 0
      %501 = vmatprep.subr.mxu0 0.0
      %502 = vmatpush1.msra.mxu0 %v171
      %503 = vmatprep.subr.mxu0 0.0
      %504 = vmatpush1.msra.mxu0 %v172
      %505 = vmatprep.subr.mxu0 0.0
      %506 = vmatpush1.msra.mxu0 %v173
      %507 = vmatprep.subr.mxu0 0.0
      %508 = vmatpush1.msra.mxu0 %v174
      %509 = vmatprep.subr.mxu0 0.0
      %510 = vmatpush1.msra.mxu0 0.0
      %511 = vmatprep.subr.mxu0 0.0
      %512 = vmatpush1.msra.mxu0 0.0
      %513 = vmatprep.subr.mxu0 0.0
      %514 = vmatpush1.msra.mxu0 0.0
      %515 = vmatprep.subr.mxu0 0.0
      %516 = vmatpush1.msra.mxu0 0.0
      %517 = vmatprep.subr.mxu0 0.0
      %518 = vmatpush1.msra.mxu0 0.0
      %519 = vmatprep.subr.mxu0 0.0
      %520 = vmatpush1.msra.mxu0 0.0
      %521 = vmatprep.subr.mxu0 0.0
      %522 = vmatpush1.msra.mxu0 0.0
      %523 = vmatprep.subr.mxu0 0.0
      %524 = vmatpush1.msra.mxu0 0.0
      %525 = vmatprep.subr.mxu0 0.0
      %526 = vmatpush1.msra.mxu0 0.0
      %527 = vmatprep.subr.mxu0 0.0
      %528 = vmatpush1.msra.mxu0 0.0
      %529 = vmatprep.subr.mxu0 0.0
      %530 = vmatpush1.msra.mxu0 0.0
      %531 = vmatprep.subr.mxu0 0.0
      %532 = vmatpush1.msra.mxu0 0.0
      %533 = vmatprep.subr.mxu0 0.0
      %534 = vmatpush1.msra.mxu0 0.0
      %535 = vmatprep.subr.mxu0 0.0
      %536 = vmatpush1.msra.mxu0 0.0
      %537 = vmatprep.subr.mxu0 0.0
      %538 = vmatpush1.msra.mxu0 0.0
      %539 = vmatprep.subr.mxu0 0.0
      %540 = vmatpush1.msra.mxu0 0.0
      %541 = vmatprep.subr.mxu0 0.0
      %542 = vmatpush1.msra.mxu0 0.0
      %543 = vmatprep.subr.mxu0 0.0
      %544 = vmatpush1.msra.mxu0 0.0
      %545 = vmatprep.subr.mxu0 0.0
      %546 = vmatpush1.msra.mxu0 0.0
      %547 = vmatprep.subr.mxu0 0.0
      %548 = vmatpush1.msra.mxu0 0.0
      %549 = vmatprep.subr.mxu0 0.0
      %550 = vmatpush1.msra.mxu0 0.0
      %551 = vmatprep.subr.mxu0 0.0
      %552 = vmatpush1.msra.mxu0 0.0
      %553 = vmatprep.subr.mxu0 0.0
      %554 = vmatpush1.msra.mxu0 0.0
      %555 = vmatprep.subr.mxu0 0.0
      %556 = vmatpush1.msra.mxu0 0.0
      %557 = vmatprep.subr.mxu0 0.0
      %558 = vmatpush1.msra.mxu0 0.0
      %559 = vmatprep.subr.mxu0 0.0
      %560 = vmatpush1.msra.mxu0 0.0
      %561 = vmatprep.subr.mxu0 0.0
      %562 = vmatpush1.msra.mxu0 0.0
      %563 = vmatprep.subr.mxu0 0.0
      %564 = vmatpush1.msra.mxu0 0.0
      %565 = vmatprep.mubr.f32.mxu0 0.0
      %566 = vmatmul.mubr.f32.gmra.mrb[0].mxu0 %v499
      %v567 = vpop.f32.mrb[0].mxu0
      %v568 = vadd.f32 %v183, %v567
      %v569 = vpop.f32.mrb[0].mxu0
      %570 = vdwg.mxu0
      %v571 = vxor.u32 %v568, 2147483648
      %v572 = vmul.f32 %v571, 1.442695
      %v573 = vpow.pop %v572
      %v574 = vadd.f32 %v573, 1.0
      %v575 = vrcp.pop %v574
      %v576 = vmul.f32 1.0, %v575
      %v577 = vtanh.pop %v568
      %v578 = vmul.f32 %v576, %v484
      %580 = vrot.lane.b32.xlu0 %v577, 96
      %v581 = vpop.permute.xlu0 %580
      %v583 = vmul.f32 %v576, %v581
      %585 = vrot.lane.b32.xlu0 %v583, 16
      %v586 = vpop.permute.xlu0 %585
      %v588 = vadd.f32 %v578, %v586
      %v589 = vtanh.pop %v588
      %591 = vrot.lane.b32.xlu0 %v589, 32
      %v592 = vpop.permute.xlu0 %591
      %v594 = vmul.f32 %v576, %v592
      %s595 = scalar_lea.vmem %s165, 8
      %v596 = vld [vmem:[%s595] sm:$0x3]
      %598 = vrot.lane.b32.xlu0 %v594, 96
      %v599 = vpop.permute.xlu0 %598
      %v601 = vsel %vm177, %v596, %v599
      %v603 = vsel %vm185, %v601, 0
      %605 = vmatprep.subr.mxu0 0.0
      %606 = vmatpush1.msra.mxu0 %v171
      %607 = vmatprep.subr.mxu0 0.0
      %608 = vmatpush1.msra.mxu0 %v172
      %609 = vmatprep.subr.mxu0 0.0
      %610 = vmatpush1.msra.mxu0 %v173
      %611 = vmatprep.subr.mxu0 0.0
      %612 = vmatpush1.msra.mxu0 %v174
      %613 = vmatprep.subr.mxu0 0.0
      %614 = vmatpush1.msra.mxu0 0.0
      %615 = vmatprep.subr.mxu0 0.0
      %616 = vmatpush1.msra.mxu0 0.0
      %617 = vmatprep.subr.mxu0 0.0
      %618 = vmatpush1.msra.mxu0 0.0
      %619 = vmatprep.subr.mxu0 0.0
      %620 = vmatpush1.msra.mxu0 0.0
      %621 = vmatprep.subr.mxu0 0.0
      %622 = vmatpush1.msra.mxu0 0.0
      %623 = vmatprep.subr.mxu0 0.0
      %624 = vmatpush1.msra.mxu0 0.0
      %625 = vmatprep.subr.mxu0 0.0
      %626 = vmatpush1.msra.mxu0 0.0
      %627 = vmatprep.subr.mxu0 0.0
      %628 = vmatpush1.msra.mxu0 0.0
      %629 = vmatprep.subr.mxu0 0.0
      %630 = vmatpush1.msra.mxu0 0.0
      %631 = vmatprep.subr.mxu0 0.0
      %632 = vmatpush1.msra.mxu0 0.0
      %633 = vmatprep.subr.mxu0 0.0
      %634 = vmatpush1.msra.mxu0 0.0
      %635 = vmatprep.subr.mxu0 0.0
      %636 = vmatpush1.msra.mxu0 0.0
      %637 = vmatprep.subr.mxu0 0.0
      %638 = vmatpush1.msra.mxu0 0.0
      %639 = vmatprep.subr.mxu0 0.0
      %640 = vmatpush1.msra.mxu0 0.0
      %641 = vmatprep.subr.mxu0 0.0
      %642 = vmatpush1.msra.mxu0 0.0
      %643 = vmatprep.subr.mxu0 0.0
      %644 = vmatpush1.msra.mxu0 0.0
      %645 = vmatprep.subr.mxu0 0.0
      %646 = vmatpush1.msra.mxu0 0.0
      %647 = vmatprep.subr.mxu0 0.0
      %648 = vmatpush1.msra.mxu0 0.0
      %649 = vmatprep.subr.mxu0 0.0
      %650 = vmatpush1.msra.mxu0 0.0
      %651 = vmatprep.subr.mxu0 0.0
      %652 = vmatpush1.msra.mxu0 0.0
      %653 = vmatprep.subr.mxu0 0.0
      %654 = vmatpush1.msra.mxu0 0.0
      %655 = vmatprep.subr.mxu0 0.0
      %656 = vmatpush1.msra.mxu0 0.0
      %657 = vmatprep.subr.mxu0 0.0
      %658 = vmatpush1.msra.mxu0 0.0
      %659 = vmatprep.subr.mxu0 0.0
      %660 = vmatpush1.msra.mxu0 0.0
      %661 = vmatprep.subr.mxu0 0.0
      %662 = vmatpush1.msra.mxu0 0.0
      %663 = vmatprep.subr.mxu0 0.0
      %664 = vmatpush1.msra.mxu0 0.0
      %665 = vmatprep.subr.mxu0 0.0
      %666 = vmatpush1.msra.mxu0 0.0
      %667 = vmatprep.subr.mxu0 0.0
      %668 = vmatpush1.msra.mxu0 0.0
      %669 = vmatprep.mubr.f32.mxu0 0.0
      %670 = vmatmul.mubr.f32.gmra.mrb[0].mxu0 %v603
      %v671 = vpop.f32.mrb[0].mxu0
      %v672 = vadd.f32 %v183, %v671
      %v673 = vpop.f32.mrb[0].mxu0
      %674 = vdwg.mxu0
      %v675 = vxor.u32 %v672, 2147483648
      %v676 = vmul.f32 %v675, 1.442695
      %v677 = vpow.pop %v676
      %v678 = vadd.f32 %v677, 1.0
      %v679 = vrcp.pop %v678
      %v680 = vmul.f32 1.0, %v679
      %v681 = vtanh.pop %v672
      %v682 = vmul.f32 %v680, %v588
      %684 = vrot.lane.b32.xlu0 %v681, 96
      %v685 = vpop.permute.xlu0 %684
      %v687 = vmul.f32 %v680, %v685
      %689 = vrot.lane.b32.xlu0 %v687, 16
      %v690 = vpop.permute.xlu0 %689
      %v692 = vadd.f32 %v682, %v690
      %v693 = vtanh.pop %v692
      %695 = vrot.lane.b32.xlu0 %v693, 32
      %v696 = vpop.permute.xlu0 %695
      %v698 = vmul.f32 %v680, %v696
      %s699 = scalar_lea.vmem %s165, 10
      %v700 = vld [vmem:[%s699] sm:$0x3]
      %702 = vrot.lane.b32.xlu0 %v698, 96
      %v703 = vpop.permute.xlu0 %702
      %v705 = vsel %vm177, %v700, %v703
      %v707 = vsel %vm185, %v705, 0
      %709 = vmatprep.subr.mxu0 0.0
      %710 = vmatpush1.msra.mxu0 %v171
      %711 = vmatprep.subr.mxu0 0.0
      %712 = vmatpush1.msra.mxu0 %v172
      %713 = vmatprep.subr.mxu0 0.0
      %714 = vmatpush1.msra.mxu0 %v173
      %715 = vmatprep.subr.mxu0 0.0
      %716 = vmatpush1.msra.mxu0 %v174
      %717 = vmatprep.subr.mxu0 0.0
      %718 = vmatpush1.msra.mxu0 0.0
      %719 = vmatprep.subr.mxu0 0.0
      %720 = vmatpush1.msra.mxu0 0.0
      %721 = vmatprep.subr.mxu0 0.0
      %722 = vmatpush1.msra.mxu0 0.0
      %723 = vmatprep.subr.mxu0 0.0
      %724 = vmatpush1.msra.mxu0 0.0
      %725 = vmatprep.subr.mxu0 0.0
      %726 = vmatpush1.msra.mxu0 0.0
      %727 = vmatprep.subr.mxu0 0.0
      %728 = vmatpush1.msra.mxu0 0.0
      %729 = vmatprep.subr.mxu0 0.0
      %730 = vmatpush1.msra.mxu0 0.0
      %731 = vmatprep.subr.mxu0 0.0
      %732 = vmatpush1.msra.mxu0 0.0
      %733 = vmatprep.subr.mxu0 0.0
      %734 = vmatpush1.msra.mxu0 0.0
      %735 = vmatprep.subr.mxu0 0.0
      %736 = vmatpush1.msra.mxu0 0.0
      %737 = vmatprep.subr.mxu0 0.0
      %738 = vmatpush1.msra.mxu0 0.0
      %739 = vmatprep.subr.mxu0 0.0
      %740 = vmatpush1.msra.mxu0 0.0
      %741 = vmatprep.subr.mxu0 0.0
      %742 = vmatpush1.msra.mxu0 0.0
      %743 = vmatprep.subr.mxu0 0.0
      %744 = vmatpush1.msra.mxu0 0.0
      %745 = vmatprep.subr.mxu0 0.0
      %746 = vmatpush1.msra.mxu0 0.0
      %747 = vmatprep.subr.mxu0 0.0
      %748 = vmatpush1.msra.mxu0 0.0
      %749 = vmatprep.subr.mxu0 0.0
      %750 = vmatpush1.msra.mxu0 0.0
      %751 = vmatprep.subr.mxu0 0.0
      %752 = vmatpush1.msra.mxu0 0.0
      %753 = vmatprep.subr.mxu0 0.0
      %754 = vmatpush1.msra.mxu0 0.0
      %755 = vmatprep.subr.mxu0 0.0
      %756 = vmatpush1.msra.mxu0 0.0
      %757 = vmatprep.subr.mxu0 0.0
      %758 = vmatpush1.msra.mxu0 0.0
      %759 = vmatprep.subr.mxu0 0.0
      %760 = vmatpush1.msra.mxu0 0.0
      %761 = vmatprep.subr.mxu0 0.0
      %762 = vmatpush1.msra.mxu0 0.0
      %763 = vmatprep.subr.mxu0 0.0
      %764 = vmatpush1.msra.mxu0 0.0
      %765 = vmatprep.subr.mxu0 0.0
      %766 = vmatpush1.msra.mxu0 0.0
      %767 = vmatprep.subr.mxu0 0.0
      %768 = vmatpush1.msra.mxu0 0.0
      %769 = vmatprep.subr.mxu0 0.0
      %770 = vmatpush1.msra.mxu0 0.0
      %771 = vmatprep.subr.mxu0 0.0
      %772 = vmatpush1.msra.mxu0 0.0
      %773 = vmatprep.mubr.f32.mxu0 0.0
      %774 = vmatmul.mubr.f32.gmra.mrb[0].mxu0 %v707
      %v775 = vpop.f32.mrb[0].mxu0
      %v776 = vadd.f32 %v183, %v775
      %v777 = vpop.f32.mrb[0].mxu0
      %778 = vdwg.mxu0
      %v779 = vxor.u32 %v776, 2147483648
      %v780 = vmul.f32 %v779, 1.442695
      %v781 = vpow.pop %v780
      %v782 = vadd.f32 %v781, 1.0
      %v783 = vrcp.pop %v782
      %v784 = vmul.f32 1.0, %v783
      %v785 = vtanh.pop %v776
      %v786 = vmul.f32 %v784, %v692
      %788 = vrot.lane.b32.xlu0 %v785, 96
      %v789 = vpop.permute.xlu0 %788
      %v791 = vmul.f32 %v784, %v789
      %793 = vrot.lane.b32.xlu0 %v791, 16
      %v794 = vpop.permute.xlu0 %793
      %v796 = vadd.f32 %v786, %v794
      %v797 = vtanh.pop %v796
      %799 = vrot.lane.b32.xlu0 %v797, 32
      %v800 = vpop.permute.xlu0 %799
      %v802 = vmul.f32 %v784, %v800
      %s803 = scalar_lea.vmem %s165, 12
      %v804 = vld [vmem:[%s803] sm:$0x3]
      %806 = vrot.lane.b32.xlu0 %v802, 96
      %v807 = vpop.permute.xlu0 %806
      %v809 = vsel %vm177, %v804, %v807
      %v811 = vsel %vm185, %v809, 0
      %813 = vmatprep.subr.mxu0 0.0
      %814 = vmatpush1.msra.mxu0 %v171
      %815 = vmatprep.subr.mxu0 0.0
      %816 = vmatpush1.msra.mxu0 %v172
      %817 = vmatprep.subr.mxu0 0.0
      %818 = vmatpush1.msra.mxu0 %v173
      %819 = vmatprep.subr.mxu0 0.0
      %820 = vmatpush1.msra.mxu0 %v174
      %821 = vmatprep.subr.mxu0 0.0
      %822 = vmatpush1.msra.mxu0 0.0
      %823 = vmatprep.subr.mxu0 0.0
      %824 = vmatpush1.msra.mxu0 0.0
      %825 = vmatprep.subr.mxu0 0.0
      %826 = vmatpush1.msra.mxu0 0.0
      %827 = vmatprep.subr.mxu0 0.0
      %828 = vmatpush1.msra.mxu0 0.0
      %829 = vmatprep.subr.mxu0 0.0
      %830 = vmatpush1.msra.mxu0 0.0
      %831 = vmatprep.subr.mxu0 0.0
      %832 = vmatpush1.msra.mxu0 0.0
      %833 = vmatprep.subr.mxu0 0.0
      %834 = vmatpush1.msra.mxu0 0.0
      %835 = vmatprep.subr.mxu0 0.0
      %836 = vmatpush1.msra.mxu0 0.0
      %837 = vmatprep.subr.mxu0 0.0
      %838 = vmatpush1.msra.mxu0 0.0
      %839 = vmatprep.subr.mxu0 0.0
      %840 = vmatpush1.msra.mxu0 0.0
      %841 = vmatprep.subr.mxu0 0.0
      %842 = vmatpush1.msra.mxu0 0.0
      %843 = vmatprep.subr.mxu0 0.0
      %844 = vmatpush1.msra.mxu0 0.0
      %845 = vmatprep.subr.mxu0 0.0
      %846 = vmatpush1.msra.mxu0 0.0
      %847 = vmatprep.subr.mxu0 0.0
      %848 = vmatpush1.msra.mxu0 0.0
      %849 = vmatprep.subr.mxu0 0.0
      %850 = vmatpush1.msra.mxu0 0.0
      %851 = vmatprep.subr.mxu0 0.0
      %852 = vmatpush1.msra.mxu0 0.0
      %853 = vmatprep.subr.mxu0 0.0
      %854 = vmatpush1.msra.mxu0 0.0
      %855 = vmatprep.subr.mxu0 0.0
      %856 = vmatpush1.msra.mxu0 0.0
      %857 = vmatprep.subr.mxu0 0.0
      %858 = vmatpush1.msra.mxu0 0.0
      %859 = vmatprep.subr.mxu0 0.0
      %860 = vmatpush1.msra.mxu0 0.0
      %861 = vmatprep.subr.mxu0 0.0
      %862 = vmatpush1.msra.mxu0 0.0
      %863 = vmatprep.subr.mxu0 0.0
      %864 = vmatpush1.msra.mxu0 0.0
      %865 = vmatprep.subr.mxu0 0.0
      %866 = vmatpush1.msra.mxu0 0.0
      %867 = vmatprep.subr.mxu0 0.0
      %868 = vmatpush1.msra.mxu0 0.0
      %869 = vmatprep.subr.mxu0 0.0
      %870 = vmatpush1.msra.mxu0 0.0
      %871 = vmatprep.subr.mxu0 0.0
      %872 = vmatpush1.msra.mxu0 0.0
      %873 = vmatprep.subr.mxu0 0.0
      %874 = vmatpush1.msra.mxu0 0.0
      %875 = vmatprep.subr.mxu0 0.0
      %876 = vmatpush1.msra.mxu0 0.0
      %877 = vmatprep.mubr.f32.mxu0 0.0
      %878 = vmatmul.mubr.f32.gmra.mrb[0].mxu0 %v811
      %v879 = vpop.f32.mrb[0].mxu0
      %v880 = vadd.f32 %v183, %v879
      %v881 = vpop.f32.mrb[0].mxu0
      %882 = vdwg.mxu0
      %v883 = vxor.u32 %v880, 2147483648
      %v884 = vmul.f32 %v883, 1.442695
      %v885 = vpow.pop %v884
      %v886 = vadd.f32 %v885, 1.0
      %v887 = vrcp.pop %v886
      %v888 = vmul.f32 1.0, %v887
      %v889 = vtanh.pop %v880
      %v890 = vmul.f32 %v888, %v796
      %892 = vrot.lane.b32.xlu0 %v889, 96
      %v893 = vpop.permute.xlu0 %892
      %v895 = vmul.f32 %v888, %v893
      %897 = vrot.lane.b32.xlu0 %v895, 16
      %v898 = vpop.permute.xlu0 %897
      %v900 = vadd.f32 %v890, %v898
      %v901 = vtanh.pop %v900
      %903 = vrot.lane.b32.xlu0 %v901, 32
      %v904 = vpop.permute.xlu0 %903
      %v906 = vmul.f32 %v888, %v904
      %s907 = scalar_lea.vmem %s165, 14
      %v908 = vld [vmem:[%s907] sm:$0x3]
      %910 = vrot.lane.b32.xlu0 %v906, 96
      %v911 = vpop.permute.xlu0 %910
      %v913 = vsel %vm177, %v908, %v911
      %v915 = vsel %vm185, %v913, 0
      %917 = vmatprep.subr.mxu0 0.0
      %918 = vmatpush1.msra.mxu0 %v171
      %919 = vmatprep.subr.mxu0 0.0
      %920 = vmatpush1.msra.mxu0 %v172
      %921 = vmatprep.subr.mxu0 0.0
      %922 = vmatpush1.msra.mxu0 %v173
      %923 = vmatprep.subr.mxu0 0.0
      %924 = vmatpush1.msra.mxu0 %v174
      %925 = vmatprep.subr.mxu0 0.0
      %926 = vmatpush1.msra.mxu0 0.0
      %927 = vmatprep.subr.mxu0 0.0
      %928 = vmatpush1.msra.mxu0 0.0
      %929 = vmatprep.subr.mxu0 0.0
      %930 = vmatpush1.msra.mxu0 0.0
      %931 = vmatprep.subr.mxu0 0.0
      %932 = vmatpush1.msra.mxu0 0.0
      %933 = vmatprep.subr.mxu0 0.0
      %934 = vmatpush1.msra.mxu0 0.0
      %935 = vmatprep.subr.mxu0 0.0
      %936 = vmatpush1.msra.mxu0 0.0
      %937 = vmatprep.subr.mxu0 0.0
      %938 = vmatpush1.msra.mxu0 0.0
      %939 = vmatprep.subr.mxu0 0.0
      %940 = vmatpush1.msra.mxu0 0.0
      %941 = vmatprep.subr.mxu0 0.0
      %942 = vmatpush1.msra.mxu0 0.0
      %943 = vmatprep.subr.mxu0 0.0
      %944 = vmatpush1.msra.mxu0 0.0
      %945 = vmatprep.subr.mxu0 0.0
      %946 = vmatpush1.msra.mxu0 0.0
      %947 = vmatprep.subr.mxu0 0.0
      %948 = vmatpush1.msra.mxu0 0.0
      %949 = vmatprep.subr.mxu0 0.0
      %950 = vmatpush1.msra.mxu0 0.0
      %951 = vmatprep.subr.mxu0 0.0
      %952 = vmatpush1.msra.mxu0 0.0
      %953 = vmatprep.subr.mxu0 0.0
      %954 = vmatpush1.msra.mxu0 0.0
      %955 = vmatprep.subr.mxu0 0.0
      %956 = vmatpush1.msra.mxu0 0.0
      %957 = vmatprep.subr.mxu0 0.0
      %958 = vmatpush1.msra.mxu0 0.0
      %959 = vmatprep.subr.mxu0 0.0
      %960 = vmatpush1.msra.mxu0 0.0
      %961 = vmatprep.subr.mxu0 0.0
      %962 = vmatpush1.msra.mxu0 0.0
      %963 = vmatprep.subr.mxu0 0.0
      %964 = vmatpush1.msra.mxu0 0.0
      %965 = vmatprep.subr.mxu0 0.0
      %966 = vmatpush1.msra.mxu0 0.0
      %967 = vmatprep.subr.mxu0 0.0
      %968 = vmatpush1.msra.mxu0 0.0
      %969 = vmatprep.subr.mxu0 0.0
      %970 = vmatpush1.msra.mxu0 0.0
      %971 = vmatprep.subr.mxu0 0.0
      %972 = vmatpush1.msra.mxu0 0.0
      %973 = vmatprep.subr.mxu0 0.0
      %974 = vmatpush1.msra.mxu0 0.0
      %975 = vmatprep.subr.mxu0 0.0
      %976 = vmatpush1.msra.mxu0 0.0
      %977 = vmatprep.subr.mxu0 0.0
      %978 = vmatpush1.msra.mxu0 0.0
      %979 = vmatprep.subr.mxu0 0.0
      %980 = vmatpush1.msra.mxu0 0.0
      %981 = vmatprep.mubr.f32.mxu0 0.0
      %982 = vmatmul.mubr.f32.gmra.mrb[0].mxu0 %v915
      %v983 = vpop.f32.mrb[0].mxu0
      %v984 = vadd.f32 %v183, %v983
      %v985 = vpop.f32.mrb[0].mxu0
      %986 = vdwg.mxu0
      %v987 = vxor.u32 %v984, 2147483648
      %v988 = vmul.f32 %v987, 1.442695
      %v989 = vpow.pop %v988
      %v990 = vadd.f32 %v989, 1.0
      %v991 = vrcp.pop %v990
      %v992 = vmul.f32 1.0, %v991
      %v993 = vtanh.pop %v984
      %v994 = vmul.f32 %v992, %v900
      %996 = vrot.lane.b32.xlu0 %v993, 96
      %v997 = vpop.permute.xlu0 %996
      %v999 = vmul.f32 %v992, %v997
      %1001 = vrot.lane.b32.xlu0 %v999, 16
      %v1002 = vpop.permute.xlu0 %1001
      %v1004 = vadd.f32 %v994, %v1002
      %v1005 = vtanh.pop %v1004
      %1007 = vrot.lane.b32.xlu0 %v1005, 32
      %v1008 = vpop.permute.xlu0 %1007
      %v1010 = vmul.f32 %v992, %v1008
      %v1012 = vunpack.c.l.s4 1966171168
      %v1013 = vunpack.c.0.s8 %v1012
      %v1014 = vlaneseq
      %v1015 = vshrl.u32 %v1014, 7
      %v1016 = vsub.s32 %v1013, %v1015
      %v1017 = vrot.slane %v282, %v1016
      %v1018 = vcombine.high %v1017, %v1017
      %v1020 = vunpack.c.l.s4 1966171168
      %v1021 = vunpack.c.0.s8 %v1020
      %v1022 = vlaneseq
      %v1023 = vshrl.u32 %v1022, 7
      %v1024 = vsub.s32 %v1021, %v1023
      %v1025 = vrot.slane %v1017, %v1024
      %v1027 = vunpack.c.l.s4 1966171168
      %v1028 = vunpack.c.0.s8 %v1027
      %v1029 = vlaneseq
      %v1030 = vshrl.u32 %v1029, 7
      %v1031 = vsub.s32 %v1028, %v1030
      %v1032 = vrot.slane %v1018, %v1031
      %v1036 = vunpack.c.l.s4 1966171168
      %v1037 = vunpack.c.0.s8 %v1036
      %v1038 = vlaneseq
      %v1039 = vshrl.u32 %v1038, 7
      %v1040 = vsub.s32 %v1037, %v1039
      %v1041 = vrot.slane %v386, %v1040
      %v1042 = vcombine.high %v1041, %v1041
      %v1044 = vunpack.c.l.s4 1966171168
      %v1045 = vunpack.c.0.s8 %v1044
      %v1046 = vlaneseq
      %v1047 = vshrl.u32 %v1046, 7
      %v1048 = vsub.s32 %v1045, %v1047
      %v1049 = vrot.slane %v1041, %v1048
      %v1051 = vunpack.c.l.s4 1966171168
      %v1052 = vunpack.c.0.s8 %v1051
      %v1053 = vlaneseq
      %v1054 = vshrl.u32 %v1053, 7
      %v1055 = vsub.s32 %v1052, %v1054
      %v1056 = vrot.slane %v1042, %v1055
      %v1058 = vunpack.c.l.s4 1966171168
      %v1059 = vunpack.c.0.s8 %v1058
      %v1060 = vlaneseq
      %v1061 = vshrl.u32 %v1060, 7
      %v1062 = vsub.s32 %v1059, %v1061
      %v1063 = vrot.slane %v490, %v1062
      %v1064 = vcombine.high %v1063, %v1063
      %v1066 = vunpack.c.l.s4 1966171168
      %v1067 = vunpack.c.0.s8 %v1066
      %v1068 = vlaneseq
      %v1069 = vshrl.u32 %v1068, 7
      %v1070 = vsub.s32 %v1067, %v1069
      %v1071 = vrot.slane %v1063, %v1070
      %v1073 = vunpack.c.l.s4 1966171168
      %v1074 = vunpack.c.0.s8 %v1073
      %v1075 = vlaneseq
      %v1076 = vshrl.u32 %v1075, 7
      %v1077 = vsub.s32 %v1074, %v1076
      %v1078 = vrot.slane %v1064, %v1077
      %v1080 = vunpack.c.l.s4 1966171168
      %v1081 = vunpack.c.0.s8 %v1080
      %v1082 = vlaneseq
      %v1083 = vshrl.u32 %v1082, 7
      %v1084 = vsub.s32 %v1081, %v1083
      %v1085 = vrot.slane %v594, %v1084
      %v1086 = vcombine.high %v1085, %v1085
      %v1088 = vunpack.c.l.s4 1966171168
      %v1089 = vunpack.c.0.s8 %v1088
      %v1090 = vlaneseq
      %v1091 = vshrl.u32 %v1090, 7
      %v1092 = vsub.s32 %v1089, %v1091
      %v1093 = vrot.slane %v1085, %v1092
      %v1095 = vunpack.c.l.s4 1966171168
      %v1096 = vunpack.c.0.s8 %v1095
      %v1097 = vlaneseq
      %v1098 = vshrl.u32 %v1097, 7
      %v1099 = vsub.s32 %v1096, %v1098
      %v1100 = vrot.slane %v1086, %v1099
      %v1102 = vunpack.c.l.s4 1966171168
      %v1103 = vunpack.c.0.s8 %v1102
      %v1104 = vlaneseq
      %v1105 = vshrl.u32 %v1104, 7
      %v1106 = vsub.s32 %v1103, %v1105
      %v1107 = vrot.slane %v698, %v1106
      %v1108 = vcombine.high %v1107, %v1107
      %v1110 = vunpack.c.l.s4 1966171168
      %v1111 = vunpack.c.0.s8 %v1110
      %v1112 = vlaneseq
      %v1113 = vshrl.u32 %v1112, 7
      %v1114 = vsub.s32 %v1111, %v1113
      %v1115 = vrot.slane %v1107, %v1114
      %v1117 = vunpack.c.l.s4 1966171168
      %v1118 = vunpack.c.0.s8 %v1117
      %v1119 = vlaneseq
      %v1120 = vshrl.u32 %v1119, 7
      %v1121 = vsub.s32 %v1118, %v1120
      %v1122 = vrot.slane %v1108, %v1121
      %v1124 = vunpack.c.l.s4 1966171168
      %v1125 = vunpack.c.0.s8 %v1124
      %v1126 = vlaneseq
      %v1127 = vshrl.u32 %v1126, 7
      %v1128 = vsub.s32 %v1125, %v1127
      %v1129 = vrot.slane %v802, %v1128
      %v1130 = vcombine.high %v1129, %v1129
      %v1132 = vunpack.c.l.s4 1966171168
      %v1133 = vunpack.c.0.s8 %v1132
      %v1134 = vlaneseq
      %v1135 = vshrl.u32 %v1134, 7
      %v1136 = vsub.s32 %v1133, %v1135
      %v1137 = vrot.slane %v1129, %v1136
      %v1139 = vunpack.c.l.s4 1966171168
      %v1140 = vunpack.c.0.s8 %v1139
      %v1141 = vlaneseq
      %v1142 = vshrl.u32 %v1141, 7
      %v1143 = vsub.s32 %v1140, %v1142
      %v1144 = vrot.slane %v1130, %v1143
      %v1146 = vunpack.c.l.s4 1966171168
      %v1147 = vunpack.c.0.s8 %v1146
      %v1148 = vlaneseq
      %v1149 = vshrl.u32 %v1148, 7
      %v1150 = vsub.s32 %v1147, %v1149
      %v1151 = vrot.slane %v906, %v1150
      %v1152 = vcombine.high %v1151, %v1151
      %v1154 = vunpack.c.l.s4 1966171168
      %v1155 = vunpack.c.0.s8 %v1154
      %v1156 = vlaneseq
      %v1157 = vshrl.u32 %v1156, 7
      %v1158 = vsub.s32 %v1155, %v1157
      %v1159 = vrot.slane %v1151, %v1158
      %v1161 = vunpack.c.l.s4 1966171168
      %v1162 = vunpack.c.0.s8 %v1161
      %v1163 = vlaneseq
      %v1164 = vshrl.u32 %v1163, 7
      %v1165 = vsub.s32 %v1162, %v1164
      %v1166 = vrot.slane %v1152, %v1165
      %v1169 = vunpack.c.l.s4 1966171168
      %v1170 = vunpack.c.0.s8 %v1169
      %v1171 = vlaneseq
      %v1172 = vshrl.u32 %v1171, 7
      %v1173 = vsub.s32 %v1170, %v1172
      %v1174 = vrot.slane %v1010, %v1173
      %v1175 = vcombine.high %v1174, %v1174
      %v1177 = vunpack.c.l.s4 1966171168
      %v1178 = vunpack.c.0.s8 %v1177
      %v1179 = vlaneseq
      %v1180 = vshrl.u32 %v1179, 7
      %v1181 = vsub.s32 %v1178, %v1180
      %v1182 = vrot.slane %v1174, %v1181
      %v1184 = vunpack.c.l.s4 1966171168
      %v1185 = vunpack.c.0.s8 %v1184
      %v1186 = vlaneseq
      %v1187 = vshrl.u32 %v1186, 7
      %v1188 = vsub.s32 %v1185, %v1187
      %v1189 = vrot.slane %v1175, %v1188
      %v1190 = vlaneseq
      %v1191 = vshrl.u32 %v1190, 7
      %v1192 = vsub.s32 0, %v1191
      %v1193 = vrot.slane %v1049, %v1192
      %v1194 = vlaneseq
      %v1195 = vshrl.u32 %v1194, 7
      %v1196 = vsub.s32 0, %v1195
      %v1197 = vrot.slane %v1056, %v1196
      %v1200 = vlaneseq
      %v1201 = vshrl.u32 %v1200, 7
      %v1202 = vsub.s32 0, %v1201
      %v1203 = vrot.slane %v1071, %v1202
      %v1204 = vlaneseq
      %v1205 = vshrl.u32 %v1204, 7
      %v1206 = vsub.s32 0, %v1205
      %v1207 = vrot.slane %v1078, %v1206
      %v1210 = vlaneseq
      %v1211 = vshrl.u32 %v1210, 7
      %v1212 = vsub.s32 0, %v1211
      %v1213 = vrot.slane %v1093, %v1212
      %v1214 = vlaneseq
      %v1215 = vshrl.u32 %v1214, 7
      %v1216 = vsub.s32 0, %v1215
      %v1217 = vrot.slane %v1100, %v1216
      %v1220 = vlaneseq
      %v1221 = vshrl.u32 %v1220, 7
      %v1222 = vsub.s32 0, %v1221
      %v1223 = vrot.slane %v1115, %v1222
      %v1224 = vlaneseq
      %v1225 = vshrl.u32 %v1224, 7
      %v1226 = vsub.s32 0, %v1225
      %v1227 = vrot.slane %v1122, %v1226
      %v1230 = vlaneseq
      %v1231 = vshrl.u32 %v1230, 7
      %v1232 = vsub.s32 0, %v1231
      %v1233 = vrot.slane %v1137, %v1232
      %v1234 = vlaneseq
      %v1235 = vshrl.u32 %v1234, 7
      %v1236 = vsub.s32 0, %v1235
      %v1237 = vrot.slane %v1144, %v1236
      %v1240 = vlaneseq
      %v1241 = vshrl.u32 %v1240, 7
      %v1242 = vsub.s32 0, %v1241
      %v1243 = vrot.slane %v1159, %v1242
      %v1244 = vlaneseq
      %v1245 = vshrl.u32 %v1244, 7
      %v1246 = vsub.s32 0, %v1245
      %v1247 = vrot.slane %v1166, %v1246
      %v1250 = vlaneseq
      %v1251 = vshrl.u32 %v1250, 7
      %v1252 = vsub.s32 0, %v1251
      %v1253 = vrot.slane %v1182, %v1252
      %v1254 = vlaneseq
      %v1255 = vshrl.u32 %v1254, 7
      %v1256 = vsub.s32 0, %v1255
      %v1257 = vrot.slane %v1189, %v1256
      %vm1260 = vcmask 1040384
      %v1261 = vsel %vm1260, %v1025, %v1193
      %v1262 = vsel %vm1260, %v1032, %v1197
      %vm1263 = vcmask 1041408
      %v1264 = vsel %vm1263, %v1261, %v1203
      %v1265 = vsel %vm1263, %v1262, %v1207
      %vm1266 = vcmask 1042432
      %v1267 = vsel %vm1266, %v1264, %v1213
      %v1268 = vsel %vm1266, %v1265, %v1217
      %vm1269 = vcmask 1043456
      %v1270 = vsel %vm1269, %v1267, %v1223
      %v1271 = vsel %vm1269, %v1268, %v1227
      %vm1272 = vcmask 1044480
      %v1273 = vsel %vm1272, %v1270, %v1233
      %v1274 = vsel %vm1272, %v1271, %v1237
      %vm1275 = vcmask 1045504
      %v1276 = vsel %vm1275, %v1273, %v1243
      %v1277 = vsel %vm1275, %v1274, %v1247
      %vm1278 = vcmask 1046528
      %v1279 = vsel %vm1278, %v1276, %v1253
      %v1280 = vsel %vm1278, %v1277, %v1257
      %s1281 = scalar_lea.vmem %s1, 32
      %v1282 = vld [vmem:[%s1281] sm:$0xff]
      %v1283 = vld [vmem:[%s1281 + $0x8] sm:$0xff]
      %v1284 = vld [vmem:[%s1281 + $0x10] sm:$0xff]
      %v1285 = vld [vmem:[%s1281 + $0x18] sm:$0xff]
      %s1286 = scalar_lea.vmem %s2, 1
      %v1287 = vld [vmem:[%s1286] sm:$0x1]
      %v1288 = vsel %vm177, %v908, 0.0
      %v1290 = vlaneseq
      %v1291 = vshrl.u32 %v1290, 7
      %v1292 = vsub.s32 0, %v1291
      %v1293 = vrot.slane %v1287, %v1292
      %v1296 = vsel %vm185, %v1288, 0
      %1298 = vmatprep.subr.mxu0 0.0
      %1299 = vmatpush1.msra.mxu0 %v1282
      %1300 = vmatprep.subr.mxu0 0.0
      %1301 = vmatpush1.msra.mxu0 %v1283
      %1302 = vmatprep.subr.mxu0 0.0
      %1303 = vmatpush1.msra.mxu0 %v1284
      %1304 = vmatprep.subr.mxu0 0.0
      %1305 = vmatpush1.msra.mxu0 %v1285
      %1306 = vmatprep.subr.mxu0 0.0
      %1307 = vmatpush1.msra.mxu0 0.0
      %1308 = vmatprep.subr.mxu0 0.0
      %1309 = vmatpush1.msra.mxu0 0.0
      %1310 = vmatprep.subr.mxu0 0.0
      %1311 = vmatpush1.msra.mxu0 0.0
      %1312 = vmatprep.subr.mxu0 0.0
      %1313 = vmatpush1.msra.mxu0 0.0
      %1314 = vmatprep.subr.mxu0 0.0
      %1315 = vmatpush1.msra.mxu0 0.0
      %1316 = vmatprep.subr.mxu0 0.0
      %1317 = vmatpush1.msra.mxu0 0.0
      %1318 = vmatprep.subr.mxu0 0.0
      %1319 = vmatpush1.msra.mxu0 0.0
      %1320 = vmatprep.subr.mxu0 0.0
      %1321 = vmatpush1.msra.mxu0 0.0
      %1322 = vmatprep.subr.mxu0 0.0
      %1323 = vmatpush1.msra.mxu0 0.0
      %1324 = vmatprep.subr.mxu0 0.0
      %1325 = vmatpush1.msra.mxu0 0.0
      %1326 = vmatprep.subr.mxu0 0.0
      %1327 = vmatpush1.msra.mxu0 0.0
      %1328 = vmatprep.subr.mxu0 0.0
      %1329 = vmatpush1.msra.mxu0 0.0
      %1330 = vmatprep.subr.mxu0 0.0
      %1331 = vmatpush1.msra.mxu0 0.0
      %1332 = vmatprep.subr.mxu0 0.0
      %1333 = vmatpush1.msra.mxu0 0.0
      %1334 = vmatprep.subr.mxu0 0.0
      %1335 = vmatpush1.msra.mxu0 0.0
      %1336 = vmatprep.subr.mxu0 0.0
      %1337 = vmatpush1.msra.mxu0 0.0
      %1338 = vmatprep.subr.mxu0 0.0
      %1339 = vmatpush1.msra.mxu0 0.0
      %1340 = vmatprep.subr.mxu0 0.0
      %1341 = vmatpush1.msra.mxu0 0.0
      %1342 = vmatprep.subr.mxu0 0.0
      %1343 = vmatpush1.msra.mxu0 0.0
      %1344 = vmatprep.subr.mxu0 0.0
      %1345 = vmatpush1.msra.mxu0 0.0
      %1346 = vmatprep.subr.mxu0 0.0
      %1347 = vmatpush1.msra.mxu0 0.0
      %1348 = vmatprep.subr.mxu0 0.0
      %1349 = vmatpush1.msra.mxu0 0.0
      %1350 = vmatprep.subr.mxu0 0.0
      %1351 = vmatpush1.msra.mxu0 0.0
      %1352 = vmatprep.subr.mxu0 0.0
      %1353 = vmatpush1.msra.mxu0 0.0
      %1354 = vmatprep.subr.mxu0 0.0
      %1355 = vmatpush1.msra.mxu0 0.0
      %1356 = vmatprep.subr.mxu0 0.0
      %1357 = vmatpush1.msra.mxu0 0.0
      %1358 = vmatprep.subr.mxu0 0.0
      %1359 = vmatpush1.msra.mxu0 0.0
      %1360 = vmatprep.subr.mxu0 0.0
      %1361 = vmatpush1.msra.mxu0 0.0
      %1362 = vmatprep.mubr.f32.mxu0 0.0
      %1363 = vmatmul.mubr.f32.gmra.mrb[0].mxu0 %v1296
      %v1364 = vpop.f32.mrb[0].mxu0
      %v1365 = vadd.f32 %v1293, %v1364
      %v1366 = vpop.f32.mrb[0].mxu0
      %1367 = vdwg.mxu0
      %v1368 = vxor.u32 %v1365, 2147483648
      %v1369 = vmul.f32 %v1368, 1.442695
      %v1370 = vpow.pop %v1369
      %v1371 = vadd.f32 %v1370, 1.0
      %v1372 = vrcp.pop %v1371
      %v1373 = vmul.f32 1.0, %v1372
      %v1374 = vtanh.pop %v1365
      %v1375 = vmul.f32 %v1373, 0.0
      %1377 = vrot.lane.b32.xlu0 %v1374, 96
      %v1378 = vpop.permute.xlu0 %1377
      %v1380 = vmul.f32 %v1373, %v1378
      %1382 = vrot.lane.b32.xlu0 %v1380, 16
      %v1383 = vpop.permute.xlu0 %1382
      %v1385 = vadd.f32 %v1375, %v1383
      %v1386 = vtanh.pop %v1385
      %1388 = vrot.lane.b32.xlu0 %v1386, 32
      %v1389 = vpop.permute.xlu0 %1388
      %v1391 = vmul.f32 %v1373, %v1389
      %1393 = vrot.lane.b32.xlu0 %v1391, 96
      %v1394 = vpop.permute.xlu0 %1393
      %v1396 = vsel %vm177, %v804, %v1394
      %v1398 = vsel %vm185, %v1396, 0
      %1400 = vmatprep.subr.mxu0 0.0
      %1401 = vmatpush1.msra.mxu0 %v1282
      %1402 = vmatprep.subr.mxu0 0.0
      %1403 = vmatpush1.msra.mxu0 %v1283
      %1404 = vmatprep.subr.mxu0 0.0
      %1405 = vmatpush1.msra.mxu0 %v1284
      %1406 = vmatprep.subr.mxu0 0.0
      %1407 = vmatpush1.msra.mxu0 %v1285
      %1408 = vmatprep.subr.mxu0 0.0
      %1409 = vmatpush1.msra.mxu0 0.0
      %1410 = vmatprep.subr.mxu0 0.0
      %1411 = vmatpush1.msra.mxu0 0.0
      %1412 = vmatprep.subr.mxu0 0.0
      %1413 = vmatpush1.msra.mxu0 0.0
      %1414 = vmatprep.subr.mxu0 0.0
      %1415 = vmatpush1.msra.mxu0 0.0
      %1416 = vmatprep.subr.mxu0 0.0
      %1417 = vmatpush1.msra.mxu0 0.0
      %1418 = vmatprep.subr.mxu0 0.0
      %1419 = vmatpush1.msra.mxu0 0.0
      %1420 = vmatprep.subr.mxu0 0.0
      %1421 = vmatpush1.msra.mxu0 0.0
      %1422 = vmatprep.subr.mxu0 0.0
      %1423 = vmatpush1.msra.mxu0 0.0
      %1424 = vmatprep.subr.mxu0 0.0
      %1425 = vmatpush1.msra.mxu0 0.0
      %1426 = vmatprep.subr.mxu0 0.0
      %1427 = vmatpush1.msra.mxu0 0.0
      %1428 = vmatprep.subr.mxu0 0.0
      %1429 = vmatpush1.msra.mxu0 0.0
      %1430 = vmatprep.subr.mxu0 0.0
      %1431 = vmatpush1.msra.mxu0 0.0
      %1432 = vmatprep.subr.mxu0 0.0
      %1433 = vmatpush1.msra.mxu0 0.0
      %1434 = vmatprep.subr.mxu0 0.0
      %1435 = vmatpush1.msra.mxu0 0.0
      %1436 = vmatprep.subr.mxu0 0.0
      %1437 = vmatpush1.msra.mxu0 0.0
      %1438 = vmatprep.subr.mxu0 0.0
      %1439 = vmatpush1.msra.mxu0 0.0
      %1440 = vmatprep.subr.mxu0 0.0
      %1441 = vmatpush1.msra.mxu0 0.0
      %1442 = vmatprep.subr.mxu0 0.0
      %1443 = vmatpush1.msra.mxu0 0.0
      %1444 = vmatprep.subr.mxu0 0.0
      %1445 = vmatpush1.msra.mxu0 0.0
      %1446 = vmatprep.subr.mxu0 0.0
      %1447 = vmatpush1.msra.mxu0 0.0
      %1448 = vmatprep.subr.mxu0 0.0
      %1449 = vmatpush1.msra.mxu0 0.0
      %1450 = vmatprep.subr.mxu0 0.0
      %1451 = vmatpush1.msra.mxu0 0.0
      %1452 = vmatprep.subr.mxu0 0.0
      %1453 = vmatpush1.msra.mxu0 0.0
      %1454 = vmatprep.subr.mxu0 0.0
      %1455 = vmatpush1.msra.mxu0 0.0
      %1456 = vmatprep.subr.mxu0 0.0
      %1457 = vmatpush1.msra.mxu0 0.0
      %1458 = vmatprep.subr.mxu0 0.0
      %1459 = vmatpush1.msra.mxu0 0.0
      %1460 = vmatprep.subr.mxu0 0.0
      %1461 = vmatpush1.msra.mxu0 0.0
      %1462 = vmatprep.subr.mxu0 0.0
      %1463 = vmatpush1.msra.mxu0 0.0
      %1464 = vmatprep.mubr.f32.mxu0 0.0
      %1465 = vmatmul.mubr.f32.gmra.mrb[0].mxu0 %v1398
      %v1466 = vpop.f32.mrb[0].mxu0
      %v1467 = vadd.f32 %v1293, %v1466
      %v1468 = vpop.f32.mrb[0].mxu0
      %1469 = vdwg.mxu0
      %v1470 = vxor.u32 %v1467, 2147483648
      %v1471 = vmul.f32 %v1470, 1.442695
      %v1472 = vpow.pop %v1471
      %v1473 = vadd.f32 %v1472, 1.0
      %v1474 = vrcp.pop %v1473
      %v1475 = vmul.f32 1.0, %v1474
      %v1476 = vtanh.pop %v1467
      %v1477 = vmul.f32 %v1475, %v1385
      %1479 = vrot.lane.b32.xlu0 %v1476, 96
      %v1480 = vpop.permute.xlu0 %1479
      %v1482 = vmul.f32 %v1475, %v1480
      %1484 = vrot.lane.b32.xlu0 %v1482, 16
      %v1485 = vpop.permute.xlu0 %1484
      %v1487 = vadd.f32 %v1477, %v1485
      %v1488 = vtanh.pop %v1487
      %1490 = vrot.lane.b32.xlu0 %v1488, 32
      %v1491 = vpop.permute.xlu0 %1490
      %v1493 = vmul.f32 %v1475, %v1491
      %1495 = vrot.lane.b32.xlu0 %v1493, 96
      %v1496 = vpop.permute.xlu0 %1495
      %v1498 = vsel %vm177, %v700, %v1496
      %v1500 = vsel %vm185, %v1498, 0
      %1502 = vmatprep.subr.mxu0 0.0
      %1503 = vmatpush1.msra.mxu0 %v1282
      %1504 = vmatprep.subr.mxu0 0.0
      %1505 = vmatpush1.msra.mxu0 %v1283
      %1506 = vmatprep.subr.mxu0 0.0
      %1507 = vmatpush1.msra.mxu0 %v1284
      %1508 = vmatprep.subr.mxu0 0.0
      %1509 = vmatpush1.msra.mxu0 %v1285
      %1510 = vmatprep.subr.mxu0 0.0
      %1511 = vmatpush1.msra.mxu0 0.0
      %1512 = vmatprep.subr.mxu0 0.0
      %1513 = vmatpush1.msra.mxu0 0.0
      %1514 = vmatprep.subr.mxu0 0.0
      %1515 = vmatpush1.msra.mxu0 0.0
      %1516 = vmatprep.subr.mxu0 0.0
      %1517 = vmatpush1.msra.mxu0 0.0
      %1518 = vmatprep.subr.mxu0 0.0
      %1519 = vmatpush1.msra.mxu0 0.0
      %1520 = vmatprep.subr.mxu0 0.0
      %1521 = vmatpush1.msra.mxu0 0.0
      %1522 = vmatprep.subr.mxu0 0.0
      %1523 = vmatpush1.msra.mxu0 0.0
      %1524 = vmatprep.subr.mxu0 0.0
      %1525 = vmatpush1.msra.mxu0 0.0
      %1526 = vmatprep.subr.mxu0 0.0
      %1527 = vmatpush1.msra.mxu0 0.0
      %1528 = vmatprep.subr.mxu0 0.0
      %1529 = vmatpush1.msra.mxu0 0.0
      %1530 = vmatprep.subr.mxu0 0.0
      %1531 = vmatpush1.msra.mxu0 0.0
      %1532 = vmatprep.subr.mxu0 0.0
      %1533 = vmatpush1.msra.mxu0 0.0
      %1534 = vmatprep.subr.mxu0 0.0
      %1535 = vmatpush1.msra.mxu0 0.0
      %1536 = vmatprep.subr.mxu0 0.0
      %1537 = vmatpush1.msra.mxu0 0.0
      %1538 = vmatprep.subr.mxu0 0.0
      %1539 = vmatpush1.msra.mxu0 0.0
      %1540 = vmatprep.subr.mxu0 0.0
      %1541 = vmatpush1.msra.mxu0 0.0
      %1542 = vmatprep.subr.mxu0 0.0
      %1543 = vmatpush1.msra.mxu0 0.0
      %1544 = vmatprep.subr.mxu0 0.0
      %1545 = vmatpush1.msra.mxu0 0.0
      %1546 = vmatprep.subr.mxu0 0.0
      %1547 = vmatpush1.msra.mxu0 0.0
      %1548 = vmatprep.subr.mxu0 0.0
      %1549 = vmatpush1.msra.mxu0 0.0
      %1550 = vmatprep.subr.mxu0 0.0
      %1551 = vmatpush1.msra.mxu0 0.0
      %1552 = vmatprep.subr.mxu0 0.0
      %1553 = vmatpush1.msra.mxu0 0.0
      %1554 = vmatprep.subr.mxu0 0.0
      %1555 = vmatpush1.msra.mxu0 0.0
      %1556 = vmatprep.subr.mxu0 0.0
      %1557 = vmatpush1.msra.mxu0 0.0
      %1558 = vmatprep.subr.mxu0 0.0
      %1559 = vmatpush1.msra.mxu0 0.0
      %1560 = vmatprep.subr.mxu0 0.0
      %1561 = vmatpush1.msra.mxu0 0.0
      %1562 = vmatprep.subr.mxu0 0.0
      %1563 = vmatpush1.msra.mxu0 0.0
      %1564 = vmatprep.subr.mxu0 0.0
      %1565 = vmatpush1.msra.mxu0 0.0
      %1566 = vmatprep.mubr.f32.mxu0 0.0
      %1567 = vmatmul.mubr.f32.gmra.mrb[0].mxu0 %v1500
      %v1568 = vpop.f32.mrb[0].mxu0
      %v1569 = vadd.f32 %v1293, %v1568
      %v1570 = vpop.f32.mrb[0].mxu0
      %1571 = vdwg.mxu0
      %v1572 = vxor.u32 %v1569, 2147483648
      %v1573 = vmul.f32 %v1572, 1.442695
      %v1574 = vpow.pop %v1573
      %v1575 = vadd.f32 %v1574, 1.0
      %v1576 = vrcp.pop %v1575
      %v1577 = vmul.f32 1.0, %v1576
      %v1578 = vtanh.pop %v1569
      %v1579 = vmul.f32 %v1577, %v1487
      %1581 = vrot.lane.b32.xlu0 %v1578, 96
      %v1582 = vpop.permute.xlu0 %1581
      %v1584 = vmul.f32 %v1577, %v1582
      %1586 = vrot.lane.b32.xlu0 %v1584, 16
      %v1587 = vpop.permute.xlu0 %1586
      %v1589 = vadd.f32 %v1579, %v1587
      %v1590 = vtanh.pop %v1589
      %1592 = vrot.lane.b32.xlu0 %v1590, 32
      %v1593 = vpop.permute.xlu0 %1592
      %v1595 = vmul.f32 %v1577, %v1593
      %1597 = vrot.lane.b32.xlu0 %v1595, 96
      %v1598 = vpop.permute.xlu0 %1597
      %v1600 = vsel %vm177, %v596, %v1598
      %v1602 = vsel %vm185, %v1600, 0
      %1604 = vmatprep.subr.mxu0 0.0
      %1605 = vmatpush1.msra.mxu0 %v1282
      %1606 = vmatprep.subr.mxu0 0.0
      %1607 = vmatpush1.msra.mxu0 %v1283
      %1608 = vmatprep.subr.mxu0 0.0
      %1609 = vmatpush1.msra.mxu0 %v1284
      %1610 = vmatprep.subr.mxu0 0.0
      %1611 = vmatpush1.msra.mxu0 %v1285
      %1612 = vmatprep.subr.mxu0 0.0
      %1613 = vmatpush1.msra.mxu0 0.0
      %1614 = vmatprep.subr.mxu0 0.0
      %1615 = vmatpush1.msra.mxu0 0.0
      %1616 = vmatprep.subr.mxu0 0.0
      %1617 = vmatpush1.msra.mxu0 0.0
      %1618 = vmatprep.subr.mxu0 0.0
      %1619 = vmatpush1.msra.mxu0 0.0
      %1620 = vmatprep.subr.mxu0 0.0
      %1621 = vmatpush1.msra.mxu0 0.0
      %1622 = vmatprep.subr.mxu0 0.0
      %1623 = vmatpush1.msra.mxu0 0.0
      %1624 = vmatprep.subr.mxu0 0.0
      %1625 = vmatpush1.msra.mxu0 0.0
      %1626 = vmatprep.subr.mxu0 0.0
      %1627 = vmatpush1.msra.mxu0 0.0
      %1628 = vmatprep.subr.mxu0 0.0
      %1629 = vmatpush1.msra.mxu0 0.0
      %1630 = vmatprep.subr.mxu0 0.0
      %1631 = vmatpush1.msra.mxu0 0.0
      %1632 = vmatprep.subr.mxu0 0.0
      %1633 = vmatpush1.msra.mxu0 0.0
      %1634 = vmatprep.subr.mxu0 0.0
      %1635 = vmatpush1.msra.mxu0 0.0
      %1636 = vmatprep.subr.mxu0 0.0
      %1637 = vmatpush1.msra.mxu0 0.0
      %1638 = vmatprep.subr.mxu0 0.0
      %1639 = vmatpush1.msra.mxu0 0.0
      %1640 = vmatprep.subr.mxu0 0.0
      %1641 = vmatpush1.msra.mxu0 0.0
      %1642 = vmatprep.subr.mxu0 0.0
      %1643 = vmatpush1.msra.mxu0 0.0
      %1644 = vmatprep.subr.mxu0 0.0
      %1645 = vmatpush1.msra.mxu0 0.0
      %1646 = vmatprep.subr.mxu0 0.0
      %1647 = vmatpush1.msra.mxu0 0.0
      %1648 = vmatprep.subr.mxu0 0.0
      %1649 = vmatpush1.msra.mxu0 0.0
      %1650 = vmatprep.subr.mxu0 0.0
      %1651 = vmatpush1.msra.mxu0 0.0
      %1652 = vmatprep.subr.mxu0 0.0
      %1653 = vmatpush1.msra.mxu0 0.0
      %1654 = vmatprep.subr.mxu0 0.0
      %1655 = vmatpush1.msra.mxu0 0.0
      %1656 = vmatprep.subr.mxu0 0.0
      %1657 = vmatpush1.msra.mxu0 0.0
      %1658 = vmatprep.subr.mxu0 0.0
      %1659 = vmatpush1.msra.mxu0 0.0
      %1660 = vmatprep.subr.mxu0 0.0
      %1661 = vmatpush1.msra.mxu0 0.0
      %1662 = vmatprep.subr.mxu0 0.0
      %1663 = vmatpush1.msra.mxu0 0.0
      %1664 = vmatprep.subr.mxu0 0.0
      %1665 = vmatpush1.msra.mxu0 0.0
      %1666 = vmatprep.subr.mxu0 0.0
      %1667 = vmatpush1.msra.mxu0 0.0
      %1668 = vmatprep.mubr.f32.mxu0 0.0
      %1669 = vmatmul.mubr.f32.gmra.mrb[0].mxu0 %v1602
      %v1670 = vpop.f32.mrb[0].mxu0
      %v1671 = vadd.f32 %v1293, %v1670
      %v1672 = vpop.f32.mrb[0].mxu0
      %1673 = vdwg.mxu0
      %v1674 = vxor.u32 %v1671, 2147483648
      %v1675 = vmul.f32 %v1674, 1.442695
      %v1676 = vpow.pop %v1675
      %v1677 = vadd.f32 %v1676, 1.0
      %v1678 = vrcp.pop %v1677
      %v1679 = vmul.f32 1.0, %v1678
      %v1680 = vtanh.pop %v1671
      %v1681 = vmul.f32 %v1679, %v1589
      %1683 = vrot.lane.b32.xlu0 %v1680, 96
      %v1684 = vpop.permute.xlu0 %1683
      %v1686 = vmul.f32 %v1679, %v1684
      %1688 = vrot.lane.b32.xlu0 %v1686, 16
      %v1689 = vpop.permute.xlu0 %1688
      %v1691 = vadd.f32 %v1681, %v1689
      %v1692 = vtanh.pop %v1691
      %1694 = vrot.lane.b32.xlu0 %v1692, 32
      %v1695 = vpop.permute.xlu0 %1694
      %v1697 = vmul.f32 %v1679, %v1695
      %1699 = vrot.lane.b32.xlu0 %v1697, 96
      %v1700 = vpop.permute.xlu0 %1699
      %v1702 = vsel %vm177, %v492, %v1700
      %v1704 = vsel %vm185, %v1702, 0
      %1706 = vmatprep.subr.mxu0 0.0
      %1707 = vmatpush1.msra.mxu0 %v1282
      %1708 = vmatprep.subr.mxu0 0.0
      %1709 = vmatpush1.msra.mxu0 %v1283
      %1710 = vmatprep.subr.mxu0 0.0
      %1711 = vmatpush1.msra.mxu0 %v1284
      %1712 = vmatprep.subr.mxu0 0.0
      %1713 = vmatpush1.msra.mxu0 %v1285
      %1714 = vmatprep.subr.mxu0 0.0
      %1715 = vmatpush1.msra.mxu0 0.0
      %1716 = vmatprep.subr.mxu0 0.0
      %1717 = vmatpush1.msra.mxu0 0.0
      %1718 = vmatprep.subr.mxu0 0.0
      %1719 = vmatpush1.msra.mxu0 0.0
      %1720 = vmatprep.subr.mxu0 0.0
      %1721 = vmatpush1.msra.mxu0 0.0
      %1722 = vmatprep.subr.mxu0 0.0
      %1723 = vmatpush1.msra.mxu0 0.0
      %1724 = vmatprep.subr.mxu0 0.0
      %1725 = vmatpush1.msra.mxu0 0.0
      %1726 = vmatprep.subr.mxu0 0.0
      %1727 = vmatpush1.msra.mxu0 0.0
      %1728 = vmatprep.subr.mxu0 0.0
      %1729 = vmatpush1.msra.mxu0 0.0
      %1730 = vmatprep.subr.mxu0 0.0
      %1731 = vmatpush1.msra.mxu0 0.0
      %1732 = vmatprep.subr.mxu0 0.0
      %1733 = vmatpush1.msra.mxu0 0.0
      %1734 = vmatprep.subr.mxu0 0.0
      %1735 = vmatpush1.msra.mxu0 0.0
      %1736 = vmatprep.subr.mxu0 0.0
      %1737 = vmatpush1.msra.mxu0 0.0
      %1738 = vmatprep.subr.mxu0 0.0
      %1739 = vmatpush1.msra.mxu0 0.0
      %1740 = vmatprep.subr.mxu0 0.0
      %1741 = vmatpush1.msra.mxu0 0.0
      %1742 = vmatprep.subr.mxu0 0.0
      %1743 = vmatpush1.msra.mxu0 0.0
      %1744 = vmatprep.subr.mxu0 0.0
      %1745 = vmatpush1.msra.mxu0 0.0
      %1746 = vmatprep.subr.mxu0 0.0
      %1747 = vmatpush1.msra.mxu0 0.0
      %1748 = vmatprep.subr.mxu0 0.0
      %1749 = vmatpush1.msra.mxu0 0.0
      %1750 = vmatprep.subr.mxu0 0.0
      %1751 = vmatpush1.msra.mxu0 0.0
      %1752 = vmatprep.subr.mxu0 0.0
      %1753 = vmatpush1.msra.mxu0 0.0
      %1754 = vmatprep.subr.mxu0 0.0
      %1755 = vmatpush1.msra.mxu0 0.0
      %1756 = vmatprep.subr.mxu0 0.0
      %1757 = vmatpush1.msra.mxu0 0.0
      %1758 = vmatprep.subr.mxu0 0.0
      %1759 = vmatpush1.msra.mxu0 0.0
      %1760 = vmatprep.subr.mxu0 0.0
      %1761 = vmatpush1.msra.mxu0 0.0
      %1762 = vmatprep.subr.mxu0 0.0
      %1763 = vmatpush1.msra.mxu0 0.0
      %1764 = vmatprep.subr.mxu0 0.0
      %1765 = vmatpush1.msra.mxu0 0.0
      %1766 = vmatprep.subr.mxu0 0.0
      %1767 = vmatpush1.msra.mxu0 0.0
      %1768 = vmatprep.subr.mxu0 0.0
      %1769 = vmatpush1.msra.mxu0 0.0
      %1770 = vmatprep.mubr.f32.mxu0 0.0
      %1771 = vmatmul.mubr.f32.gmra.mrb[0].mxu0 %v1704
      %v1772 = vpop.f32.mrb[0].mxu0
      %v1773 = vadd.f32 %v1293, %v1772
      %v1774 = vpop.f32.mrb[0].mxu0
      %1775 = vdwg.mxu0
      %v1776 = vxor.u32 %v1773, 2147483648
      %v1777 = vmul.f32 %v1776, 1.442695
      %v1778 = vpow.pop %v1777
      %v1779 = vadd.f32 %v1778, 1.0
      %v1780 = vrcp.pop %v1779
      %v1781 = vmul.f32 1.0, %v1780
      %v1782 = vtanh.pop %v1773
      %v1783 = vmul.f32 %v1781, %v1691
      %1785 = vrot.lane.b32.xlu0 %v1782, 96
      %v1786 = vpop.permute.xlu0 %1785
      %v1788 = vmul.f32 %v1781, %v1786
      %1790 = vrot.lane.b32.xlu0 %v1788, 16
      %v1791 = vpop.permute.xlu0 %1790
      %v1793 = vadd.f32 %v1783, %v1791
      %v1794 = vtanh.pop %v1793
      %1796 = vrot.lane.b32.xlu0 %v1794, 32
      %v1797 = vpop.permute.xlu0 %1796
      %v1799 = vmul.f32 %v1781, %v1797
      %1801 = vrot.lane.b32.xlu0 %v1799, 96
      %v1802 = vpop.permute.xlu0 %1801
      %v1804 = vsel %vm177, %v388, %v1802
      %v1806 = vsel %vm185, %v1804, 0
      %1808 = vmatprep.subr.mxu0 0.0
      %1809 = vmatpush1.msra.mxu0 %v1282
      %1810 = vmatprep.subr.mxu0 0.0
      %1811 = vmatpush1.msra.mxu0 %v1283
      %1812 = vmatprep.subr.mxu0 0.0
      %1813 = vmatpush1.msra.mxu0 %v1284
      %1814 = vmatprep.subr.mxu0 0.0
      %1815 = vmatpush1.msra.mxu0 %v1285
      %1816 = vmatprep.subr.mxu0 0.0
      %1817 = vmatpush1.msra.mxu0 0.0
      %1818 = vmatprep.subr.mxu0 0.0
      %1819 = vmatpush1.msra.mxu0 0.0
      %1820 = vmatprep.subr.mxu0 0.0
      %1821 = vmatpush1.msra.mxu0 0.0
      %1822 = vmatprep.subr.mxu0 0.0
      %1823 = vmatpush1.msra.mxu0 0.0
      %1824 = vmatprep.subr.mxu0 0.0
      %1825 = vmatpush1.msra.mxu0 0.0
      %1826 = vmatprep.subr.mxu0 0.0
      %1827 = vmatpush1.msra.mxu0 0.0
      %1828 = vmatprep.subr.mxu0 0.0
      %1829 = vmatpush1.msra.mxu0 0.0
      %1830 = vmatprep.subr.mxu0 0.0
      %1831 = vmatpush1.msra.mxu0 0.0
      %1832 = vmatprep.subr.mxu0 0.0
      %1833 = vmatpush1.msra.mxu0 0.0
      %1834 = vmatprep.subr.mxu0 0.0
      %1835 = vmatpush1.msra.mxu0 0.0
      %1836 = vmatprep.subr.mxu0 0.0
      %1837 = vmatpush1.msra.mxu0 0.0
      %1838 = vmatprep.subr.mxu0 0.0
      %1839 = vmatpush1.msra.mxu0 0.0
      %1840 = vmatprep.subr.mxu0 0.0
      %1841 = vmatpush1.msra.mxu0 0.0
      %1842 = vmatprep.subr.mxu0 0.0
      %1843 = vmatpush1.msra.mxu0 0.0
      %1844 = vmatprep.subr.mxu0 0.0
      %1845 = vmatpush1.msra.mxu0 0.0
      %1846 = vmatprep.subr.mxu0 0.0
      %1847 = vmatpush1.msra.mxu0 0.0
      %1848 = vmatprep.subr.mxu0 0.0
      %1849 = vmatpush1.msra.mxu0 0.0
      %1850 = vmatprep.subr.mxu0 0.0
      %1851 = vmatpush1.msra.mxu0 0.0
      %1852 = vmatprep.subr.mxu0 0.0
      %1853 = vmatpush1.msra.mxu0 0.0
      %1854 = vmatprep.subr.mxu0 0.0
      %1855 = vmatpush1.msra.mxu0 0.0
      %1856 = vmatprep.subr.mxu0 0.0
      %1857 = vmatpush1.msra.mxu0 0.0
      %1858 = vmatprep.subr.mxu0 0.0
      %1859 = vmatpush1.msra.mxu0 0.0
      %1860 = vmatprep.subr.mxu0 0.0
      %1861 = vmatpush1.msra.mxu0 0.0
      %1862 = vmatprep.subr.mxu0 0.0
      %1863 = vmatpush1.msra.mxu0 0.0
      %1864 = vmatprep.subr.mxu0 0.0
      %1865 = vmatpush1.msra.mxu0 0.0
      %1866 = vmatprep.subr.mxu0 0.0
      %1867 = vmatpush1.msra.mxu0 0.0
      %1868 = vmatprep.subr.mxu0 0.0
      %1869 = vmatpush1.msra.mxu0 0.0
      %1870 = vmatprep.subr.mxu0 0.0
      %1871 = vmatpush1.msra.mxu0 0.0
      %1872 = vmatprep.mubr.f32.mxu0 0.0
      %1873 = vmatmul.mubr.f32.gmra.mrb[0].mxu0 %v1806
      %v1874 = vpop.f32.mrb[0].mxu0
      %v1875 = vadd.f32 %v1293, %v1874
      %v1876 = vpop.f32.mrb[0].mxu0
      %1877 = vdwg.mxu0
      %v1878 = vxor.u32 %v1875, 2147483648
      %v1879 = vmul.f32 %v1878, 1.442695
      %v1880 = vpow.pop %v1879
      %v1881 = vadd.f32 %v1880, 1.0
      %v1882 = vrcp.pop %v1881
      %v1883 = vmul.f32 1.0, %v1882
      %v1884 = vtanh.pop %v1875
      %v1885 = vmul.f32 %v1883, %v1793
      %1887 = vrot.lane.b32.xlu0 %v1884, 96
      %v1888 = vpop.permute.xlu0 %1887
      %v1890 = vmul.f32 %v1883, %v1888
      %1892 = vrot.lane.b32.xlu0 %v1890, 16
      %v1893 = vpop.permute.xlu0 %1892
      %v1895 = vadd.f32 %v1885, %v1893
      %v1896 = vtanh.pop %v1895
      %1898 = vrot.lane.b32.xlu0 %v1896, 32
      %v1899 = vpop.permute.xlu0 %1898
      %v1901 = vmul.f32 %v1883, %v1899
      %1903 = vrot.lane.b32.xlu0 %v1901, 96
      %v1904 = vpop.permute.xlu0 %1903
      %v1906 = vsel %vm177, %v284, %v1904
      %v1908 = vsel %vm185, %v1906, 0
      %1910 = vmatprep.subr.mxu0 0.0
      %1911 = vmatpush1.msra.mxu0 %v1282
      %1912 = vmatprep.subr.mxu0 0.0
      %1913 = vmatpush1.msra.mxu0 %v1283
      %1914 = vmatprep.subr.mxu0 0.0
      %1915 = vmatpush1.msra.mxu0 %v1284
      %1916 = vmatprep.subr.mxu0 0.0
      %1917 = vmatpush1.msra.mxu0 %v1285
      %1918 = vmatprep.subr.mxu0 0.0
      %1919 = vmatpush1.msra.mxu0 0.0
      %1920 = vmatprep.subr.mxu0 0.0
      %1921 = vmatpush1.msra.mxu0 0.0
      %1922 = vmatprep.subr.mxu0 0.0
      %1923 = vmatpush1.msra.mxu0 0.0
      %1924 = vmatprep.subr.mxu0 0.0
      %1925 = vmatpush1.msra.mxu0 0.0
      %1926 = vmatprep.subr.mxu0 0.0
      %1927 = vmatpush1.msra.mxu0 0.0
      %1928 = vmatprep.subr.mxu0 0.0
      %1929 = vmatpush1.msra.mxu0 0.0
      %1930 = vmatprep.subr.mxu0 0.0
      %1931 = vmatpush1.msra.mxu0 0.0
      %1932 = vmatprep.subr.mxu0 0.0
      %1933 = vmatpush1.msra.mxu0 0.0
      %1934 = vmatprep.subr.mxu0 0.0
      %1935 = vmatpush1.msra.mxu0 0.0
      %1936 = vmatprep.subr.mxu0 0.0
      %1937 = vmatpush1.msra.mxu0 0.0
      %1938 = vmatprep.subr.mxu0 0.0
      %1939 = vmatpush1.msra.mxu0 0.0
      %1940 = vmatprep.subr.mxu0 0.0
      %1941 = vmatpush1.msra.mxu0 0.0
      %1942 = vmatprep.subr.mxu0 0.0
      %1943 = vmatpush1.msra.mxu0 0.0
      %1944 = vmatprep.subr.mxu0 0.0
      %1945 = vmatpush1.msra.mxu0 0.0
      %1946 = vmatprep.subr.mxu0 0.0
      %1947 = vmatpush1.msra.mxu0 0.0
      %1948 = vmatprep.subr.mxu0 0.0
      %1949 = vmatpush1.msra.mxu0 0.0
      %1950 = vmatprep.subr.mxu0 0.0
      %1951 = vmatpush1.msra.mxu0 0.0
      %1952 = vmatprep.subr.mxu0 0.0
      %1953 = vmatpush1.msra.mxu0 0.0
      %1954 = vmatprep.subr.mxu0 0.0
      %1955 = vmatpush1.msra.mxu0 0.0
      %1956 = vmatprep.subr.mxu0 0.0
      %1957 = vmatpush1.msra.mxu0 0.0
      %1958 = vmatprep.subr.mxu0 0.0
      %1959 = vmatpush1.msra.mxu0 0.0
      %1960 = vmatprep.subr.mxu0 0.0
      %1961 = vmatpush1.msra.mxu0 0.0
      %1962 = vmatprep.subr.mxu0 0.0
      %1963 = vmatpush1.msra.mxu0 0.0
      %1964 = vmatprep.subr.mxu0 0.0
      %1965 = vmatpush1.msra.mxu0 0.0
      %1966 = vmatprep.subr.mxu0 0.0
      %1967 = vmatpush1.msra.mxu0 0.0
      %1968 = vmatprep.subr.mxu0 0.0
      %1969 = vmatpush1.msra.mxu0 0.0
      %1970 = vmatprep.subr.mxu0 0.0
      %1971 = vmatpush1.msra.mxu0 0.0
      %1972 = vmatprep.subr.mxu0 0.0
      %1973 = vmatpush1.msra.mxu0 0.0
      %1974 = vmatprep.mubr.f32.mxu0 0.0
      %1975 = vmatmul.mubr.f32.gmra.mrb[0].mxu0 %v1908
      %v1976 = vpop.f32.mrb[0].mxu0
      %v1977 = vadd.f32 %v1293, %v1976
      %v1978 = vpop.f32.mrb[0].mxu0
      %1979 = vdwg.mxu0
      %v1980 = vxor.u32 %v1977, 2147483648
      %v1981 = vmul.f32 %v1980, 1.442695
      %v1982 = vpow.pop %v1981
      %v1983 = vadd.f32 %v1982, 1.0
      %v1984 = vrcp.pop %v1983
      %v1985 = vmul.f32 1.0, %v1984
      %v1986 = vtanh.pop %v1977
      %v1987 = vmul.f32 %v1985, %v1895
      %1989 = vrot.lane.b32.xlu0 %v1986, 96
      %v1990 = vpop.permute.xlu0 %1989
      %v1992 = vmul.f32 %v1985, %v1990
      %1994 = vrot.lane.b32.xlu0 %v1992, 16
      %v1995 = vpop.permute.xlu0 %1994
      %v1997 = vadd.f32 %v1987, %v1995
      %v1998 = vtanh.pop %v1997
      %2000 = vrot.lane.b32.xlu0 %v1998, 32
      %v2001 = vpop.permute.xlu0 %2000
      %v2003 = vmul.f32 %v1985, %v2001
      %2005 = vrot.lane.b32.xlu0 %v2003, 96
      %v2006 = vpop.permute.xlu0 %2005
      %v2008 = vsel %vm177, %v176, %v2006
      %v2010 = vsel %vm185, %v2008, 0
      %2012 = vmatprep.subr.mxu0 0.0
      %2013 = vmatpush1.msra.mxu0 %v1282
      %2014 = vmatprep.subr.mxu0 0.0
      %2015 = vmatpush1.msra.mxu0 %v1283
      %2016 = vmatprep.subr.mxu0 0.0
      %2017 = vmatpush1.msra.mxu0 %v1284
      %2018 = vmatprep.subr.mxu0 0.0
      %2019 = vmatpush1.msra.mxu0 %v1285
      %2020 = vmatprep.subr.mxu0 0.0
      %2021 = vmatpush1.msra.mxu0 0.0
      %2022 = vmatprep.subr.mxu0 0.0
      %2023 = vmatpush1.msra.mxu0 0.0
      %2024 = vmatprep.subr.mxu0 0.0
      %2025 = vmatpush1.msra.mxu0 0.0
      %2026 = vmatprep.subr.mxu0 0.0
      %2027 = vmatpush1.msra.mxu0 0.0
      %2028 = vmatprep.subr.mxu0 0.0
      %2029 = vmatpush1.msra.mxu0 0.0
      %2030 = vmatprep.subr.mxu0 0.0
      %2031 = vmatpush1.msra.mxu0 0.0
      %2032 = vmatprep.subr.mxu0 0.0
      %2033 = vmatpush1.msra.mxu0 0.0
      %2034 = vmatprep.subr.mxu0 0.0
      %2035 = vmatpush1.msra.mxu0 0.0
      %2036 = vmatprep.subr.mxu0 0.0
      %2037 = vmatpush1.msra.mxu0 0.0
      %2038 = vmatprep.subr.mxu0 0.0
      %2039 = vmatpush1.msra.mxu0 0.0
      %2040 = vmatprep.subr.mxu0 0.0
      %2041 = vmatpush1.msra.mxu0 0.0
      %2042 = vmatprep.subr.mxu0 0.0
      %2043 = vmatpush1.msra.mxu0 0.0
      %2044 = vmatprep.subr.mxu0 0.0
      %2045 = vmatpush1.msra.mxu0 0.0
      %2046 = vmatprep.subr.mxu0 0.0
      %2047 = vmatpush1.msra.mxu0 0.0
      %2048 = vmatprep.subr.mxu0 0.0
      %2049 = vmatpush1.msra.mxu0 0.0
      %2050 = vmatprep.subr.mxu0 0.0
      %2051 = vmatpush1.msra.mxu0 0.0
      %2052 = vmatprep.subr.mxu0 0.0
      %2053 = vmatpush1.msra.mxu0 0.0
      %2054 = vmatprep.subr.mxu0 0.0
      %2055 = vmatpush1.msra.mxu0 0.0
      %2056 = vmatprep.subr.mxu0 0.0
      %2057 = vmatpush1.msra.mxu0 0.0
      %2058 = vmatprep.subr.mxu0 0.0
      %2059 = vmatpush1.msra.mxu0 0.0
      %2060 = vmatprep.subr.mxu0 0.0
      %2061 = vmatpush1.msra.mxu0 0.0
      %2062 = vmatprep.subr.mxu0 0.0
      %2063 = vmatpush1.msra.mxu0 0.0
      %2064 = vmatprep.subr.mxu0 0.0
      %2065 = vmatpush1.msra.mxu0 0.0
      %2066 = vmatprep.subr.mxu0 0.0
      %2067 = vmatpush1.msra.mxu0 0.0
      %2068 = vmatprep.subr.mxu0 0.0
      %2069 = vmatpush1.msra.mxu0 0.0
      %2070 = vmatprep.subr.mxu0 0.0
      %2071 = vmatpush1.msra.mxu0 0.0
      %2072 = vmatprep.subr.mxu0 0.0
      %2073 = vmatpush1.msra.mxu0 0.0
      %2074 = vmatprep.subr.mxu0 0.0
      %2075 = vmatpush1.msra.mxu0 0.0
      %2076 = vmatprep.mubr.f32.mxu0 0.0
      %2077 = vmatmul.mubr.f32.gmra.mrb[0].mxu0 %v2010
      %v2078 = vpop.f32.mrb[0].mxu0
      %v2079 = vadd.f32 %v1293, %v2078
      %v2080 = vpop.f32.mrb[0].mxu0
      %2081 = vdwg.mxu0
      %v2082 = vxor.u32 %v2079, 2147483648
      %v2083 = vmul.f32 %v2082, 1.442695
      %v2084 = vpow.pop %v2083
      %v2085 = vadd.f32 %v2084, 1.0
      %v2086 = vrcp.pop %v2085
      %v2087 = vmul.f32 1.0, %v2086
      %v2088 = vtanh.pop %v2079
      %v2089 = vmul.f32 %v2087, %v1997
      %2091 = vrot.lane.b32.xlu0 %v2088, 96
      %v2092 = vpop.permute.xlu0 %2091
      %v2094 = vmul.f32 %v2087, %v2092
      %2096 = vrot.lane.b32.xlu0 %v2094, 16
      %v2097 = vpop.permute.xlu0 %2096
      %v2099 = vadd.f32 %v2089, %v2097
      %v2100 = vtanh.pop %v2099
      %2102 = vrot.lane.b32.xlu0 %v2100, 32
      %v2103 = vpop.permute.xlu0 %2102
      %v2105 = vmul.f32 %v2087, %v2103
      %v2108 = vunpack.c.l.s4 1966171168
      %v2109 = vunpack.c.0.s8 %v2108
      %v2110 = vlaneseq
      %v2111 = vshrl.u32 %v2110, 7
      %v2112 = vsub.s32 %v2109, %v2111
      %v2113 = vrot.slane %v2105, %v2112
      %v2114 = vcombine.high %v2113, %v2113
      %v2116 = vunpack.c.l.s4 1966171168
      %v2117 = vunpack.c.0.s8 %v2116
      %v2118 = vlaneseq
      %v2119 = vshrl.u32 %v2118, 7
      %v2120 = vsub.s32 %v2117, %v2119
      %v2121 = vrot.slane %v2113, %v2120
      %v2123 = vunpack.c.l.s4 1966171168
      %v2124 = vunpack.c.0.s8 %v2123
      %v2125 = vlaneseq
      %v2126 = vshrl.u32 %v2125, 7
      %v2127 = vsub.s32 %v2124, %v2126
      %v2128 = vrot.slane %v2114, %v2127
      %v2132 = vunpack.c.l.s4 1966171168
      %v2133 = vunpack.c.0.s8 %v2132
      %v2134 = vlaneseq
      %v2135 = vshrl.u32 %v2134, 7
      %v2136 = vsub.s32 %v2133, %v2135
      %v2137 = vrot.slane %v2003, %v2136
      %v2138 = vcombine.high %v2137, %v2137
      %v2140 = vunpack.c.l.s4 1966171168
      %v2141 = vunpack.c.0.s8 %v2140
      %v2142 = vlaneseq
      %v2143 = vshrl.u32 %v2142, 7
      %v2144 = vsub.s32 %v2141, %v2143
      %v2145 = vrot.slane %v2137, %v2144
      %v2147 = vunpack.c.l.s4 1966171168
      %v2148 = vunpack.c.0.s8 %v2147
      %v2149 = vlaneseq
      %v2150 = vshrl.u32 %v2149, 7
      %v2151 = vsub.s32 %v2148, %v2150
      %v2152 = vrot.slane %v2138, %v2151
      %v2154 = vunpack.c.l.s4 1966171168
      %v2155 = vunpack.c.0.s8 %v2154
      %v2156 = vlaneseq
      %v2157 = vshrl.u32 %v2156, 7
      %v2158 = vsub.s32 %v2155, %v2157
      %v2159 = vrot.slane %v1901, %v2158
      %v2160 = vcombine.high %v2159, %v2159
      %v2162 = vunpack.c.l.s4 1966171168
      %v2163 = vunpack.c.0.s8 %v2162
      %v2164 = vlaneseq
      %v2165 = vshrl.u32 %v2164, 7
      %v2166 = vsub.s32 %v2163, %v2165
      %v2167 = vrot.slane %v2159, %v2166
      %v2169 = vunpack.c.l.s4 1966171168
      %v2170 = vunpack.c.0.s8 %v2169
      %v2171 = vlaneseq
      %v2172 = vshrl.u32 %v2171, 7
      %v2173 = vsub.s32 %v2170, %v2172
      %v2174 = vrot.slane %v2160, %v2173
      %v2176 = vunpack.c.l.s4 1966171168
      %v2177 = vunpack.c.0.s8 %v2176
      %v2178 = vlaneseq
      %v2179 = vshrl.u32 %v2178, 7
      %v2180 = vsub.s32 %v2177, %v2179
      %v2181 = vrot.slane %v1799, %v2180
      %v2182 = vcombine.high %v2181, %v2181
      %v2184 = vunpack.c.l.s4 1966171168
      %v2185 = vunpack.c.0.s8 %v2184
      %v2186 = vlaneseq
      %v2187 = vshrl.u32 %v2186, 7
      %v2188 = vsub.s32 %v2185, %v2187
      %v2189 = vrot.slane %v2181, %v2188
      %v2191 = vunpack.c.l.s4 1966171168
      %v2192 = vunpack.c.0.s8 %v2191
      %v2193 = vlaneseq
      %v2194 = vshrl.u32 %v2193, 7
      %v2195 = vsub.s32 %v2192, %v2194
      %v2196 = vrot.slane %v2182, %v2195
      %v2198 = vunpack.c.l.s4 1966171168
      %v2199 = vunpack.c.0.s8 %v2198
      %v2200 = vlaneseq
      %v2201 = vshrl.u32 %v2200, 7
      %v2202 = vsub.s32 %v2199, %v2201
      %v2203 = vrot.slane %v1697, %v2202
      %v2204 = vcombine.high %v2203, %v2203
      %v2206 = vunpack.c.l.s4 1966171168
      %v2207 = vunpack.c.0.s8 %v2206
      %v2208 = vlaneseq
      %v2209 = vshrl.u32 %v2208, 7
      %v2210 = vsub.s32 %v2207, %v2209
      %v2211 = vrot.slane %v2203, %v2210
      %v2213 = vunpack.c.l.s4 1966171168
      %v2214 = vunpack.c.0.s8 %v2213
      %v2215 = vlaneseq
      %v2216 = vshrl.u32 %v2215, 7
      %v2217 = vsub.s32 %v2214, %v2216
      %v2218 = vrot.slane %v2204, %v2217
      %v2220 = vunpack.c.l.s4 1966171168
      %v2221 = vunpack.c.0.s8 %v2220
      %v2222 = vlaneseq
      %v2223 = vshrl.u32 %v2222, 7
      %v2224 = vsub.s32 %v2221, %v2223
      %v2225 = vrot.slane %v1595, %v2224
      %v2226 = vcombine.high %v2225, %v2225
      %v2228 = vunpack.c.l.s4 1966171168
      %v2229 = vunpack.c.0.s8 %v2228
      %v2230 = vlaneseq
      %v2231 = vshrl.u32 %v2230, 7
      %v2232 = vsub.s32 %v2229, %v2231
      %v2233 = vrot.slane %v2225, %v2232
      %v2235 = vunpack.c.l.s4 1966171168
      %v2236 = vunpack.c.0.s8 %v2235
      %v2237 = vlaneseq
      %v2238 = vshrl.u32 %v2237, 7
      %v2239 = vsub.s32 %v2236, %v2238
      %v2240 = vrot.slane %v2226, %v2239
      %v2242 = vunpack.c.l.s4 1966171168
      %v2243 = vunpack.c.0.s8 %v2242
      %v2244 = vlaneseq
      %v2245 = vshrl.u32 %v2244, 7
      %v2246 = vsub.s32 %v2243, %v2245
      %v2247 = vrot.slane %v1493, %v2246
      %v2248 = vcombine.high %v2247, %v2247
      %v2250 = vunpack.c.l.s4 1966171168
      %v2251 = vunpack.c.0.s8 %v2250
      %v2252 = vlaneseq
      %v2253 = vshrl.u32 %v2252, 7
      %v2254 = vsub.s32 %v2251, %v2253
      %v2255 = vrot.slane %v2247, %v2254
      %v2257 = vunpack.c.l.s4 1966171168
      %v2258 = vunpack.c.0.s8 %v2257
      %v2259 = vlaneseq
      %v2260 = vshrl.u32 %v2259, 7
      %v2261 = vsub.s32 %v2258, %v2260
      %v2262 = vrot.slane %v2248, %v2261
      %v2264 = vunpack.c.l.s4 1966171168
      %v2265 = vunpack.c.0.s8 %v2264
      %v2266 = vlaneseq
      %v2267 = vshrl.u32 %v2266, 7
      %v2268 = vsub.s32 %v2265, %v2267
      %v2269 = vrot.slane %v1391, %v2268
      %v2270 = vcombine.high %v2269, %v2269
      %v2272 = vunpack.c.l.s4 1966171168
      %v2273 = vunpack.c.0.s8 %v2272
      %v2274 = vlaneseq
      %v2275 = vshrl.u32 %v2274, 7
      %v2276 = vsub.s32 %v2273, %v2275
      %v2277 = vrot.slane %v2269, %v2276
      %v2279 = vunpack.c.l.s4 1966171168
      %v2280 = vunpack.c.0.s8 %v2279
      %v2281 = vlaneseq
      %v2282 = vshrl.u32 %v2281, 7
      %v2283 = vsub.s32 %v2280, %v2282
      %v2284 = vrot.slane %v2270, %v2283
      %v2285 = vlaneseq
      %v2286 = vshrl.u32 %v2285, 7
      %v2287 = vsub.s32 0, %v2286
      %v2288 = vrot.slane %v2145, %v2287
      %v2289 = vlaneseq
      %v2290 = vshrl.u32 %v2289, 7
      %v2291 = vsub.s32 0, %v2290
      %v2292 = vrot.slane %v2152, %v2291
      %v2295 = vlaneseq
      %v2296 = vshrl.u32 %v2295, 7
      %v2297 = vsub.s32 0, %v2296
      %v2298 = vrot.slane %v2167, %v2297
      %v2299 = vlaneseq
      %v2300 = vshrl.u32 %v2299, 7
      %v2301 = vsub.s32 0, %v2300
      %v2302 = vrot.slane %v2174, %v2301
      %v2305 = vlaneseq
      %v2306 = vshrl.u32 %v2305, 7
      %v2307 = vsub.s32 0, %v2306
      %v2308 = vrot.slane %v2189, %v2307
      %v2309 = vlaneseq
      %v2310 = vshrl.u32 %v2309, 7
      %v2311 = vsub.s32 0, %v2310
      %v2312 = vrot.slane %v2196, %v2311
      %v2315 = vlaneseq
      %v2316 = vshrl.u32 %v2315, 7
      %v2317 = vsub.s32 0, %v2316
      %v2318 = vrot.slane %v2211, %v2317
      %v2319 = vlaneseq
      %v2320 = vshrl.u32 %v2319, 7
      %v2321 = vsub.s32 0, %v2320
      %v2322 = vrot.slane %v2218, %v2321
      %v2325 = vlaneseq
      %v2326 = vshrl.u32 %v2325, 7
      %v2327 = vsub.s32 0, %v2326
      %v2328 = vrot.slane %v2233, %v2327
      %v2329 = vlaneseq
      %v2330 = vshrl.u32 %v2329, 7
      %v2331 = vsub.s32 0, %v2330
      %v2332 = vrot.slane %v2240, %v2331
      %v2335 = vlaneseq
      %v2336 = vshrl.u32 %v2335, 7
      %v2337 = vsub.s32 0, %v2336
      %v2338 = vrot.slane %v2255, %v2337
      %v2339 = vlaneseq
      %v2340 = vshrl.u32 %v2339, 7
      %v2341 = vsub.s32 0, %v2340
      %v2342 = vrot.slane %v2262, %v2341
      %v2345 = vlaneseq
      %v2346 = vshrl.u32 %v2345, 7
      %v2347 = vsub.s32 0, %v2346
      %v2348 = vrot.slane %v2277, %v2347
      %v2349 = vlaneseq
      %v2350 = vshrl.u32 %v2349, 7
      %v2351 = vsub.s32 0, %v2350
      %v2352 = vrot.slane %v2284, %v2351
      %v2355 = vsel %vm1260, %v2121, %v2288
      %v2356 = vsel %vm1260, %v2128, %v2292
      %v2357 = vsel %vm1263, %v2355, %v2298
      %v2358 = vsel %vm1263, %v2356, %v2302
      %v2359 = vsel %vm1266, %v2357, %v2308
      %v2360 = vsel %vm1266, %v2358, %v2312
      %v2361 = vsel %vm1269, %v2359, %v2318
      %v2362 = vsel %vm1269, %v2360, %v2322
      %v2363 = vsel %vm1272, %v2361, %v2328
      %v2364 = vsel %vm1272, %v2362, %v2332
      %v2365 = vsel %vm1275, %v2363, %v2338
      %v2366 = vsel %vm1275, %v2364, %v2342
      %v2367 = vsel %vm1278, %v2365, %v2348
      %v2368 = vsel %vm1278, %v2366, %v2352
      %2371 = vrot.lane.b32.xlu0 %v1279, 80
      %v2372 = vpop.permute.xlu0 %2371
      %2373 = vrot.lane.b32.xlu0 %v1280, 80
      %v2374 = vpop.permute.xlu0 %2373
      %2379 = vrot.lane.b32.xlu0 %v2367, 96
      %v2380 = vpop.permute.xlu0 %2379
      %2381 = vrot.lane.b32.xlu0 %v2368, 96
      %v2382 = vpop.permute.xlu0 %2381
      %v2385 = vsel %vm177, %v2372, %v2380
      %v2386 = vsel %vm177, %v2374, %v2382
      %2387 = vst.msk [vmem:[%s170] sm:$0xff] %vm185, %v2385
      %2388 = vst.msk [vmem:[%s170 + $0x8] sm:$0xff] %vm185, %v2386
      %p2389 = scmp.lt.s32.totalorder %s14, 1
      %s2390 = scalar_select %p2389, %s14, 1
      %s2391 = smul.addr %s2390, 2
      %s2392 = smul.addr %s2391, 8
      %s2393 = scalar_lea.vmem %s3, %s2392
      // Predicated region
      $region33: #{san_forward.2} parent=31 // pred_check
        %p2394 = pneg %p100
      $region34: #{san_forward.2} parent=31 // pred_check_branch
        %2396 = sbr.rel (%p2394) target = $region36
      $region35: #{san_forward.2} parent=31 // pred_region
        _
      $region36: #{san_forward.2} parent=31 // pred_fallthru
        _
    $region32: #{san_forward.2} parent=5 // pred_fallthru
      _
    %p2397 = scmp.le.s32.totalorder 2, %s9
    // Predicated region
    $region37: #{san_forward.2} parent=5 // pred_check
      %p2398 = pneg %p2397
    $region38: #{san_forward.2} parent=5 // pred_check_branch
      %2400 = sbr.rel (%p2398) target = $region40
    $region39: #{san_forward.2} parent=5 // pred_region
      %s2401 = ssub.s32 %s9, 2
      // Predicated region
      $region41: #{san_forward.2} parent=39 // pred_check
        %p2402 = pneg %p106
      $region42: #{san_forward.2} parent=39 // pred_check_branch
        %2404 = sbr.rel (%p2402) target = $region44
      $region43: #{san_forward.2} parent=39 // pred_region
        %p2405 = scmp.lt.s32.totalorder %s15, 1
        %s2406 = scalar_select %p2405, %s15, 1
        %s2407 = smul.addr %s2406, 2
        %s2408 = smul.addr %s2407, 8
        %s2409 = scalar_lea.vmem %s3, %s2408
      $region44: #{san_forward.2} parent=39 // pred_fallthru
        _
    $region40: #{san_forward.2} parent=5 // pred_fallthru
      _
  $region6: #{san_forward.2} parent=0 // loop_footer
    %s13 = sadd.s32 1, %s9
  $region7: #{san_forward.2} parent=0 // loop_footer_branch
    %8 = sbr.rel target = $region3
  $region8: #{san_forward.2} parent=0 // loop_exit
    _

</llo_original>
